<compile_context>
chip_gen: v7x
topology: tpu7x:2x2x1
jax: 0.10.0
libtpu: 0.0.40
codegen_flags: <defaults>
</compile_context>

<pallas_src>
import functools

import jax
import jax.numpy as jnp
from jax import lax
from jax.experimental import pallas as pl
from jax.experimental.pallas import tpu as pltpu

# ----------------------------- model config ---------------------------------
BLOCK_SIZE = 8      # T
N_VOCAB    = 64     # V
N_EMBD     = 32     # E
N_HEADS    = 4      # H
N_BLOCKS   = 2      # L
DROPOUT    = 0.0    # eval mode -> identity
BATCH      = 2      # B
EPS        = 1e-5   # nn.LayerNorm default
NEG_BIG    = -1e9   # finite "masked" value (avoids NaN risk of -inf rows)


# ----------------------------- Pallas kernel ---------------------------------
def _layernorm(x, g, b):
    # x: (T, E); g/b: (1, E).  Biased variance, matching nn.LayerNorm.
    m = jnp.mean(x, axis=-1, keepdims=True)
    c = x - m
    v = jnp.mean(c * c, axis=-1, keepdims=True)
    return c * lax.rsqrt(v + EPS) * g + b


def fused_transformer_kernel(x_ref,
                             ln1g_ref, ln1b_ref, wqkv_ref, wp_ref, bp_ref,
                             ln2g_ref, ln2b_ref, w1_ref, b1_ref, w2_ref, b2_ref,
                             lnfg_ref, lnfb_ref, wlm_ref, blm_ref,
                             o_ref, *, n_layers, n_heads):
    x = x_ref[...]                                   # (T, E): one batch element
    T, E = x.shape
    hs = E // n_heads

    # In-kernel causal bias: rows attend to cols <= row (diagonal always open,
    # so the softmax max-subtraction never sees an all-masked row).
    row_id = lax.broadcasted_iota(jnp.int32, (T, T), 0)
    col_id = lax.broadcasted_iota(jnp.int32, (T, T), 1)
    bias = jnp.where(row_id >= col_id, 0.0, NEG_BIG).astype(jnp.float32)
    bias = bias[None, :, :]                          # (1, T, T)

    def to_heads(a):                                 # (T, E) -> (H, T, hs)
        return jnp.transpose(a.reshape(T, n_heads, hs), (1, 0, 2))

    for l in range(n_layers):                        # N_BLOCKS = 2 -> unrolled
        # ---------------- multi-head causal self-attention ----------------
        xn = _layernorm(x, ln1g_ref[l], ln1b_ref[l])                    # (T, E)
        # Single fused QKV matmul; E**-0.5 already folded into the Q columns.
        qkv = jnp.dot(xn, wqkv_ref[l],
                      preferred_element_type=jnp.float32)               # (T, 3E)
        q = to_heads(qkv[:, 0:E])                                       # (H, T, hs)
        k = to_heads(qkv[:, E:2 * E])
        v = to_heads(qkv[:, 2 * E:3 * E])

        s = jnp.einsum("hqd,hkd->hqk", q, k,
                       preferred_element_type=jnp.float32) + bias       # (H, T, T)
        s = s - jnp.max(s, axis=-1, keepdims=True)
        p = jnp.exp(s)
        # reciprocal on the small (H, T, 1) rowsum, then one full-tile multiply
        inv = 1.0 / jnp.sum(p, axis=-1, keepdims=True)
        p = p * inv

        o = jnp.einsum("hqk,hkd->hqd", p, v,
                       preferred_element_type=jnp.float32)              # (H, T, hs)
        # concat(heads) via transpose+reshape, then ONE output projection
        # matmul with contraction depth E (== concat(o_h) @ wp exactly).
        o2d = jnp.transpose(o, (1, 0, 2)).reshape(T, E)                 # (T, E)
        att = jnp.dot(o2d, wp_ref[l],
                      preferred_element_type=jnp.float32)               # (T, E)
        x = x + att + bp_ref[l]

        # ---------------------------- feed-forward -------------------------
        xn2 = _layernorm(x, ln2g_ref[l], ln2b_ref[l])
        h1 = jnp.dot(xn2, w1_ref[l], preferred_element_type=jnp.float32) + b1_ref[l]
        h1 = jnp.maximum(h1, 0.0)
        x = x + jnp.dot(h1, w2_ref[l], preferred_element_type=jnp.float32) + b2_ref[l]

    # --------------- final LayerNorm + lm_head (128-lane padded) -------------
    xn = _layernorm(x, lnfg_ref[...], lnfb_ref[...])
    o_ref[...] = (jnp.dot(xn, wlm_ref[...], preferred_element_type=jnp.float32)
                  + blm_ref[...])


# ----------------------------- Python wrappers -------------------------------
def prep_params(params):
    """One-time parameter transform: stack per-block weights along L, fuse QKV
    into a single (E, 3E) weight with the attention scale folded into Q, and
    zero-pad the lm_head to a 128-lane output."""
    E, H = N_EMBD, N_HEADS
    scale = float(E) ** -0.5          # PyTorch Head scales by C**-0.5 with C = n_embd

    blocks = params["blocks"]
    wqkv = jnp.stack([jnp.concatenate([b["wq"] * scale, b["wk"], b["wv"]], axis=1)
                      for b in blocks])                                # (L, E, 3E)

    def stack(name):
        return jnp.stack([b[name] for b in blocks])

    V = params["wlm"].shape[1]
    Vp = ((V + 127) // 128) * 128
    wlm_p = jnp.zeros((E, Vp), jnp.float32).at[:, :V].set(params["wlm"])
    blm_p = jnp.zeros((1, Vp), jnp.float32).at[:, :V].set(params["blm"])

    return {
        "emb": params["emb"], "pos": params["pos"],
        "ln1g": stack("ln1g"), "ln1b": stack("ln1b"),
        "wqkv": wqkv, "wp": stack("wp"), "bp": stack("bp"),
        "ln2g": stack("ln2g"), "ln2b": stack("ln2b"),
        "w1": stack("w1"), "b1": stack("b1"),
        "w2": stack("w2"), "b2": stack("b2"),
        "lnf_g": params["lnf_g"], "lnf_b": params["lnf_b"],
        "wlm_p": wlm_p, "blm_p": blm_p,
        "n_vocab": V, "n_heads": H,
    }


def transformer_forward(idx, pp):
    """idx: (B, T) int32 token ids.  Returns logits (B, T, V)."""
    B, T = idx.shape
    E = pp["emb"].shape[1]
    Vp = pp["wlm_p"].shape[1]
    L = pp["wqkv"].shape[0]
    H = pp["n_heads"]

    # glue: embedding gathers in plain JAX, then fold batch into rows
    tok = jnp.take(pp["emb"], idx, axis=0)                    # (B, T, E)
    x2d = (tok + pp["pos"][None, :T, :]).reshape(B * T, E)    # (B*T, E)

    weights = (pp["ln1g"], pp["ln1b"], pp["wqkv"], pp["wp"], pp["bp"],
               pp["ln2g"], pp["ln2b"], pp["w1"], pp["b1"], pp["w2"], pp["b2"],
               pp["lnf_g"], pp["lnf_b"], pp["wlm_p"], pp["blm_p"])

    def full_spec(shape):   # whole array; constant block index => fetched once
        nd = len(shape)
        return pl.BlockSpec(tuple(shape), lambda b, nd=nd: (0,) * nd)

    # vmem budget derived from actual operand bytes (double-buffer + headroom),
    # not a hard-coded fraction of any one generation's VMEM.
    operand_bytes = (x2d.size * x2d.dtype.itemsize
                     + sum(int(a.size) * a.dtype.itemsize for a in weights)
                     + B * T * Vp * 4)
    vmem_limit = int(min(max(16 * operand_bytes, 4 << 20), 32 << 20))

    kern = functools.partial(fused_transformer_kernel, n_layers=L, n_heads=H)

    out = pl.pallas_call(
        kern,
        out_shape=jax.ShapeDtypeStruct((B * T, Vp), jnp.float32),
        grid=(B,),
        in_specs=[pl.BlockSpec((T, E), lambda b: (b, 0))]
                 + [full_spec(a.shape) for a in weights],
        out_specs=pl.BlockSpec((T, Vp), lambda b: (b, 0)),
        compiler_params=pltpu.CompilerParams(
            dimension_semantics=("parallel",),      # feeds both TCs on v7x
            vmem_limit_bytes=vmem_limit),
    )(x2d, *weights)

    return out.reshape(B, T, Vp)[:, :, :pp["n_vocab"]]


# ----------------------------- pure-JAX reference ----------------------------
def _ln_ref(x, g, b):
    m = x.mean(-1, keepdims=True)
    v = ((x - m) ** 2).mean(-1, keepdims=True)
    return (x - m) / jnp.sqrt(v + EPS) * g + b


def _block_ref(x, p):
    B, T, E = x.shape
    hs = E // N_HEADS
    xn = _ln_ref(x, p["ln1g"], p["ln1b"])
    q, k, v = xn @ p["wq"], xn @ p["wk"], xn @ p["wv"]
    mask = jnp.tril(jnp.ones((T, T)))
    outs = []
    for h in range(N_HEADS):
        qh, kh, vh = (a[..., h * hs:(h + 1) * hs] for a in (q, k, v))
        wei = qh @ jnp.swapaxes(kh, -1, -2) * float(E) ** -0.5
        wei = jnp.where(mask == 0, -jnp.inf, wei)
        wei = jax.nn.softmax(wei, axis=-1)
        outs.append(wei @ vh)
    att = jnp.concatenate(outs, axis=-1) @ p["wp"] + p["bp"]
    x = x + att
    xn2 = _ln_ref(x, p["ln2g"], p["ln2b"])
    ff = jnp.maximum(xn2 @ p["w1"] + p["b1"], 0.0) @ p["w2"] + p["b2"]
    return x + ff


def transformer_ref(idx, params):
    B, T = idx.shape
    x = jnp.take(params["emb"], idx, axis=0) + params["pos"][None, :T, :]
    for blk in params["blocks"]:
        x = _block_ref(x, blk)
    xn = _ln_ref(x, params["lnf_g"], params["lnf_b"])
    return xn @ params["wlm"] + params["blm"]


# ----------------------------- parameter init --------------------------------
def init_params(key):
    def nrm(key, shape, scale=0.02):
        return (scale * jax.random.normal(key, shape)).astype(jnp.float32)

    keys = jax.random.split(key, 4 + N_BLOCKS)
    params = {
        "emb": nrm(keys[0], (N_VOCAB, N_EMBD)),
        "pos": nrm(keys[1], (BLOCK_SIZE, N_EMBD)),
        "lnf_g": jnp.ones((1, N_EMBD), jnp.float32),
        "lnf_b": jnp.zeros((1, N_EMBD), jnp.float32),
        "wlm": nrm(keys[2], (N_EMBD, N_VOCAB)),
        "blm": nrm(keys[3], (1, N_VOCAB)),
        "blocks": [],
    }
    for i in range(N_BLOCKS):
        bk = jax.random.split(keys[4 + i], 8)
        E = N_EMBD
        params["blocks"].append({
            "ln1g": jnp.ones((1, E), jnp.float32),
            "ln1b": jnp.zeros((1, E), jnp.float32),
            "wq": nrm(bk[0], (E, E)),
            "wk": nrm(bk[1], (E, E)),
            "wv": nrm(bk[2], (E, E)),
            "wp": nrm(bk[3], (E, E)),
            "bp": nrm(bk[4], (1, E)),
            "ln2g": jnp.ones((1, E), jnp.float32),
            "ln2b": jnp.zeros((1, E), jnp.float32),
            "w1": nrm(bk[5], (E, 4 * E)),
            "b1": nrm(bk[6], (1, 4 * E)),
            "w2": nrm(bk[7], (4 * E, E)),
            "b2": jnp.zeros((1, E), jnp.float32),
        })
    return params


# ----------------------------------- main ------------------------------------
if __name__ == "__main__":
    key = jax.random.PRNGKey(0)
    pkey, ikey = jax.random.split(key)
    params = init_params(pkey)
    pp = prep_params(params)
    idx = jax.random.randint(ikey, (BATCH, BLOCK_SIZE), 0, N_VOCAB, dtype=jnp.int32)

    logits = jax.block_until_ready(transformer_forward(idx, pp))
    ref = jax.block_until_ready(transformer_ref(idx, params))

    assert logits.shape == (BATCH, BLOCK_SIZE, N_VOCAB)
    assert jnp.allclose(logits, ref, atol=1e-3, rtol=1e-3), "mismatch vs JAX reference"
    print("KERNEL_OK")
</pallas_src>

<mosaic_0001>
module attributes {stable_mosaic.version = 11 : i64} {
  func.func @fused_transformer_kernel(%arg0: i32, %arg1: memref<8x32xf32, #tpu.memory_space<vmem>>, %arg2: memref<2x1x32xf32, #tpu.memory_space<vmem>>, %arg3: memref<2x1x32xf32, #tpu.memory_space<vmem>>, %arg4: memref<2x32x96xf32, #tpu.memory_space<vmem>>, %arg5: memref<2x32x32xf32, #tpu.memory_space<vmem>>, %arg6: memref<2x1x32xf32, #tpu.memory_space<vmem>>, %arg7: memref<2x1x32xf32, #tpu.memory_space<vmem>>, %arg8: memref<2x1x32xf32, #tpu.memory_space<vmem>>, %arg9: memref<2x32x128xf32, #tpu.memory_space<vmem>>, %arg10: memref<2x1x128xf32, #tpu.memory_space<vmem>>, %arg11: memref<2x128x32xf32, #tpu.memory_space<vmem>>, %arg12: memref<2x1x32xf32, #tpu.memory_space<vmem>>, %arg13: memref<1x32xf32, #tpu.memory_space<vmem>>, %arg14: memref<1x32xf32, #tpu.memory_space<vmem>>, %arg15: memref<32x128xf32, #tpu.memory_space<vmem>>, %arg16: memref<1x128xf32, #tpu.memory_space<vmem>>, %arg17: memref<8x128xf32, #tpu.memory_space<vmem>>) attributes {dimension_semantics = [#tpu.dimension_semantics<parallel>], iteration_bounds = array<i64: 2>, scalar_prefetch = 0 : i64, scratch_operands = 0 : i64, tpu.core_type = #tpu.core_type<tc>, window_params = [{transform_indices = @transform_0, window_bounds = array<i64: 8, 32>}, {pipeline_mode = #tpu.pipeline_mode<synchronous>, transform_indices = @transform_1, window_bounds = array<i64: 2, 1, 32>}, {pipeline_mode = #tpu.pipeline_mode<synchronous>, transform_indices = @transform_2, window_bounds = array<i64: 2, 1, 32>}, {pipeline_mode = #tpu.pipeline_mode<synchronous>, transform_indices = @transform_3, window_bounds = array<i64: 2, 32, 96>}, {pipeline_mode = #tpu.pipeline_mode<synchronous>, transform_indices = @transform_4, window_bounds = array<i64: 2, 32, 32>}, {pipeline_mode = #tpu.pipeline_mode<synchronous>, transform_indices = @transform_5, window_bounds = array<i64: 2, 1, 32>}, {pipeline_mode = #tpu.pipeline_mode<synchronous>, transform_indices = @transform_6, window_bounds = array<i64: 2, 1, 32>}, {pipeline_mode = #tpu.pipeline_mode<synchronous>, transform_indices = @transform_7, window_bounds = array<i64: 2, 1, 32>}, {pipeline_mode = #tpu.pipeline_mode<synchronous>, transform_indices = @transform_8, window_bounds = array<i64: 2, 32, 128>}, {pipeline_mode = #tpu.pipeline_mode<synchronous>, transform_indices = @transform_9, window_bounds = array<i64: 2, 1, 128>}, {pipeline_mode = #tpu.pipeline_mode<synchronous>, transform_indices = @transform_10, window_bounds = array<i64: 2, 128, 32>}, {pipeline_mode = #tpu.pipeline_mode<synchronous>, transform_indices = @transform_11, window_bounds = array<i64: 2, 1, 32>}, {pipeline_mode = #tpu.pipeline_mode<synchronous>, transform_indices = @transform_12, window_bounds = array<i64: 1, 32>}, {pipeline_mode = #tpu.pipeline_mode<synchronous>, transform_indices = @transform_13, window_bounds = array<i64: 1, 32>}, {pipeline_mode = #tpu.pipeline_mode<synchronous>, transform_indices = @transform_14, window_bounds = array<i64: 32, 128>}, {pipeline_mode = #tpu.pipeline_mode<synchronous>, transform_indices = @transform_15, window_bounds = array<i64: 1, 128>}, {transform_indices = @transform_16, window_bounds = array<i64: 8, 128>}]} {
    %c0 = arith.constant 0 : index
    %c0_0 = arith.constant 0 : index
    %0 = vector.load %arg1[%c0, %c0_0] : memref<8x32xf32, #tpu.memory_space<vmem>>, vector<8x32xf32>
    %1 = tpu.iota {dimensions = array<i32: 0>} : vector<8x8xi32>
    %2 = tpu.iota {dimensions = array<i32: 1>} : vector<8x8xi32>
    %3 = arith.cmpi sge, %1, %2 : vector<8x8xi32>
    %cst = arith.constant 0.000000e+00 : f32
    %cst_1 = arith.constant -1.000000e+09 : f32
    %4 = vector.broadcast %cst : f32 to vector<8x8xf32>
    %5 = vector.broadcast %cst_1 : f32 to vector<8x8xf32>
    %6 = arith.select %3, %4, %5 : vector<8x8xi1>, vector<8x8xf32>
    %7 = vector.shape_cast %6 : vector<8x8xf32> to vector<1x8x8xf32>
    %c0_2 = arith.constant 0 : index
    %c0_3 = arith.constant 0 : index
    %c0_4 = arith.constant 0 : index
    %8 = vector.load %arg2[%c0_2, %c0_3, %c0_4] : memref<2x1x32xf32, #tpu.memory_space<vmem>>, vector<1x1x32xf32>
    %9 = vector.shape_cast %8 : vector<1x1x32xf32> to vector<1x32xf32>
    %c0_5 = arith.constant 0 : index
    %c0_6 = arith.constant 0 : index
    %c0_7 = arith.constant 0 : index
    %10 = vector.load %arg3[%c0_5, %c0_6, %c0_7] : memref<2x1x32xf32, #tpu.memory_space<vmem>>, vector<1x1x32xf32>
    %11 = vector.shape_cast %10 : vector<1x1x32xf32> to vector<1x32xf32>
    %cst_8 = arith.constant dense<0.000000e+00> : vector<8xf32>
    %12 = vector.multi_reduction <add>, %0, %cst_8 [1] : vector<8x32xf32> to vector<8xf32>
    %13 = vector.shape_cast %12 : vector<8xf32> to vector<8x1xf32>
    %cst_9 = arith.constant 3.200000e+01 : f32
    %14 = vector.broadcast %cst_9 : f32 to vector<8x1xf32>
    %15 = arith.divf %13, %14 : vector<8x1xf32>
    %16 = vector.broadcast %15 : vector<8x1xf32> to vector<8x32xf32>
    %17 = arith.subf %0, %16 : vector<8x32xf32>
    %18 = arith.mulf %17, %17 : vector<8x32xf32>
    %cst_10 = arith.constant dense<0.000000e+00> : vector<8xf32>
    %19 = vector.multi_reduction <add>, %18, %cst_10 [1] : vector<8x32xf32> to vector<8xf32>
    %20 = vector.shape_cast %19 : vector<8xf32> to vector<8x1xf32>
    %cst_11 = arith.constant 3.200000e+01 : f32
    %21 = vector.broadcast %cst_11 : f32 to vector<8x1xf32>
    %22 = arith.divf %20, %21 : vector<8x1xf32>
    %cst_12 = arith.constant 9.99999974E-6 : f32
    %23 = vector.broadcast %cst_12 : f32 to vector<8x1xf32>
    %24 = arith.addf %22, %23 : vector<8x1xf32>
    %25 = math.rsqrt %24 : vector<8x1xf32>
    %26 = vector.broadcast %25 : vector<8x1xf32> to vector<8x32xf32>
    %27 = arith.mulf %17, %26 : vector<8x32xf32>
    %28 = vector.broadcast %9 : vector<1x32xf32> to vector<8x32xf32>
    %29 = arith.mulf %27, %28 : vector<8x32xf32>
    %30 = vector.broadcast %11 : vector<1x32xf32> to vector<8x32xf32>
    %31 = arith.addf %29, %30 : vector<8x32xf32>
    %c0_13 = arith.constant 0 : index
    %c0_14 = arith.constant 0 : index
    %c0_15 = arith.constant 0 : index
    %32 = vector.load %arg4[%c0_13, %c0_14, %c0_15] : memref<2x32x96xf32, #tpu.memory_space<vmem>>, vector<1x32x96xf32>
    %33 = vector.shape_cast %32 : vector<1x32x96xf32> to vector<32x96xf32>
    %cst_16 = arith.constant dense<0.000000e+00> : vector<8x96xf32>
    %34 = tpu.matmul %31, %33, %cst_16 {dimension_numbers = #tpu.dot_dimension_numbers<[1], [0], [0], [1], [0, 0, 1, 1], [], []>} : vector<8x32xf32>, vector<32x96xf32>, vector<8x96xf32> -> vector<8x96xf32>
    %35 = vector.extract_strided_slice %34 {offsets = [0, 0], sizes = [8, 32], strides = [1, 1]} : vector<8x96xf32> to vector<8x32xf32>
    %36 = vector.shape_cast %35 : vector<8x32xf32> to vector<8x4x8xf32>
    %37 = tpu.transpose %36, [1, 0, 2] : vector<8x4x8xf32> -> vector<4x8x8xf32>
    %38 = vector.extract_strided_slice %34 {offsets = [0, 32], sizes = [8, 32], strides = [1, 1]} : vector<8x96xf32> to vector<8x32xf32>
    %39 = vector.shape_cast %38 : vector<8x32xf32> to vector<8x4x8xf32>
    %40 = tpu.transpose %39, [1, 0, 2] : vector<8x4x8xf32> -> vector<4x8x8xf32>
    %41 = vector.extract_strided_slice %34 {offsets = [0, 64], sizes = [8, 32], strides = [1, 1]} : vector<8x96xf32> to vector<8x32xf32>
    %42 = vector.shape_cast %41 : vector<8x32xf32> to vector<8x4x8xf32>
    %43 = tpu.transpose %42, [1, 0, 2] : vector<8x4x8xf32> -> vector<4x8x8xf32>
    "tpu.trace_start"() <{level = 10 : i32, message = "hqd,hkd->hqk"}> : () -> ()
    %cst_17 = arith.constant dense<0.000000e+00> : vector<4x8x8xf32>
    %44 = tpu.matmul %37, %40, %cst_17 {dimension_numbers = #tpu.dot_dimension_numbers<[2], [2], [1], [1], [0, 0, 0, 1, 1, 1], [0], [0]>} : vector<4x8x8xf32>, vector<4x8x8xf32>, vector<4x8x8xf32> -> vector<4x8x8xf32>
    "tpu.trace_stop"() : () -> ()
    %45 = vector.broadcast %7 : vector<1x8x8xf32> to vector<4x8x8xf32>
    %46 = arith.addf %44, %45 : vector<4x8x8xf32>
    %cst_18 = arith.constant dense<0xFF800000> : vector<4x8xf32>
    %47 = vector.multi_reduction <maximumf>, %46, %cst_18 [2] : vector<4x8x8xf32> to vector<4x8xf32>
    %48 = vector.shape_cast %47 : vector<4x8xf32> to vector<4x8x1xf32>
    %49 = vector.broadcast %48 : vector<4x8x1xf32> to vector<4x8x8xf32>
    %50 = arith.subf %46, %49 : vector<4x8x8xf32>
    %51 = math.exp %50 : vector<4x8x8xf32>
    %cst_19 = arith.constant dense<0.000000e+00> : vector<4x8xf32>
    %52 = vector.multi_reduction <add>, %51, %cst_19 [2] : vector<4x8x8xf32> to vector<4x8xf32>
    %53 = vector.shape_cast %52 : vector<4x8xf32> to vector<4x8x1xf32>
    %cst_20 = arith.constant 1.000000e+00 : f32
    %54 = vector.broadcast %cst_20 : f32 to vector<4x8x1xf32>
    %55 = arith.divf %54, %53 : vector<4x8x1xf32>
    %56 = vector.broadcast %55 : vector<4x8x1xf32> to vector<4x8x8xf32>
    %57 = arith.mulf %51, %56 : vector<4x8x8xf32>
    "tpu.trace_start"() <{level = 10 : i32, message = "hqk,hkd->hqd"}> : () -> ()
    %cst_21 = arith.constant dense<0.000000e+00> : vector<4x8x8xf32>
    %58 = tpu.matmul %57, %43, %cst_21 {dimension_numbers = #tpu.dot_dimension_numbers<[2], [1], [1], [2], [0, 0, 0, 1, 1, 2], [0], [0]>} : vector<4x8x8xf32>, vector<4x8x8xf32>, vector<4x8x8xf32> -> vector<4x8x8xf32>
    "tpu.trace_stop"() : () -> ()
    %59 = tpu.transpose %58, [1, 0, 2] : vector<4x8x8xf32> -> vector<8x4x8xf32>
    %60 = vector.shape_cast %59 : vector<8x4x8xf32> to vector<8x32xf32>
    %c0_22 = arith.constant 0 : index
    %c0_23 = arith.constant 0 : index
    %c0_24 = arith.constant 0 : index
    %61 = vector.load %arg5[%c0_22, %c0_23, %c0_24] : memref<2x32x32xf32, #tpu.memory_space<vmem>>, vector<1x32x32xf32>
    %62 = vector.shape_cast %61 : vector<1x32x32xf32> to vector<32x32xf32>
    %cst_25 = arith.constant dense<0.000000e+00> : vector<8x32xf32>
    %63 = tpu.matmul %60, %62, %cst_25 {dimension_numbers = #tpu.dot_dimension_numbers<[1], [0], [0], [1], [0, 0, 1, 1], [], []>} : vector<8x32xf32>, vector<32x32xf32>, vector<8x32xf32> -> vector<8x32xf32>
    %64 = arith.addf %0, %63 : vector<8x32xf32>
    %c0_26 = arith.constant 0 : index
    %c0_27 = arith.constant 0 : index
    %c0_28 = arith.constant 0 : index
    %65 = vector.load %arg6[%c0_26, %c0_27, %c0_28] : memref<2x1x32xf32, #tpu.memory_space<vmem>>, vector<1x1x32xf32>
    %66 = vector.shape_cast %65 : vector<1x1x32xf32> to vector<1x32xf32>
    %67 = vector.broadcast %66 : vector<1x32xf32> to vector<8x32xf32>
    %68 = arith.addf %64, %67 : vector<8x32xf32>
    %c0_29 = arith.constant 0 : index
    %c0_30 = arith.constant 0 : index
    %c0_31 = arith.constant 0 : index
    %69 = vector.load %arg7[%c0_29, %c0_30, %c0_31] : memref<2x1x32xf32, #tpu.memory_space<vmem>>, vector<1x1x32xf32>
    %70 = vector.shape_cast %69 : vector<1x1x32xf32> to vector<1x32xf32>
    %c0_32 = arith.constant 0 : index
    %c0_33 = arith.constant 0 : index
    %c0_34 = arith.constant 0 : index
    %71 = vector.load %arg8[%c0_32, %c0_33, %c0_34] : memref<2x1x32xf32, #tpu.memory_space<vmem>>, vector<1x1x32xf32>
    %72 = vector.shape_cast %71 : vector<1x1x32xf32> to vector<1x32xf32>
    %cst_35 = arith.constant dense<0.000000e+00> : vector<8xf32>
    %73 = vector.multi_reduction <add>, %68, %cst_35 [1] : vector<8x32xf32> to vector<8xf32>
    %74 = vector.shape_cast %73 : vector<8xf32> to vector<8x1xf32>
    %cst_36 = arith.constant 3.200000e+01 : f32
    %75 = vector.broadcast %cst_36 : f32 to vector<8x1xf32>
    %76 = arith.divf %74, %75 : vector<8x1xf32>
    %77 = vector.broadcast %76 : vector<8x1xf32> to vector<8x32xf32>
    %78 = arith.subf %68, %77 : vector<8x32xf32>
    %79 = arith.mulf %78, %78 : vector<8x32xf32>
    %cst_37 = arith.constant dense<0.000000e+00> : vector<8xf32>
    %80 = vector.multi_reduction <add>, %79, %cst_37 [1] : vector<8x32xf32> to vector<8xf32>
    %81 = vector.shape_cast %80 : vector<8xf32> to vector<8x1xf32>
    %cst_38 = arith.constant 3.200000e+01 : f32
    %82 = vector.broadcast %cst_38 : f32 to vector<8x1xf32>
    %83 = arith.divf %81, %82 : vector<8x1xf32>
    %cst_39 = arith.constant 9.99999974E-6 : f32
    %84 = vector.broadcast %cst_39 : f32 to vector<8x1xf32>
    %85 = arith.addf %83, %84 : vector<8x1xf32>
    %86 = math.rsqrt %85 : vector<8x1xf32>
    %87 = vector.broadcast %86 : vector<8x1xf32> to vector<8x32xf32>
    %88 = arith.mulf %78, %87 : vector<8x32xf32>
    %89 = vector.broadcast %70 : vector<1x32xf32> to vector<8x32xf32>
    %90 = arith.mulf %88, %89 : vector<8x32xf32>
    %91 = vector.broadcast %72 : vector<1x32xf32> to vector<8x32xf32>
    %92 = arith.addf %90, %91 : vector<8x32xf32>
    %c0_40 = arith.constant 0 : index
    %c0_41 = arith.constant 0 : index
    %c0_42 = arith.constant 0 : index
    %93 = vector.load %arg9[%c0_40, %c0_41, %c0_42] : memref<2x32x128xf32, #tpu.memory_space<vmem>>, vector<1x32x128xf32>
    %94 = vector.shape_cast %93 : vector<1x32x128xf32> to vector<32x128xf32>
    %cst_43 = arith.constant dense<0.000000e+00> : vector<8x128xf32>
    %95 = tpu.matmul %92, %94, %cst_43 {dimension_numbers = #tpu.dot_dimension_numbers<[1], [0], [0], [1], [0, 0, 1, 1], [], []>} : vector<8x32xf32>, vector<32x128xf32>, vector<8x128xf32> -> vector<8x128xf32>
    %c0_44 = arith.constant 0 : index
    %c0_45 = arith.constant 0 : index
    %c0_46 = arith.constant 0 : index
    %96 = vector.load %arg10[%c0_44, %c0_45, %c0_46] : memref<2x1x128xf32, #tpu.memory_space<vmem>>, vector<1x1x128xf32>
    %97 = vector.shape_cast %96 : vector<1x1x128xf32> to vector<1x128xf32>
    %98 = vector.broadcast %97 : vector<1x128xf32> to vector<8x128xf32>
    %99 = arith.addf %95, %98 : vector<8x128xf32>
    %cst_47 = arith.constant 0.000000e+00 : f32
    %100 = vector.broadcast %cst_47 : f32 to vector<8x128xf32>
    %101 = arith.maximumf %99, %100 : vector<8x128xf32>
    %c0_48 = arith.constant 0 : index
    %c0_49 = arith.constant 0 : index
    %c0_50 = arith.constant 0 : index
    %102 = vector.load %arg11[%c0_48, %c0_49, %c0_50] : memref<2x128x32xf32, #tpu.memory_space<vmem>>, vector<1x128x32xf32>
    %103 = vector.shape_cast %102 : vector<1x128x32xf32> to vector<128x32xf32>
    %cst_51 = arith.constant dense<0.000000e+00> : vector<8x32xf32>
    %104 = tpu.matmul %101, %103, %cst_51 {dimension_numbers = #tpu.dot_dimension_numbers<[1], [0], [0], [1], [0, 0, 1, 1], [], []>} : vector<8x128xf32>, vector<128x32xf32>, vector<8x32xf32> -> vector<8x32xf32>
    %105 = arith.addf %68, %104 : vector<8x32xf32>
    %c0_52 = arith.constant 0 : index
    %c0_53 = arith.constant 0 : index
    %c0_54 = arith.constant 0 : index
    %106 = vector.load %arg12[%c0_52, %c0_53, %c0_54] : memref<2x1x32xf32, #tpu.memory_space<vmem>>, vector<1x1x32xf32>
    %107 = vector.shape_cast %106 : vector<1x1x32xf32> to vector<1x32xf32>
    %108 = vector.broadcast %107 : vector<1x32xf32> to vector<8x32xf32>
    %109 = arith.addf %105, %108 : vector<8x32xf32>
    %c1 = arith.constant 1 : index
    %c0_55 = arith.constant 0 : index
    %c0_56 = arith.constant 0 : index
    %110 = vector.load %arg2[%c1, %c0_55, %c0_56] : memref<2x1x32xf32, #tpu.memory_space<vmem>>, vector<1x1x32xf32>
    %111 = vector.shape_cast %110 : vector<1x1x32xf32> to vector<1x32xf32>
    %c1_57 = arith.constant 1 : index
    %c0_58 = arith.constant 0 : index
    %c0_59 = arith.constant 0 : index
    %112 = vector.load %arg3[%c1_57, %c0_58, %c0_59] : memref<2x1x32xf32, #tpu.memory_space<vmem>>, vector<1x1x32xf32>
    %113 = vector.shape_cast %112 : vector<1x1x32xf32> to vector<1x32xf32>
    %cst_60 = arith.constant dense<0.000000e+00> : vector<8xf32>
    %114 = vector.multi_reduction <add>, %109, %cst_60 [1] : vector<8x32xf32> to vector<8xf32>
    %115 = vector.shape_cast %114 : vector<8xf32> to vector<8x1xf32>
    %cst_61 = arith.constant 3.200000e+01 : f32
    %116 = vector.broadcast %cst_61 : f32 to vector<8x1xf32>
    %117 = arith.divf %115, %116 : vector<8x1xf32>
    %118 = vector.broadcast %117 : vector<8x1xf32> to vector<8x32xf32>
    %119 = arith.subf %109, %118 : vector<8x32xf32>
    %120 = arith.mulf %119, %119 : vector<8x32xf32>
    %cst_62 = arith.constant dense<0.000000e+00> : vector<8xf32>
    %121 = vector.multi_reduction <add>, %120, %cst_62 [1] : vector<8x32xf32> to vector<8xf32>
    %122 = vector.shape_cast %121 : vector<8xf32> to vector<8x1xf32>
    %cst_63 = arith.constant 3.200000e+01 : f32
    %123 = vector.broadcast %cst_63 : f32 to vector<8x1xf32>
    %124 = arith.divf %122, %123 : vector<8x1xf32>
    %cst_64 = arith.constant 9.99999974E-6 : f32
    %125 = vector.broadcast %cst_64 : f32 to vector<8x1xf32>
    %126 = arith.addf %124, %125 : vector<8x1xf32>
    %127 = math.rsqrt %126 : vector<8x1xf32>
    %128 = vector.broadcast %127 : vector<8x1xf32> to vector<8x32xf32>
    %129 = arith.mulf %119, %128 : vector<8x32xf32>
    %130 = vector.broadcast %111 : vector<1x32xf32> to vector<8x32xf32>
    %131 = arith.mulf %129, %130 : vector<8x32xf32>
    %132 = vector.broadcast %113 : vector<1x32xf32> to vector<8x32xf32>
    %133 = arith.addf %131, %132 : vector<8x32xf32>
    %c1_65 = arith.constant 1 : index
    %c0_66 = arith.constant 0 : index
    %c0_67 = arith.constant 0 : index
    %134 = vector.load %arg4[%c1_65, %c0_66, %c0_67] : memref<2x32x96xf32, #tpu.memory_space<vmem>>, vector<1x32x96xf32>
    %135 = vector.shape_cast %134 : vector<1x32x96xf32> to vector<32x96xf32>
    %cst_68 = arith.constant dense<0.000000e+00> : vector<8x96xf32>
    %136 = tpu.matmul %133, %135, %cst_68 {dimension_numbers = #tpu.dot_dimension_numbers<[1], [0], [0], [1], [0, 0, 1, 1], [], []>} : vector<8x32xf32>, vector<32x96xf32>, vector<8x96xf32> -> vector<8x96xf32>
    %137 = vector.extract_strided_slice %136 {offsets = [0, 0], sizes = [8, 32], strides = [1, 1]} : vector<8x96xf32> to vector<8x32xf32>
    %138 = vector.shape_cast %137 : vector<8x32xf32> to vector<8x4x8xf32>
    %139 = tpu.transpose %138, [1, 0, 2] : vector<8x4x8xf32> -> vector<4x8x8xf32>
    %140 = vector.extract_strided_slice %136 {offsets = [0, 32], sizes = [8, 32], strides = [1, 1]} : vector<8x96xf32> to vector<8x32xf32>
    %141 = vector.shape_cast %140 : vector<8x32xf32> to vector<8x4x8xf32>
    %142 = tpu.transpose %141, [1, 0, 2] : vector<8x4x8xf32> -> vector<4x8x8xf32>
    %143 = vector.extract_strided_slice %136 {offsets = [0, 64], sizes = [8, 32], strides = [1, 1]} : vector<8x96xf32> to vector<8x32xf32>
    %144 = vector.shape_cast %143 : vector<8x32xf32> to vector<8x4x8xf32>
    %145 = tpu.transpose %144, [1, 0, 2] : vector<8x4x8xf32> -> vector<4x8x8xf32>
    "tpu.trace_start"() <{level = 10 : i32, message = "hqd,hkd->hqk"}> : () -> ()
    %cst_69 = arith.constant dense<0.000000e+00> : vector<4x8x8xf32>
    %146 = tpu.matmul %139, %142, %cst_69 {dimension_numbers = #tpu.dot_dimension_numbers<[2], [2], [1], [1], [0, 0, 0, 1, 1, 1], [0], [0]>} : vector<4x8x8xf32>, vector<4x8x8xf32>, vector<4x8x8xf32> -> vector<4x8x8xf32>
    "tpu.trace_stop"() : () -> ()
    %147 = vector.broadcast %7 : vector<1x8x8xf32> to vector<4x8x8xf32>
    %148 = arith.addf %146, %147 : vector<4x8x8xf32>
    %cst_70 = arith.constant dense<0xFF800000> : vector<4x8xf32>
    %149 = vector.multi_reduction <maximumf>, %148, %cst_70 [2] : vector<4x8x8xf32> to vector<4x8xf32>
    %150 = vector.shape_cast %149 : vector<4x8xf32> to vector<4x8x1xf32>
    %151 = vector.broadcast %150 : vector<4x8x1xf32> to vector<4x8x8xf32>
    %152 = arith.subf %148, %151 : vector<4x8x8xf32>
    %153 = math.exp %152 : vector<4x8x8xf32>
    %cst_71 = arith.constant dense<0.000000e+00> : vector<4x8xf32>
    %154 = vector.multi_reduction <add>, %153, %cst_71 [2] : vector<4x8x8xf32> to vector<4x8xf32>
    %155 = vector.shape_cast %154 : vector<4x8xf32> to vector<4x8x1xf32>
    %cst_72 = arith.constant 1.000000e+00 : f32
    %156 = vector.broadcast %cst_72 : f32 to vector<4x8x1xf32>
    %157 = arith.divf %156, %155 : vector<4x8x1xf32>
    %158 = vector.broadcast %157 : vector<4x8x1xf32> to vector<4x8x8xf32>
    %159 = arith.mulf %153, %158 : vector<4x8x8xf32>
    "tpu.trace_start"() <{level = 10 : i32, message = "hqk,hkd->hqd"}> : () -> ()
    %cst_73 = arith.constant dense<0.000000e+00> : vector<4x8x8xf32>
    %160 = tpu.matmul %159, %145, %cst_73 {dimension_numbers = #tpu.dot_dimension_numbers<[2], [1], [1], [2], [0, 0, 0, 1, 1, 2], [0], [0]>} : vector<4x8x8xf32>, vector<4x8x8xf32>, vector<4x8x8xf32> -> vector<4x8x8xf32>
    "tpu.trace_stop"() : () -> ()
    %161 = tpu.transpose %160, [1, 0, 2] : vector<4x8x8xf32> -> vector<8x4x8xf32>
    %162 = vector.shape_cast %161 : vector<8x4x8xf32> to vector<8x32xf32>
    %c1_74 = arith.constant 1 : index
    %c0_75 = arith.constant 0 : index
    %c0_76 = arith.constant 0 : index
    %163 = vector.load %arg5[%c1_74, %c0_75, %c0_76] : memref<2x32x32xf32, #tpu.memory_space<vmem>>, vector<1x32x32xf32>
    %164 = vector.shape_cast %163 : vector<1x32x32xf32> to vector<32x32xf32>
    %cst_77 = arith.constant dense<0.000000e+00> : vector<8x32xf32>
    %165 = tpu.matmul %162, %164, %cst_77 {dimension_numbers = #tpu.dot_dimension_numbers<[1], [0], [0], [1], [0, 0, 1, 1], [], []>} : vector<8x32xf32>, vector<32x32xf32>, vector<8x32xf32> -> vector<8x32xf32>
    %166 = arith.addf %109, %165 : vector<8x32xf32>
    %c1_78 = arith.constant 1 : index
    %c0_79 = arith.constant 0 : index
    %c0_80 = arith.constant 0 : index
    %167 = vector.load %arg6[%c1_78, %c0_79, %c0_80] : memref<2x1x32xf32, #tpu.memory_space<vmem>>, vector<1x1x32xf32>
    %168 = vector.shape_cast %167 : vector<1x1x32xf32> to vector<1x32xf32>
    %169 = vector.broadcast %168 : vector<1x32xf32> to vector<8x32xf32>
    %170 = arith.addf %166, %169 : vector<8x32xf32>
    %c1_81 = arith.constant 1 : index
    %c0_82 = arith.constant 0 : index
    %c0_83 = arith.constant 0 : index
    %171 = vector.load %arg7[%c1_81, %c0_82, %c0_83] : memref<2x1x32xf32, #tpu.memory_space<vmem>>, vector<1x1x32xf32>
    %172 = vector.shape_cast %171 : vector<1x1x32xf32> to vector<1x32xf32>
    %c1_84 = arith.constant 1 : index
    %c0_85 = arith.constant 0 : index
    %c0_86 = arith.constant 0 : index
    %173 = vector.load %arg8[%c1_84, %c0_85, %c0_86] : memref<2x1x32xf32, #tpu.memory_space<vmem>>, vector<1x1x32xf32>
    %174 = vector.shape_cast %173 : vector<1x1x32xf32> to vector<1x32xf32>
    %cst_87 = arith.constant dense<0.000000e+00> : vector<8xf32>
    %175 = vector.multi_reduction <add>, %170, %cst_87 [1] : vector<8x32xf32> to vector<8xf32>
    %176 = vector.shape_cast %175 : vector<8xf32> to vector<8x1xf32>
    %cst_88 = arith.constant 3.200000e+01 : f32
    %177 = vector.broadcast %cst_88 : f32 to vector<8x1xf32>
    %178 = arith.divf %176, %177 : vector<8x1xf32>
    %179 = vector.broadcast %178 : vector<8x1xf32> to vector<8x32xf32>
    %180 = arith.subf %170, %179 : vector<8x32xf32>
    %181 = arith.mulf %180, %180 : vector<8x32xf32>
    %cst_89 = arith.constant dense<0.000000e+00> : vector<8xf32>
    %182 = vector.multi_reduction <add>, %181, %cst_89 [1] : vector<8x32xf32> to vector<8xf32>
    %183 = vector.shape_cast %182 : vector<8xf32> to vector<8x1xf32>
    %cst_90 = arith.constant 3.200000e+01 : f32
    %184 = vector.broadcast %cst_90 : f32 to vector<8x1xf32>
    %185 = arith.divf %183, %184 : vector<8x1xf32>
    %cst_91 = arith.constant 9.99999974E-6 : f32
    %186 = vector.broadcast %cst_91 : f32 to vector<8x1xf32>
    %187 = arith.addf %185, %186 : vector<8x1xf32>
    %188 = math.rsqrt %187 : vector<8x1xf32>
    %189 = vector.broadcast %188 : vector<8x1xf32> to vector<8x32xf32>
    %190 = arith.mulf %180, %189 : vector<8x32xf32>
    %191 = vector.broadcast %172 : vector<1x32xf32> to vector<8x32xf32>
    %192 = arith.mulf %190, %191 : vector<8x32xf32>
    %193 = vector.broadcast %174 : vector<1x32xf32> to vector<8x32xf32>
    %194 = arith.addf %192, %193 : vector<8x32xf32>
    %c1_92 = arith.constant 1 : index
    %c0_93 = arith.constant 0 : index
    %c0_94 = arith.constant 0 : index
    %195 = vector.load %arg9[%c1_92, %c0_93, %c0_94] : memref<2x32x128xf32, #tpu.memory_space<vmem>>, vector<1x32x128xf32>
    %196 = vector.shape_cast %195 : vector<1x32x128xf32> to vector<32x128xf32>
    %cst_95 = arith.constant dense<0.000000e+00> : vector<8x128xf32>
    %197 = tpu.matmul %194, %196, %cst_95 {dimension_numbers = #tpu.dot_dimension_numbers<[1], [0], [0], [1], [0, 0, 1, 1], [], []>} : vector<8x32xf32>, vector<32x128xf32>, vector<8x128xf32> -> vector<8x128xf32>
    %c1_96 = arith.constant 1 : index
    %c0_97 = arith.constant 0 : index
    %c0_98 = arith.constant 0 : index
    %198 = vector.load %arg10[%c1_96, %c0_97, %c0_98] : memref<2x1x128xf32, #tpu.memory_space<vmem>>, vector<1x1x128xf32>
    %199 = vector.shape_cast %198 : vector<1x1x128xf32> to vector<1x128xf32>
    %200 = vector.broadcast %199 : vector<1x128xf32> to vector<8x128xf32>
    %201 = arith.addf %197, %200 : vector<8x128xf32>
    %cst_99 = arith.constant 0.000000e+00 : f32
    %202 = vector.broadcast %cst_99 : f32 to vector<8x128xf32>
    %203 = arith.maximumf %201, %202 : vector<8x128xf32>
    %c1_100 = arith.constant 1 : index
    %c0_101 = arith.constant 0 : index
    %c0_102 = arith.constant 0 : index
    %204 = vector.load %arg11[%c1_100, %c0_101, %c0_102] : memref<2x128x32xf32, #tpu.memory_space<vmem>>, vector<1x128x32xf32>
    %205 = vector.shape_cast %204 : vector<1x128x32xf32> to vector<128x32xf32>
    %cst_103 = arith.constant dense<0.000000e+00> : vector<8x32xf32>
    %206 = tpu.matmul %203, %205, %cst_103 {dimension_numbers = #tpu.dot_dimension_numbers<[1], [0], [0], [1], [0, 0, 1, 1], [], []>} : vector<8x128xf32>, vector<128x32xf32>, vector<8x32xf32> -> vector<8x32xf32>
    %207 = arith.addf %170, %206 : vector<8x32xf32>
    %c1_104 = arith.constant 1 : index
    %c0_105 = arith.constant 0 : index
    %c0_106 = arith.constant 0 : index
    %208 = vector.load %arg12[%c1_104, %c0_105, %c0_106] : memref<2x1x32xf32, #tpu.memory_space<vmem>>, vector<1x1x32xf32>
    %209 = vector.shape_cast %208 : vector<1x1x32xf32> to vector<1x32xf32>
    %210 = vector.broadcast %209 : vector<1x32xf32> to vector<8x32xf32>
    %211 = arith.addf %207, %210 : vector<8x32xf32>
    %c0_107 = arith.constant 0 : index
    %c0_108 = arith.constant 0 : index
    %212 = vector.load %arg13[%c0_107, %c0_108] : memref<1x32xf32, #tpu.memory_space<vmem>>, vector<1x32xf32>
    %c0_109 = arith.constant 0 : index
    %c0_110 = arith.constant 0 : index
    %213 = vector.load %arg14[%c0_109, %c0_110] : memref<1x32xf32, #tpu.memory_space<vmem>>, vector<1x32xf32>
    %cst_111 = arith.constant dense<0.000000e+00> : vector<8xf32>
    %214 = vector.multi_reduction <add>, %211, %cst_111 [1] : vector<8x32xf32> to vector<8xf32>
    %215 = vector.shape_cast %214 : vector<8xf32> to vector<8x1xf32>
    %cst_112 = arith.constant 3.200000e+01 : f32
    %216 = vector.broadcast %cst_112 : f32 to vector<8x1xf32>
    %217 = arith.divf %215, %216 : vector<8x1xf32>
    %218 = vector.broadcast %217 : vector<8x1xf32> to vector<8x32xf32>
    %219 = arith.subf %211, %218 : vector<8x32xf32>
    %220 = arith.mulf %219, %219 : vector<8x32xf32>
    %cst_113 = arith.constant dense<0.000000e+00> : vector<8xf32>
    %221 = vector.multi_reduction <add>, %220, %cst_113 [1] : vector<8x32xf32> to vector<8xf32>
    %222 = vector.shape_cast %221 : vector<8xf32> to vector<8x1xf32>
    %cst_114 = arith.constant 3.200000e+01 : f32
    %223 = vector.broadcast %cst_114 : f32 to vector<8x1xf32>
    %224 = arith.divf %222, %223 : vector<8x1xf32>
    %cst_115 = arith.constant 9.99999974E-6 : f32
    %225 = vector.broadcast %cst_115 : f32 to vector<8x1xf32>
    %226 = arith.addf %224, %225 : vector<8x1xf32>
    %227 = math.rsqrt %226 : vector<8x1xf32>
    %228 = vector.broadcast %227 : vector<8x1xf32> to vector<8x32xf32>
    %229 = arith.mulf %219, %228 : vector<8x32xf32>
    %230 = vector.broadcast %212 : vector<1x32xf32> to vector<8x32xf32>
    %231 = arith.mulf %229, %230 : vector<8x32xf32>
    %232 = vector.broadcast %213 : vector<1x32xf32> to vector<8x32xf32>
    %233 = arith.addf %231, %232 : vector<8x32xf32>
    %c0_116 = arith.constant 0 : index
    %c0_117 = arith.constant 0 : index
    %234 = vector.load %arg15[%c0_116, %c0_117] : memref<32x128xf32, #tpu.memory_space<vmem>>, vector<32x128xf32>
    %cst_118 = arith.constant dense<0.000000e+00> : vector<8x128xf32>
    %235 = tpu.matmul %233, %234, %cst_118 {dimension_numbers = #tpu.dot_dimension_numbers<[1], [0], [0], [1], [0, 0, 1, 1], [], []>} : vector<8x32xf32>, vector<32x128xf32>, vector<8x128xf32> -> vector<8x128xf32>
    %c0_119 = arith.constant 0 : index
    %c0_120 = arith.constant 0 : index
    %236 = vector.load %arg16[%c0_119, %c0_120] : memref<1x128xf32, #tpu.memory_space<vmem>>, vector<1x128xf32>
    %237 = vector.broadcast %236 : vector<1x128xf32> to vector<8x128xf32>
    %238 = arith.addf %235, %237 : vector<8x128xf32>
    %c0_121 = arith.constant 0 : index
    %c0_122 = arith.constant 0 : index
    %239 = vector.load %arg17[%c0_121, %c0_122] : memref<8x128xf32, #tpu.memory_space<vmem>>, vector<8x128xf32>
    tpu.vector_store %arg17[%c0_121, %c0_122], %238 {strides = array<i32>} : memref<8x128xf32, #tpu.memory_space<vmem>>, vector<8x128xf32>,
    return
  }
  func.func @transform_0(%arg0: i32) -> (i32, i32) {
    %c0_i32 = arith.constant 0 : i32
    %c0_i32_0 = arith.constant 0 : i32
    return %arg0, %c0_i32 : i32, i32
  }
  func.func @transform_1(%arg0: i32) -> (i32, i32, i32) {
    %c0_i32 = arith.constant 0 : i32
    %c0_i32_0 = arith.constant 0 : i32
    %c0_i32_1 = arith.constant 0 : i32
    %c0_i32_2 = arith.constant 0 : i32
    return %c0_i32, %c0_i32_0, %c0_i32_1 : i32, i32, i32
  }
  func.func @transform_2(%arg0: i32) -> (i32, i32, i32) {
    %c0_i32 = arith.constant 0 : i32
    %c0_i32_0 = arith.constant 0 : i32
    %c0_i32_1 = arith.constant 0 : i32
    %c0_i32_2 = arith.constant 0 : i32
    return %c0_i32, %c0_i32_0, %c0_i32_1 : i32, i32, i32
  }
  func.func @transform_3(%arg0: i32) -> (i32, i32, i32) {
    %c0_i32 = arith.constant 0 : i32
    %c0_i32_0 = arith.constant 0 : i32
    %c0_i32_1 = arith.constant 0 : i32
    %c0_i32_2 = arith.constant 0 : i32
    return %c0_i32, %c0_i32_0, %c0_i32_1 : i32, i32, i32
  }
  func.func @transform_4(%arg0: i32) -> (i32, i32, i32) {
    %c0_i32 = arith.constant 0 : i32
    %c0_i32_0 = arith.constant 0 : i32
    %c0_i32_1 = arith.constant 0 : i32
    %c0_i32_2 = arith.constant 0 : i32
    return %c0_i32, %c0_i32_0, %c0_i32_1 : i32, i32, i32
  }
  func.func @transform_5(%arg0: i32) -> (i32, i32, i32) {
    %c0_i32 = arith.constant 0 : i32
    %c0_i32_0 = arith.constant 0 : i32
    %c0_i32_1 = arith.constant 0 : i32
    %c0_i32_2 = arith.constant 0 : i32
    return %c0_i32, %c0_i32_0, %c0_i32_1 : i32, i32, i32
  }
  func.func @transform_6(%arg0: i32) -> (i32, i32, i32) {
    %c0_i32 = arith.constant 0 : i32
    %c0_i32_0 = arith.constant 0 : i32
    %c0_i32_1 = arith.constant 0 : i32
    %c0_i32_2 = arith.constant 0 : i32
    return %c0_i32, %c0_i32_0, %c0_i32_1 : i32, i32, i32
  }
  func.func @transform_7(%arg0: i32) -> (i32, i32, i32) {
    %c0_i32 = arith.constant 0 : i32
    %c0_i32_0 = arith.constant 0 : i32
    %c0_i32_1 = arith.constant 0 : i32
    %c0_i32_2 = arith.constant 0 : i32
    return %c0_i32, %c0_i32_0, %c0_i32_1 : i32, i32, i32
  }
  func.func @transform_8(%arg0: i32) -> (i32, i32, i32) {
    %c0_i32 = arith.constant 0 : i32
    %c0_i32_0 = arith.constant 0 : i32
    %c0_i32_1 = arith.constant 0 : i32
    %c0_i32_2 = arith.constant 0 : i32
    return %c0_i32, %c0_i32_0, %c0_i32_1 : i32, i32, i32
  }
  func.func @transform_9(%arg0: i32) -> (i32, i32, i32) {
    %c0_i32 = arith.constant 0 : i32
    %c0_i32_0 = arith.constant 0 : i32
    %c0_i32_1 = arith.constant 0 : i32
    %c0_i32_2 = arith.constant 0 : i32
    return %c0_i32, %c0_i32_0, %c0_i32_1 : i32, i32, i32
  }
  func.func @transform_10(%arg0: i32) -> (i32, i32, i32) {
    %c0_i32 = arith.constant 0 : i32
    %c0_i32_0 = arith.constant 0 : i32
    %c0_i32_1 = arith.constant 0 : i32
    %c0_i32_2 = arith.constant 0 : i32
    return %c0_i32, %c0_i32_0, %c0_i32_1 : i32, i32, i32
  }
  func.func @transform_11(%arg0: i32) -> (i32, i32, i32) {
    %c0_i32 = arith.constant 0 : i32
    %c0_i32_0 = arith.constant 0 : i32
    %c0_i32_1 = arith.constant 0 : i32
    %c0_i32_2 = arith.constant 0 : i32
    return %c0_i32, %c0_i32_0, %c0_i32_1 : i32, i32, i32
  }
  func.func @transform_12(%arg0: i32) -> (i32, i32) {
    %c0_i32 = arith.constant 0 : i32
    %c0_i32_0 = arith.constant 0 : i32
    %c0_i32_1 = arith.constant 0 : i32
    return %c0_i32, %c0_i32_0 : i32, i32
  }
  func.func @transform_13(%arg0: i32) -> (i32, i32) {
    %c0_i32 = arith.constant 0 : i32
    %c0_i32_0 = arith.constant 0 : i32
    %c0_i32_1 = arith.constant 0 : i32
    return %c0_i32, %c0_i32_0 : i32, i32
  }
  func.func @transform_14(%arg0: i32) -> (i32, i32) {
    %c0_i32 = arith.constant 0 : i32
    %c0_i32_0 = arith.constant 0 : i32
    %c0_i32_1 = arith.constant 0 : i32
    return %c0_i32, %c0_i32_0 : i32, i32
  }
  func.func @transform_15(%arg0: i32) -> (i32, i32) {
    %c0_i32 = arith.constant 0 : i32
    %c0_i32_0 = arith.constant 0 : i32
    %c0_i32_1 = arith.constant 0 : i32
    return %c0_i32, %c0_i32_0 : i32, i32
  }
  func.func @transform_16(%arg0: i32) -> (i32, i32) {
    %c0_i32 = arith.constant 0 : i32
    %c0_i32_0 = arith.constant 0 : i32
    return %arg0, %c0_i32 : i32, i32
  }
}

</mosaic_0001>

<llo_original>
// kernel: tpu_custom_call.1
$region0: #{tpu_custom_call.1}
  #allocation0 [shape = 'u32[]', space=smem, size = 0x4, offset = 0x4, fixed_abs, tag = 'smem constant byte address 0x4 - core index']
  #allocation1 [shape = 'u32[144,128]{1,0:T(1,128)}', space=vmem, size = 0x12000, scoped, tag = 'internal scratch']
  %s0 = inlined_call_operand.vmem [shape: f32[16,32], index: 0, kind: input, shape index: {}]
  %s1 = inlined_call_operand.vmem [shape: f32[2,1,32], index: 1, kind: input, shape index: {}]
  %s2 = inlined_call_operand.vmem [shape: f32[2,1,32], index: 2, kind: input, shape index: {}]
  %s3 = inlined_call_operand.vmem [shape: f32[2,32,96], index: 3, kind: input, shape index: {}]
  %s4 = inlined_call_operand.vmem [shape: f32[2,32,32], index: 4, kind: input, shape index: {}]
  %s5 = inlined_call_operand.vmem [shape: f32[2,1,32], index: 5, kind: input, shape index: {}]
  %s6 = inlined_call_operand.vmem [shape: f32[2,1,32], index: 6, kind: input, shape index: {}]
  %s7 = inlined_call_operand.vmem [shape: f32[2,1,32], index: 7, kind: input, shape index: {}]
  %s8 = inlined_call_operand.vmem [shape: f32[2,32,128], index: 8, kind: input, shape index: {}]
  %s9 = inlined_call_operand.vmem [shape: f32[2,1,128], index: 9, kind: input, shape index: {}]
  %s10 = inlined_call_operand.vmem [shape: f32[2,128,32], index: 10, kind: input, shape index: {}]
  %s11 = inlined_call_operand.vmem [shape: f32[2,1,32], index: 11, kind: input, shape index: {}]
  %s12 = inlined_call_operand.vmem [shape: f32[1,32], index: 12, kind: input, shape index: {}]
  %s13 = inlined_call_operand.vmem [shape: f32[1,32], index: 13, kind: input, shape index: {}]
  %s14 = inlined_call_operand.vmem [shape: f32[32,128], index: 14, kind: input, shape index: {}]
  %s15 = inlined_call_operand.vmem [shape: f32[1,128], index: 15, kind: input, shape index: {}]
  %s16 = inlined_call_operand.hbm [shape: f32[16,128], index: 16, kind: output, shape index: {}]
  %s17 = sld [smem:[#allocation0]]
  $region97: #{tpu_custom_call.1} parent=0
    _
  %s19 = ssub.s32 1, %s17
  %s20 = scalar_select 0, %s19, %s17
  $region1: #{tpu_custom_call.1} parent=0
    #allocation2 [shape = 'u8[8192]{0}', space=vmem, size = 0x2000, scoped, tag = 'output window, operand 0']
    #allocation3 [shape = 's32[2]{0}', space=sflag, size = 0x8, scoped, tag = 'scoped memory for tpu_custom_call.1']
    %21 = vsyncpa [#allocation3], 0
    %s22 = scalar_lea.sflag [#allocation3], 1
    %23 = vsyncpa %s22, 0
    loop: start=0, step=1, limit=4
    $region2: #{tpu_custom_call.1} parent=1 // loop_pre_header
      _
    $region3: #{tpu_custom_call.1} parent=1 // loop_header
      %s25 = sphi 0, %s29
      %p26 = scmp.ge.s32.totalorder %s25, 4
      %s35 = sphi 0, %s37
      %s38 = sphi 0, %s35
      %s39 = sphi 0, %s38
      %s55 = sphi 0, %s39
      %s59 = sphi 0, %s59
      %s61 = sphi 0, %s59
      %s62 = sphi 0, %s61
      %s76 = sphi 0, %s62
      %s80 = sphi 0, %s80
      %s82 = sphi 0, %s80
      %s83 = sphi 0, %s82
      %s97 = sphi 0, %s83
      %s101 = sphi 0, %s101
      %s103 = sphi 0, %s101
      %s104 = sphi 0, %s103
      %s118 = sphi 0, %s104
      %s122 = sphi 0, %s122
      %s124 = sphi 0, %s122
      %s125 = sphi 0, %s124
      %s139 = sphi 0, %s125
      %s143 = sphi 0, %s143
      %s145 = sphi 0, %s143
      %s146 = sphi 0, %s145
      %s160 = sphi 0, %s146
      %s164 = sphi 0, %s164
      %s166 = sphi 0, %s164
      %s167 = sphi 0, %s166
      %s181 = sphi 0, %s167
      %s185 = sphi 0, %s185
      %s187 = sphi 0, %s185
      %s188 = sphi 0, %s187
      %s202 = sphi 0, %s188
      %s206 = sphi 0, %s206
      %s208 = sphi 0, %s206
      %s209 = sphi 0, %s208
      %s223 = sphi 0, %s209
      %s227 = sphi 0, %s227
      %s229 = sphi 0, %s227
      %s230 = sphi 0, %s229
      %s244 = sphi 0, %s230
      %s248 = sphi 0, %s248
      %s250 = sphi 0, %s248
      %s251 = sphi 0, %s250
      %s265 = sphi 0, %s251
      %s269 = sphi 0, %s269
      %s271 = sphi 0, %s269
      %s272 = sphi 0, %s271
      %s286 = sphi 0, %s272
      %s290 = sphi 0, %s290
      %s292 = sphi 0, %s290
      %s293 = sphi 0, %s292
      %s307 = sphi 0, %s293
      %s311 = sphi 0, %s311
      %s313 = sphi 0, %s311
      %s314 = sphi 0, %s313
      %s328 = sphi 0, %s314
      %s332 = sphi 0, %s332
      %s334 = sphi 0, %s332
      %s335 = sphi 0, %s334
      %s349 = sphi 0, %s335
      %s353 = sphi 0, %s353
      %s355 = sphi 0, %s353
      %s356 = sphi 0, %s355
      %s370 = sphi 0, %s356
      %s376 = sphi 0, %s378
      %s379 = sphi 0, %s376
      %s380 = sphi 0, %s379
      %s396 = sphi 0, %s380
    $region4: #{tpu_custom_call.1} parent=1 // loop_header_branch
      %28 = sbr.rel (%p26) target = $region8
    $region5: #{tpu_custom_call.1} parent=1 // loop_body
      %s30 = ssub.s32 %s25, 1
      %s31 = ssub.s32 %s25, 2
      %s32 = sadd.s32 %s25, 1
      %s33 = ssub.s32 %s25, %s32
      %p34 = scmp.eq.s32.totalorder %s33, 0
      %s36 = sadd.s32 %s35, 1
      %s37 = scalar_select %p34, %s35, %s36
      %p40 = pneg %p34
      %p41 = scmp.eq.s32.totalorder %s25, 1
      %p42 = por %p40, %p41
      %p43 = scmp.ne.s32.totalorder %s35, %s38
      %p44 = scmp.eq.s32.totalorder %s25, 0
      %p45 = por %p43, %p44
      %p46 = scmp.ne.s32.totalorder %s35, %s38
      %p47 = scmp.eq.s32.totalorder %s30, 1
      %p48 = por %p46, %p47
      %p49 = scmp.ne.s32.totalorder %s38, %s39
      %p50 = scmp.eq.s32.totalorder %s30, 0
      %p51 = por %p49, %p50
      %p52 = scmp.ne.s32.totalorder %s38, %s39
      %p53 = scmp.eq.s32.totalorder %s31, 1
      %p54 = por %p52, %p53
      %p56 = scmp.ne.s32.totalorder %s39, %s55
      %p57 = scmp.eq.s32.totalorder %s31, 0
      %p58 = por %p56, %p57
      %s60 = sadd.s32 %s59, 1
      %p63 = scmp.eq.s32.totalorder %s25, 1
      %p64 = scmp.ne.s32.totalorder %s59, %s61
      %p65 = scmp.eq.s32.totalorder %s25, 0
      %p66 = por %p64, %p65
      %p67 = scmp.ne.s32.totalorder %s59, %s61
      %p68 = scmp.eq.s32.totalorder %s30, 1
      %p69 = por %p67, %p68
      %p70 = scmp.ne.s32.totalorder %s61, %s62
      %p71 = scmp.eq.s32.totalorder %s30, 0
      %p72 = por %p70, %p71
      %p73 = scmp.ne.s32.totalorder %s61, %s62
      %p74 = scmp.eq.s32.totalorder %s31, 1
      %p75 = por %p73, %p74
      %p77 = scmp.ne.s32.totalorder %s62, %s76
      %p78 = scmp.eq.s32.totalorder %s31, 0
      %p79 = por %p77, %p78
      %s81 = sadd.s32 %s80, 1
      %p84 = scmp.eq.s32.totalorder %s25, 1
      %p85 = scmp.ne.s32.totalorder %s80, %s82
      %p86 = scmp.eq.s32.totalorder %s25, 0
      %p87 = por %p85, %p86
      %p88 = scmp.ne.s32.totalorder %s80, %s82
      %p89 = scmp.eq.s32.totalorder %s30, 1
      %p90 = por %p88, %p89
      %p91 = scmp.ne.s32.totalorder %s82, %s83
      %p92 = scmp.eq.s32.totalorder %s30, 0
      %p93 = por %p91, %p92
      %p94 = scmp.ne.s32.totalorder %s82, %s83
      %p95 = scmp.eq.s32.totalorder %s31, 1
      %p96 = por %p94, %p95
      %p98 = scmp.ne.s32.totalorder %s83, %s97
      %p99 = scmp.eq.s32.totalorder %s31, 0
      %p100 = por %p98, %p99
      %s102 = sadd.s32 %s101, 1
      %p105 = scmp.eq.s32.totalorder %s25, 1
      %p106 = scmp.ne.s32.totalorder %s101, %s103
      %p107 = scmp.eq.s32.totalorder %s25, 0
      %p108 = por %p106, %p107
      %p109 = scmp.ne.s32.totalorder %s101, %s103
      %p110 = scmp.eq.s32.totalorder %s30, 1
      %p111 = por %p109, %p110
      %p112 = scmp.ne.s32.totalorder %s103, %s104
      %p113 = scmp.eq.s32.totalorder %s30, 0
      %p114 = por %p112, %p113
      %p115 = scmp.ne.s32.totalorder %s103, %s104
      %p116 = scmp.eq.s32.totalorder %s31, 1
      %p117 = por %p115, %p116
      %p119 = scmp.ne.s32.totalorder %s104, %s118
      %p120 = scmp.eq.s32.totalorder %s31, 0
      %p121 = por %p119, %p120
      %s123 = sadd.s32 %s122, 1
      %p126 = scmp.eq.s32.totalorder %s25, 1
      %p127 = scmp.ne.s32.totalorder %s122, %s124
      %p128 = scmp.eq.s32.totalorder %s25, 0
      %p129 = por %p127, %p128
      %p130 = scmp.ne.s32.totalorder %s122, %s124
      %p131 = scmp.eq.s32.totalorder %s30, 1
      %p132 = por %p130, %p131
      %p133 = scmp.ne.s32.totalorder %s124, %s125
      %p134 = scmp.eq.s32.totalorder %s30, 0
      %p135 = por %p133, %p134
      %p136 = scmp.ne.s32.totalorder %s124, %s125
      %p137 = scmp.eq.s32.totalorder %s31, 1
      %p138 = por %p136, %p137
      %p140 = scmp.ne.s32.totalorder %s125, %s139
      %p141 = scmp.eq.s32.totalorder %s31, 0
      %p142 = por %p140, %p141
      %s144 = sadd.s32 %s143, 1
      %p147 = scmp.eq.s32.totalorder %s25, 1
      %p148 = scmp.ne.s32.totalorder %s143, %s145
      %p149 = scmp.eq.s32.totalorder %s25, 0
      %p150 = por %p148, %p149
      %p151 = scmp.ne.s32.totalorder %s143, %s145
      %p152 = scmp.eq.s32.totalorder %s30, 1
      %p153 = por %p151, %p152
      %p154 = scmp.ne.s32.totalorder %s145, %s146
      %p155 = scmp.eq.s32.totalorder %s30, 0
      %p156 = por %p154, %p155
      %p157 = scmp.ne.s32.totalorder %s145, %s146
      %p158 = scmp.eq.s32.totalorder %s31, 1
      %p159 = por %p157, %p158
      %p161 = scmp.ne.s32.totalorder %s146, %s160
      %p162 = scmp.eq.s32.totalorder %s31, 0
      %p163 = por %p161, %p162
      %s165 = sadd.s32 %s164, 1
      %p168 = scmp.eq.s32.totalorder %s25, 1
      %p169 = scmp.ne.s32.totalorder %s164, %s166
      %p170 = scmp.eq.s32.totalorder %s25, 0
      %p171 = por %p169, %p170
      %p172 = scmp.ne.s32.totalorder %s164, %s166
      %p173 = scmp.eq.s32.totalorder %s30, 1
      %p174 = por %p172, %p173
      %p175 = scmp.ne.s32.totalorder %s166, %s167
      %p176 = scmp.eq.s32.totalorder %s30, 0
      %p177 = por %p175, %p176
      %p178 = scmp.ne.s32.totalorder %s166, %s167
      %p179 = scmp.eq.s32.totalorder %s31, 1
      %p180 = por %p178, %p179
      %p182 = scmp.ne.s32.totalorder %s167, %s181
      %p183 = scmp.eq.s32.totalorder %s31, 0
      %p184 = por %p182, %p183
      %s186 = sadd.s32 %s185, 1
      %p189 = scmp.eq.s32.totalorder %s25, 1
      %p190 = scmp.ne.s32.totalorder %s185, %s187
      %p191 = scmp.eq.s32.totalorder %s25, 0
      %p192 = por %p190, %p191
      %p193 = scmp.ne.s32.totalorder %s185, %s187
      %p194 = scmp.eq.s32.totalorder %s30, 1
      %p195 = por %p193, %p194
      %p196 = scmp.ne.s32.totalorder %s187, %s188
      %p197 = scmp.eq.s32.totalorder %s30, 0
      %p198 = por %p196, %p197
      %p199 = scmp.ne.s32.totalorder %s187, %s188
      %p200 = scmp.eq.s32.totalorder %s31, 1
      %p201 = por %p199, %p200
      %p203 = scmp.ne.s32.totalorder %s188, %s202
      %p204 = scmp.eq.s32.totalorder %s31, 0
      %p205 = por %p203, %p204
      %s207 = sadd.s32 %s206, 1
      %p210 = scmp.eq.s32.totalorder %s25, 1
      %p211 = scmp.ne.s32.totalorder %s206, %s208
      %p212 = scmp.eq.s32.totalorder %s25, 0
      %p213 = por %p211, %p212
      %p214 = scmp.ne.s32.totalorder %s206, %s208
      %p215 = scmp.eq.s32.totalorder %s30, 1
      %p216 = por %p214, %p215
      %p217 = scmp.ne.s32.totalorder %s208, %s209
      %p218 = scmp.eq.s32.totalorder %s30, 0
      %p219 = por %p217, %p218
      %p220 = scmp.ne.s32.totalorder %s208, %s209
      %p221 = scmp.eq.s32.totalorder %s31, 1
      %p222 = por %p220, %p221
      %p224 = scmp.ne.s32.totalorder %s209, %s223
      %p225 = scmp.eq.s32.totalorder %s31, 0
      %p226 = por %p224, %p225
      %s228 = sadd.s32 %s227, 1
      %p231 = scmp.eq.s32.totalorder %s25, 1
      %p232 = scmp.ne.s32.totalorder %s227, %s229
      %p233 = scmp.eq.s32.totalorder %s25, 0
      %p234 = por %p232, %p233
      %p235 = scmp.ne.s32.totalorder %s227, %s229
      %p236 = scmp.eq.s32.totalorder %s30, 1
      %p237 = por %p235, %p236
      %p238 = scmp.ne.s32.totalorder %s229, %s230
      %p239 = scmp.eq.s32.totalorder %s30, 0
      %p240 = por %p238, %p239
      %p241 = scmp.ne.s32.totalorder %s229, %s230
      %p242 = scmp.eq.s32.totalorder %s31, 1
      %p243 = por %p241, %p242
      %p245 = scmp.ne.s32.totalorder %s230, %s244
      %p246 = scmp.eq.s32.totalorder %s31, 0
      %p247 = por %p245, %p246
      %s249 = sadd.s32 %s248, 1
      %p252 = scmp.eq.s32.totalorder %s25, 1
      %p253 = scmp.ne.s32.totalorder %s248, %s250
      %p254 = scmp.eq.s32.totalorder %s25, 0
      %p255 = por %p253, %p254
      %p256 = scmp.ne.s32.totalorder %s248, %s250
      %p257 = scmp.eq.s32.totalorder %s30, 1
      %p258 = por %p256, %p257
      %p259 = scmp.ne.s32.totalorder %s250, %s251
      %p260 = scmp.eq.s32.totalorder %s30, 0
      %p261 = por %p259, %p260
      %p262 = scmp.ne.s32.totalorder %s250, %s251
      %p263 = scmp.eq.s32.totalorder %s31, 1
      %p264 = por %p262, %p263
      %p266 = scmp.ne.s32.totalorder %s251, %s265
      %p267 = scmp.eq.s32.totalorder %s31, 0
      %p268 = por %p266, %p267
      %s270 = sadd.s32 %s269, 1
      %p273 = scmp.eq.s32.totalorder %s25, 1
      %p274 = scmp.ne.s32.totalorder %s269, %s271
      %p275 = scmp.eq.s32.totalorder %s25, 0
      %p276 = por %p274, %p275
      %p277 = scmp.ne.s32.totalorder %s269, %s271
      %p278 = scmp.eq.s32.totalorder %s30, 1
      %p279 = por %p277, %p278
      %p280 = scmp.ne.s32.totalorder %s271, %s272
      %p281 = scmp.eq.s32.totalorder %s30, 0
      %p282 = por %p280, %p281
      %p283 = scmp.ne.s32.totalorder %s271, %s272
      %p284 = scmp.eq.s32.totalorder %s31, 1
      %p285 = por %p283, %p284
      %p287 = scmp.ne.s32.totalorder %s272, %s286
      %p288 = scmp.eq.s32.totalorder %s31, 0
      %p289 = por %p287, %p288
      %s291 = sadd.s32 %s290, 1
      %p294 = scmp.eq.s32.totalorder %s25, 1
      %p295 = scmp.ne.s32.totalorder %s290, %s292
      %p296 = scmp.eq.s32.totalorder %s25, 0
      %p297 = por %p295, %p296
      %p298 = scmp.ne.s32.totalorder %s290, %s292
      %p299 = scmp.eq.s32.totalorder %s30, 1
      %p300 = por %p298, %p299
      %p301 = scmp.ne.s32.totalorder %s292, %s293
      %p302 = scmp.eq.s32.totalorder %s30, 0
      %p303 = por %p301, %p302
      %p304 = scmp.ne.s32.totalorder %s292, %s293
      %p305 = scmp.eq.s32.totalorder %s31, 1
      %p306 = por %p304, %p305
      %p308 = scmp.ne.s32.totalorder %s293, %s307
      %p309 = scmp.eq.s32.totalorder %s31, 0
      %p310 = por %p308, %p309
      %s312 = sadd.s32 %s311, 1
      %p315 = scmp.eq.s32.totalorder %s25, 1
      %p316 = scmp.ne.s32.totalorder %s311, %s313
      %p317 = scmp.eq.s32.totalorder %s25, 0
      %p318 = por %p316, %p317
      %p319 = scmp.ne.s32.totalorder %s311, %s313
      %p320 = scmp.eq.s32.totalorder %s30, 1
      %p321 = por %p319, %p320
      %p322 = scmp.ne.s32.totalorder %s313, %s314
      %p323 = scmp.eq.s32.totalorder %s30, 0
      %p324 = por %p322, %p323
      %p325 = scmp.ne.s32.totalorder %s313, %s314
      %p326 = scmp.eq.s32.totalorder %s31, 1
      %p327 = por %p325, %p326
      %p329 = scmp.ne.s32.totalorder %s314, %s328
      %p330 = scmp.eq.s32.totalorder %s31, 0
      %p331 = por %p329, %p330
      %s333 = sadd.s32 %s332, 1
      %p336 = scmp.eq.s32.totalorder %s25, 1
      %p337 = scmp.ne.s32.totalorder %s332, %s334
      %p338 = scmp.eq.s32.totalorder %s25, 0
      %p339 = por %p337, %p338
      %p340 = scmp.ne.s32.totalorder %s332, %s334
      %p341 = scmp.eq.s32.totalorder %s30, 1
      %p342 = por %p340, %p341
      %p343 = scmp.ne.s32.totalorder %s334, %s335
      %p344 = scmp.eq.s32.totalorder %s30, 0
      %p345 = por %p343, %p344
      %p346 = scmp.ne.s32.totalorder %s334, %s335
      %p347 = scmp.eq.s32.totalorder %s31, 1
      %p348 = por %p346, %p347
      %p350 = scmp.ne.s32.totalorder %s335, %s349
      %p351 = scmp.eq.s32.totalorder %s31, 0
      %p352 = por %p350, %p351
      %s354 = sadd.s32 %s353, 1
      %p357 = scmp.eq.s32.totalorder %s25, 1
      %p358 = scmp.ne.s32.totalorder %s353, %s355
      %p359 = scmp.eq.s32.totalorder %s25, 0
      %p360 = por %p358, %p359
      %p361 = scmp.ne.s32.totalorder %s353, %s355
      %p362 = scmp.eq.s32.totalorder %s30, 1
      %p363 = por %p361, %p362
      %p364 = scmp.ne.s32.totalorder %s355, %s356
      %p365 = scmp.eq.s32.totalorder %s30, 0
      %p366 = por %p364, %p365
      %p367 = scmp.ne.s32.totalorder %s355, %s356
      %p368 = scmp.eq.s32.totalorder %s31, 1
      %p369 = por %p367, %p368
      %p371 = scmp.ne.s32.totalorder %s356, %s370
      %p372 = scmp.eq.s32.totalorder %s31, 0
      %p373 = por %p371, %p372
      %s374 = ssub.s32 %s25, %s32
      %p375 = scmp.eq.s32.totalorder %s374, 0
      %s377 = sadd.s32 %s376, 1
      %s378 = scalar_select %p375, %s376, %s377
      %p381 = pneg %p375
      %p382 = scmp.eq.s32.totalorder %s25, 1
      %p383 = por %p381, %p382
      %p384 = scmp.ne.s32.totalorder %s376, %s379
      %p385 = scmp.eq.s32.totalorder %s25, 0
      %p386 = por %p384, %p385
      %p387 = scmp.ne.s32.totalorder %s376, %s379
      %p388 = scmp.eq.s32.totalorder %s30, 1
      %p389 = por %p387, %p388
      %p390 = scmp.ne.s32.totalorder %s379, %s380
      %p391 = scmp.eq.s32.totalorder %s30, 0
      %p392 = por %p390, %p391
      %p393 = scmp.ne.s32.totalorder %s379, %s380
      %p394 = scmp.eq.s32.totalorder %s31, 1
      %p395 = por %p393, %p394
      %p397 = scmp.ne.s32.totalorder %s380, %s396
      %p398 = scmp.eq.s32.totalorder %s31, 0
      %p399 = por %p397, %p398
      %p400 = scmp.le.s32.totalorder 1, %s25
      %p401 = scmp.lt.s32.totalorder %s25, 3
      %p402 = pnand %p400, %p401
      %p403 = pneg %p402
      // Predicated region
      $region9: #{tpu_custom_call.1} parent=5 // pred_check
        _
      $region10: #{tpu_custom_call.1} parent=5 // pred_check_branch
        %405 = sbr.rel (%p402) target = $region12
      $region11: #{tpu_custom_call.1} parent=5 // pred_region
        %s406 = ssub.s32 %s25, 1
        // Predicated region
        $region13: #{tpu_custom_call.1} parent=11 // pred_check
          %p407 = pneg %p72
        $region14: #{tpu_custom_call.1} parent=11 // pred_check_branch
          %409 = sbr.rel (%p407) target = $region16
        $region15: #{tpu_custom_call.1} parent=11 // pred_region
          _
        $region16: #{tpu_custom_call.1} parent=11 // pred_fallthru
          _
        // Predicated region
        $region17: #{tpu_custom_call.1} parent=11 // pred_check
          %p410 = pneg %p93
        $region18: #{tpu_custom_call.1} parent=11 // pred_check_branch
          %412 = sbr.rel (%p410) target = $region20
        $region19: #{tpu_custom_call.1} parent=11 // pred_region
          _
        $region20: #{tpu_custom_call.1} parent=11 // pred_fallthru
          _
        // Predicated region
        $region21: #{tpu_custom_call.1} parent=11 // pred_check
          %p413 = pneg %p114
        $region22: #{tpu_custom_call.1} parent=11 // pred_check_branch
          %415 = sbr.rel (%p413) target = $region24
        $region23: #{tpu_custom_call.1} parent=11 // pred_region
          _
        $region24: #{tpu_custom_call.1} parent=11 // pred_fallthru
          _
        // Predicated region
        $region25: #{tpu_custom_call.1} parent=11 // pred_check
          %p416 = pneg %p135
        $region26: #{tpu_custom_call.1} parent=11 // pred_check_branch
          %418 = sbr.rel (%p416) target = $region28
        $region27: #{tpu_custom_call.1} parent=11 // pred_region
          _
        $region28: #{tpu_custom_call.1} parent=11 // pred_fallthru
          _
        // Predicated region
        $region29: #{tpu_custom_call.1} parent=11 // pred_check
          %p419 = pneg %p156
        $region30: #{tpu_custom_call.1} parent=11 // pred_check_branch
          %421 = sbr.rel (%p419) target = $region32
        $region31: #{tpu_custom_call.1} parent=11 // pred_region
          _
        $region32: #{tpu_custom_call.1} parent=11 // pred_fallthru
          _
        // Predicated region
        $region33: #{tpu_custom_call.1} parent=11 // pred_check
          %p422 = pneg %p177
        $region34: #{tpu_custom_call.1} parent=11 // pred_check_branch
          %424 = sbr.rel (%p422) target = $region36
        $region35: #{tpu_custom_call.1} parent=11 // pred_region
          _
        $region36: #{tpu_custom_call.1} parent=11 // pred_fallthru
          _
        // Predicated region
        $region37: #{tpu_custom_call.1} parent=11 // pred_check
          %p425 = pneg %p198
        $region38: #{tpu_custom_call.1} parent=11 // pred_check_branch
          %427 = sbr.rel (%p425) target = $region40
        $region39: #{tpu_custom_call.1} parent=11 // pred_region
          _
        $region40: #{tpu_custom_call.1} parent=11 // pred_fallthru
          _
        // Predicated region
        $region41: #{tpu_custom_call.1} parent=11 // pred_check
          %p428 = pneg %p219
        $region42: #{tpu_custom_call.1} parent=11 // pred_check_branch
          %430 = sbr.rel (%p428) target = $region44
        $region43: #{tpu_custom_call.1} parent=11 // pred_region
          _
        $region44: #{tpu_custom_call.1} parent=11 // pred_fallthru
          _
        // Predicated region
        $region45: #{tpu_custom_call.1} parent=11 // pred_check
          %p431 = pneg %p240
        $region46: #{tpu_custom_call.1} parent=11 // pred_check_branch
          %433 = sbr.rel (%p431) target = $region48
        $region47: #{tpu_custom_call.1} parent=11 // pred_region
          _
        $region48: #{tpu_custom_call.1} parent=11 // pred_fallthru
          _
        // Predicated region
        $region49: #{tpu_custom_call.1} parent=11 // pred_check
          %p434 = pneg %p261
        $region50: #{tpu_custom_call.1} parent=11 // pred_check_branch
          %436 = sbr.rel (%p434) target = $region52
        $region51: #{tpu_custom_call.1} parent=11 // pred_region
          _
        $region52: #{tpu_custom_call.1} parent=11 // pred_fallthru
          _
        // Predicated region
        $region53: #{tpu_custom_call.1} parent=11 // pred_check
          %p437 = pneg %p282
        $region54: #{tpu_custom_call.1} parent=11 // pred_check_branch
          %439 = sbr.rel (%p437) target = $region56
        $region55: #{tpu_custom_call.1} parent=11 // pred_region
          _
        $region56: #{tpu_custom_call.1} parent=11 // pred_fallthru
          _
        // Predicated region
        $region57: #{tpu_custom_call.1} parent=11 // pred_check
          %p440 = pneg %p303
        $region58: #{tpu_custom_call.1} parent=11 // pred_check_branch
          %442 = sbr.rel (%p440) target = $region60
        $region59: #{tpu_custom_call.1} parent=11 // pred_region
          _
        $region60: #{tpu_custom_call.1} parent=11 // pred_fallthru
          _
        // Predicated region
        $region61: #{tpu_custom_call.1} parent=11 // pred_check
          %p443 = pneg %p324
        $region62: #{tpu_custom_call.1} parent=11 // pred_check_branch
          %445 = sbr.rel (%p443) target = $region64
        $region63: #{tpu_custom_call.1} parent=11 // pred_region
          _
        $region64: #{tpu_custom_call.1} parent=11 // pred_fallthru
          _
        // Predicated region
        $region65: #{tpu_custom_call.1} parent=11 // pred_check
          %p446 = pneg %p345
        $region66: #{tpu_custom_call.1} parent=11 // pred_check_branch
          %448 = sbr.rel (%p446) target = $region68
        $region67: #{tpu_custom_call.1} parent=11 // pred_region
          _
        $region68: #{tpu_custom_call.1} parent=11 // pred_fallthru
          _
        // Predicated region
        $region69: #{tpu_custom_call.1} parent=11 // pred_check
          %p449 = pneg %p366
        $region70: #{tpu_custom_call.1} parent=11 // pred_check_branch
          %451 = sbr.rel (%p449) target = $region72
        $region71: #{tpu_custom_call.1} parent=11 // pred_region
          _
        $region72: #{tpu_custom_call.1} parent=11 // pred_fallthru
          _
      $region12: #{tpu_custom_call.1} parent=5 // pred_fallthru
        _
      %p452 = scmp.lt.s32.totalorder %s25, 2
      // Predicated region
      $region73: #{tpu_custom_call.1} parent=5 // pred_check
        %p453 = pneg %p452
      $region74: #{tpu_custom_call.1} parent=5 // pred_check_branch
        %455 = sbr.rel (%p453) target = $region76
      $region75: #{tpu_custom_call.1} parent=5 // pred_region
        // Predicated region
        $region77: #{tpu_custom_call.1} parent=75 // pred_check
          %p456 = pneg %p45
        $region78: #{tpu_custom_call.1} parent=75 // pred_check_branch
          %458 = sbr.rel (%p456) target = $region80
        $region79: #{tpu_custom_call.1} parent=75 // pred_region
          %p459 = scmp.lt.s32.totalorder %s25, 1
          %s460 = scalar_select %p459, %s25, 1
          %s461 = smul.addr %s460, 8
          %s462 = scalar_lea.vmem %s0, %s461
        $region80: #{tpu_custom_call.1} parent=75 // pred_fallthru
          _
      $region76: #{tpu_custom_call.1} parent=5 // pred_fallthru
        _
      %p463 = scmp.le.s32.totalorder 1, %s25
      %p464 = scmp.lt.s32.totalorder %s25, 3
      %p465 = pnand %p463, %p464
      %p466 = pneg %p465
      // Predicated region
      $region81: #{tpu_custom_call.1} parent=5 // pred_check
        _
      $region82: #{tpu_custom_call.1} parent=5 // pred_check_branch
        %468 = sbr.rel (%p465) target = $region84
      $region83: #{tpu_custom_call.1} parent=5 // pred_region
        %s469 = ssub.s32 %s25, 1
        %p470 = scmp.lt.s32.totalorder %s30, 1
        %s471 = scalar_select %p470, %s30, 1
        %s472 = smul.addr %s471, 8
        %s473 = scalar_lea.vmem %s0, %s472
        %p474 = pneg %p51
        %p475 = pneg %p48
        %p476 = pneg %p72
        %p477 = pneg %p69
        %p478 = pneg %p93
        %p479 = pneg %p90
        %p480 = pneg %p114
        %p481 = pneg %p111
        %p482 = pneg %p135
        %p483 = pneg %p132
        %p484 = pneg %p156
        %p485 = pneg %p153
        %p486 = pneg %p177
        %p487 = pneg %p174
        %p488 = pneg %p198
        %p489 = pneg %p195
        %p490 = pneg %p219
        %p491 = pneg %p216
        %p492 = pneg %p240
        %p493 = pneg %p237
        %p494 = pneg %p261
        %p495 = pneg %p258
        %p496 = pneg %p282
        %p497 = pneg %p279
        %p498 = pneg %p303
        %p499 = pneg %p300
        %p500 = pneg %p324
        %p501 = pneg %p321
        %p502 = pneg %p345
        %p503 = pneg %p342
        %p504 = pneg %p366
        %p505 = pneg %p363
        %p506 = pneg %p392
        %p507 = pneg %p389
        %s508 = sand.u32 %s379, 1
        %s509 = scalar_lea.sflag [#allocation3], %s508
        %s510 = sand.u32 %s379, 1
        %s511 = smul.addr %s510, 8
        %s512 = scalar_lea.vmem [#allocation2], %s511
        %p513 = scmp.lt.s32.totalorder %s30, 1
        %s514 = scalar_select %p513, %s30, 1
        %s515 = smul.addr %s514, 8
        %s516 = scalar_lea.vmem %s0, %s515
        %v517 = vld [vmem:[%s516] sm:$0xff]
        %v518 = vlaneseq
        %v519 = vshrl.u32 %v518, 7
        %v520 = vlaneseq
        %v521 = vand.u32 %v520, 127
        %vm522 = vcmp.ge.s32.totalorder %v519, %v521
        %v523 = vsel %vm522, 0.0, -1e+09
        %v524 = vld [vmem:[%s1] sm:$0x1]
        %v525 = vld [vmem:[%s2] sm:$0x1]
        %vm526 = vcmask 261120
        %v527 = vsel %vm526, %v517, 0.0
        %528 = vadd.xlane.f32.xlu0 %v527
        %v529 = vpop.xlane.xlu0 %528
        %v530 = vrcp.pop 32.0
        %v531 = vmul.f32 %v529, %v530
        %v532 = vsub.f32 %v517, %v531
        %v533 = vmul.f32 %v532, %v532
        %v534 = vsel %vm526, %v533, 0.0
        %535 = vadd.xlane.f32.xlu0 %v534
        %v536 = vpop.xlane.xlu0 %535
        %v537 = vmul.f32 %v536, %v530
        %v538 = vadd.f32 %v537, 1e-05
        %v539 = vrsqrt.pop %v538
        %v540 = vmul.f32 %v532, %v539
        %v542 = vlaneseq
        %v543 = vshrl.u32 %v542, 7
        %v544 = vsub.s32 0, %v543
        %v545 = vrot.slane %v524, %v544
        %v547 = vmul.f32 %v540, %v545
        %v549 = vlaneseq
        %v550 = vshrl.u32 %v549, 7
        %v551 = vsub.s32 0, %v550
        %v552 = vrot.slane %v525, %v551
        %v554 = vadd.f32 %v547, %v552
        %v555 = vld [vmem:[%s3] sm:$0xff]
        %v556 = vld [vmem:[%s3 + $0x8] sm:$0xff]
        %v557 = vld [vmem:[%s3 + $0x10] sm:$0xff]
        %v558 = vld [vmem:[%s3 + $0x18] sm:$0xff]
        %v560 = vsel %vm526, %v554, 0
        %562 = vmatprep.subr.mxu0 0.0
        %563 = vmatpush1.msra.mxu0 %v555
        %564 = vmatprep.subr.mxu0 0.0
        %565 = vmatpush1.msra.mxu0 %v556
        %566 = vmatprep.subr.mxu0 0.0
        %567 = vmatpush1.msra.mxu0 %v557
        %568 = vmatprep.subr.mxu0 0.0
        %569 = vmatpush1.msra.mxu0 %v558
        %570 = vmatprep.subr.mxu0 0.0
        %571 = vmatpush1.msra.mxu0 0.0
        %572 = vmatprep.subr.mxu0 0.0
        %573 = vmatpush1.msra.mxu0 0.0
        %574 = vmatprep.subr.mxu0 0.0
        %575 = vmatpush1.msra.mxu0 0.0
        %576 = vmatprep.subr.mxu0 0.0
        %577 = vmatpush1.msra.mxu0 0.0
        %578 = vmatprep.subr.mxu0 0.0
        %579 = vmatpush1.msra.mxu0 0.0
        %580 = vmatprep.subr.mxu0 0.0
        %581 = vmatpush1.msra.mxu0 0.0
        %582 = vmatprep.subr.mxu0 0.0
        %583 = vmatpush1.msra.mxu0 0.0
        %584 = vmatprep.subr.mxu0 0.0
        %585 = vmatpush1.msra.mxu0 0.0
        %586 = vmatprep.subr.mxu0 0.0
        %587 = vmatpush1.msra.mxu0 0.0
        %588 = vmatprep.subr.mxu0 0.0
        %589 = vmatpush1.msra.mxu0 0.0
        %590 = vmatprep.subr.mxu0 0.0
        %591 = vmatpush1.msra.mxu0 0.0
        %592 = vmatprep.subr.mxu0 0.0
        %593 = vmatpush1.msra.mxu0 0.0
        %594 = vmatprep.subr.mxu0 0.0
        %595 = vmatpush1.msra.mxu0 0.0
        %596 = vmatprep.subr.mxu0 0.0
        %597 = vmatpush1.msra.mxu0 0.0
        %598 = vmatprep.subr.mxu0 0.0
        %599 = vmatpush1.msra.mxu0 0.0
        %600 = vmatprep.subr.mxu0 0.0
        %601 = vmatpush1.msra.mxu0 0.0
        %602 = vmatprep.subr.mxu0 0.0
        %603 = vmatpush1.msra.mxu0 0.0
        %604 = vmatprep.subr.mxu0 0.0
        %605 = vmatpush1.msra.mxu0 0.0
        %606 = vmatprep.subr.mxu0 0.0
        %607 = vmatpush1.msra.mxu0 0.0
        %608 = vmatprep.subr.mxu0 0.0
        %609 = vmatpush1.msra.mxu0 0.0
        %610 = vmatprep.subr.mxu0 0.0
        %611 = vmatpush1.msra.mxu0 0.0
        %612 = vmatprep.subr.mxu0 0.0
        %613 = vmatpush1.msra.mxu0 0.0
        %614 = vmatprep.subr.mxu0 0.0
        %615 = vmatpush1.msra.mxu0 0.0
        %616 = vmatprep.subr.mxu0 0.0
        %617 = vmatpush1.msra.mxu0 0.0
        %618 = vmatprep.subr.mxu0 0.0
        %619 = vmatpush1.msra.mxu0 0.0
        %620 = vmatprep.subr.mxu0 0.0
        %621 = vmatpush1.msra.mxu0 0.0
        %622 = vmatprep.subr.mxu0 0.0
        %623 = vmatpush1.msra.mxu0 0.0
        %624 = vmatprep.subr.mxu0 0.0
        %625 = vmatpush1.msra.mxu0 0.0
        %626 = vmatprep.mubr.f32.mxu0 0.0
        %627 = vmatmul.mubr.f32.gmra.mrb[0].mxu0 %v560
        %v628 = vpop.f32.mrb[0].mxu0
        %v629 = vadd.f32 0.0, %v628
        %v630 = vpop.f32.mrb[0].mxu0
        %631 = vdwg.mxu0
        %633 = vrot.lane.b32.xlu0 %v629, 120
        %v634 = vpop.permute.xlu0 %633
        %636 = vrot.lane.b32.xlu0 %v629, 112
        %v637 = vpop.permute.xlu0 %636
        %639 = vrot.lane.b32.xlu0 %v629, 104
        %v640 = vpop.permute.xlu0 %639
        %v642 = vcombine.low %v629, %v637
        %v643 = vcombine.high %v629, %v637
        %v645 = vunpack.c.l.s4 1983009808
        %v646 = vunpack.c.0.s8 %v645
        %v647 = vlaneseq
        %v648 = vshrl.u32 %v647, 7
        %v649 = vsub.s32 %v646, %v648
        %v650 = vrot.slane %v642, %v649
        %v652 = vunpack.c.l.s4 1983009808
        %v653 = vunpack.c.0.s8 %v652
        %v654 = vlaneseq
        %v655 = vshrl.u32 %v654, 7
        %v656 = vsub.s32 %v653, %v655
        %v657 = vrot.slane %v643, %v656
        %v658 = vcombine.low %v634, %v640
        %v659 = vcombine.high %v634, %v640
        %v661 = vunpack.c.l.s4 1983009808
        %v662 = vunpack.c.0.s8 %v661
        %v663 = vlaneseq
        %v664 = vshrl.u32 %v663, 7
        %v665 = vsub.s32 %v662, %v664
        %v666 = vrot.slane %v658, %v665
        %v668 = vunpack.c.l.s4 1983009808
        %v669 = vunpack.c.0.s8 %v668
        %v670 = vlaneseq
        %v671 = vshrl.u32 %v670, 7
        %v672 = vsub.s32 %v669, %v671
        %v673 = vrot.slane %v659, %v672
        %v674 = vcombine.low %v650, %v666
        %v675 = vcombine.high %v650, %v666
        %v677 = vunpack.c.l.s4 1934713408
        %v678 = vunpack.c.0.s8 %v677
        %v679 = vlaneseq
        %v680 = vshrl.u32 %v679, 7
        %v681 = vsub.s32 %v678, %v680
        %v682 = vrot.slane %v674, %v681
        %v684 = vunpack.c.l.s4 1934713408
        %v685 = vunpack.c.0.s8 %v684
        %v686 = vlaneseq
        %v687 = vshrl.u32 %v686, 7
        %v688 = vsub.s32 %v685, %v687
        %v689 = vrot.slane %v675, %v688
        %v690 = vcombine.low %v657, %v673
        %v691 = vcombine.high %v657, %v673
        %v693 = vunpack.c.l.s4 1934713408
        %v694 = vunpack.c.0.s8 %v693
        %v695 = vlaneseq
        %v696 = vshrl.u32 %v695, 7
        %v697 = vsub.s32 %v694, %v696
        %v698 = vrot.slane %v690, %v697
        %v700 = vunpack.c.l.s4 1934713408
        %v701 = vunpack.c.0.s8 %v700
        %v702 = vlaneseq
        %v703 = vshrl.u32 %v702, 7
        %v704 = vsub.s32 %v701, %v703
        %v705 = vrot.slane %v691, %v704
        %v706 = vcombine.high %v682, 0.0
        %v707 = vcombine.high %v689, 0.0
        %v708 = vcombine.high %v698, 0.0
        %v709 = vcombine.high %v705, 0.0
        %v710 = vcombine.low %v682, %v689
        %v712 = vunpack.c.l.s4 1983009808
        %v713 = vunpack.c.0.s8 %v712
        %v714 = vlaneseq
        %v715 = vshrl.u32 %v714, 7
        %v716 = vsub.s32 %v713, %v715
        %v717 = vrot.slane %v710, %v716
        %v718 = vcombine.low %v706, %v707
        %v720 = vunpack.c.l.s4 1983009808
        %v721 = vunpack.c.0.s8 %v720
        %v722 = vlaneseq
        %v723 = vshrl.u32 %v722, 7
        %v724 = vsub.s32 %v721, %v723
        %v725 = vrot.slane %v718, %v724
        %v726 = vcombine.low %v698, %v705
        %v728 = vunpack.c.l.s4 1983009808
        %v729 = vunpack.c.0.s8 %v728
        %v730 = vlaneseq
        %v731 = vshrl.u32 %v730, 7
        %v732 = vsub.s32 %v729, %v731
        %v733 = vrot.slane %v726, %v732
        %v734 = vcombine.low %v708, %v709
        %v736 = vunpack.c.l.s4 1983009808
        %v737 = vunpack.c.0.s8 %v736
        %v738 = vlaneseq
        %v739 = vshrl.u32 %v738, 7
        %v740 = vsub.s32 %v737, %v739
        %v741 = vrot.slane %v734, %v740
        %v742 = vcombine.low %v717, %v725
        %v743 = vcombine.high %v717, %v725
        %v745 = vunpack.c.l.s4 1934713408
        %v746 = vunpack.c.0.s8 %v745
        %v747 = vlaneseq
        %v748 = vshrl.u32 %v747, 7
        %v749 = vsub.s32 %v746, %v748
        %v750 = vrot.slane %v742, %v749
        %v752 = vunpack.c.l.s4 1934713408
        %v753 = vunpack.c.0.s8 %v752
        %v754 = vlaneseq
        %v755 = vshrl.u32 %v754, 7
        %v756 = vsub.s32 %v753, %v755
        %v757 = vrot.slane %v743, %v756
        %v758 = vcombine.low %v733, %v741
        %v759 = vcombine.high %v733, %v741
        %v761 = vunpack.c.l.s4 1934713408
        %v762 = vunpack.c.0.s8 %v761
        %v763 = vlaneseq
        %v764 = vshrl.u32 %v763, 7
        %v765 = vsub.s32 %v762, %v764
        %v766 = vrot.slane %v758, %v765
        %v768 = vunpack.c.l.s4 1934713408
        %v769 = vunpack.c.0.s8 %v768
        %v770 = vlaneseq
        %v771 = vshrl.u32 %v770, 7
        %v772 = vsub.s32 %v769, %v771
        %v773 = vrot.slane %v759, %v772
        %v774 = vcombine.low %v750, %v766
        %v775 = vcombine.high %v750, %v766
        %v776 = vcombine.low %v757, %v773
        %v777 = vcombine.high %v757, %v773
        %778 = vrot.lane.b32.xlu0 %v629, 96
        %v779 = vpop.permute.xlu0 %778
        %780 = vrot.lane.b32.xlu0 %v634, 96
        %v781 = vpop.permute.xlu0 %780
        %782 = vrot.lane.b32.xlu0 %v637, 96
        %v783 = vpop.permute.xlu0 %782
        %784 = vrot.lane.b32.xlu0 %v640, 96
        %v785 = vpop.permute.xlu0 %784
        %v790 = vcombine.low %v779, %v783
        %v791 = vcombine.high %v779, %v783
        %v793 = vunpack.c.l.s4 1983009808
        %v794 = vunpack.c.0.s8 %v793
        %v795 = vlaneseq
        %v796 = vshrl.u32 %v795, 7
        %v797 = vsub.s32 %v794, %v796
        %v798 = vrot.slane %v790, %v797
        %v800 = vunpack.c.l.s4 1983009808
        %v801 = vunpack.c.0.s8 %v800
        %v802 = vlaneseq
        %v803 = vshrl.u32 %v802, 7
        %v804 = vsub.s32 %v801, %v803
        %v805 = vrot.slane %v791, %v804
        %v806 = vcombine.low %v781, %v785
        %v807 = vcombine.high %v781, %v785
        %v809 = vunpack.c.l.s4 1983009808
        %v810 = vunpack.c.0.s8 %v809
        %v811 = vlaneseq
        %v812 = vshrl.u32 %v811, 7
        %v813 = vsub.s32 %v810, %v812
        %v814 = vrot.slane %v806, %v813
        %v816 = vunpack.c.l.s4 1983009808
        %v817 = vunpack.c.0.s8 %v816
        %v818 = vlaneseq
        %v819 = vshrl.u32 %v818, 7
        %v820 = vsub.s32 %v817, %v819
        %v821 = vrot.slane %v807, %v820
        %v822 = vcombine.low %v798, %v814
        %v823 = vcombine.high %v798, %v814
        %v825 = vunpack.c.l.s4 1934713408
        %v826 = vunpack.c.0.s8 %v825
        %v827 = vlaneseq
        %v828 = vshrl.u32 %v827, 7
        %v829 = vsub.s32 %v826, %v828
        %v830 = vrot.slane %v822, %v829
        %v832 = vunpack.c.l.s4 1934713408
        %v833 = vunpack.c.0.s8 %v832
        %v834 = vlaneseq
        %v835 = vshrl.u32 %v834, 7
        %v836 = vsub.s32 %v833, %v835
        %v837 = vrot.slane %v823, %v836
        %v838 = vcombine.low %v805, %v821
        %v839 = vcombine.high %v805, %v821
        %v841 = vunpack.c.l.s4 1934713408
        %v842 = vunpack.c.0.s8 %v841
        %v843 = vlaneseq
        %v844 = vshrl.u32 %v843, 7
        %v845 = vsub.s32 %v842, %v844
        %v846 = vrot.slane %v838, %v845
        %v848 = vunpack.c.l.s4 1934713408
        %v849 = vunpack.c.0.s8 %v848
        %v850 = vlaneseq
        %v851 = vshrl.u32 %v850, 7
        %v852 = vsub.s32 %v849, %v851
        %v853 = vrot.slane %v839, %v852
        %v854 = vcombine.high %v830, 0.0
        %v855 = vcombine.high %v837, 0.0
        %v856 = vcombine.high %v846, 0.0
        %v857 = vcombine.high %v853, 0.0
        %v858 = vcombine.low %v830, %v837
        %v860 = vunpack.c.l.s4 1983009808
        %v861 = vunpack.c.0.s8 %v860
        %v862 = vlaneseq
        %v863 = vshrl.u32 %v862, 7
        %v864 = vsub.s32 %v861, %v863
        %v865 = vrot.slane %v858, %v864
        %v866 = vcombine.low %v854, %v855
        %v868 = vunpack.c.l.s4 1983009808
        %v869 = vunpack.c.0.s8 %v868
        %v870 = vlaneseq
        %v871 = vshrl.u32 %v870, 7
        %v872 = vsub.s32 %v869, %v871
        %v873 = vrot.slane %v866, %v872
        %v874 = vcombine.low %v846, %v853
        %v876 = vunpack.c.l.s4 1983009808
        %v877 = vunpack.c.0.s8 %v876
        %v878 = vlaneseq
        %v879 = vshrl.u32 %v878, 7
        %v880 = vsub.s32 %v877, %v879
        %v881 = vrot.slane %v874, %v880
        %v882 = vcombine.low %v856, %v857
        %v884 = vunpack.c.l.s4 1983009808
        %v885 = vunpack.c.0.s8 %v884
        %v886 = vlaneseq
        %v887 = vshrl.u32 %v886, 7
        %v888 = vsub.s32 %v885, %v887
        %v889 = vrot.slane %v882, %v888
        %v890 = vcombine.low %v865, %v873
        %v891 = vcombine.high %v865, %v873
        %v893 = vunpack.c.l.s4 1934713408
        %v894 = vunpack.c.0.s8 %v893
        %v895 = vlaneseq
        %v896 = vshrl.u32 %v895, 7
        %v897 = vsub.s32 %v894, %v896
        %v898 = vrot.slane %v890, %v897
        %v900 = vunpack.c.l.s4 1934713408
        %v901 = vunpack.c.0.s8 %v900
        %v902 = vlaneseq
        %v903 = vshrl.u32 %v902, 7
        %v904 = vsub.s32 %v901, %v903
        %v905 = vrot.slane %v891, %v904
        %v906 = vcombine.low %v881, %v889
        %v907 = vcombine.high %v881, %v889
        %v909 = vunpack.c.l.s4 1934713408
        %v910 = vunpack.c.0.s8 %v909
        %v911 = vlaneseq
        %v912 = vshrl.u32 %v911, 7
        %v913 = vsub.s32 %v910, %v912
        %v914 = vrot.slane %v906, %v913
        %v916 = vunpack.c.l.s4 1934713408
        %v917 = vunpack.c.0.s8 %v916
        %v918 = vlaneseq
        %v919 = vshrl.u32 %v918, 7
        %v920 = vsub.s32 %v917, %v919
        %v921 = vrot.slane %v907, %v920
        %v922 = vcombine.low %v898, %v914
        %v923 = vcombine.high %v898, %v914
        %v924 = vcombine.low %v905, %v921
        %v925 = vcombine.high %v905, %v921
        %926 = vrot.lane.b32.xlu0 %v629, 64
        %v927 = vpop.permute.xlu0 %926
        %928 = vrot.lane.b32.xlu0 %v634, 64
        %v929 = vpop.permute.xlu0 %928
        %930 = vrot.lane.b32.xlu0 %v637, 64
        %v931 = vpop.permute.xlu0 %930
        %932 = vrot.lane.b32.xlu0 %v640, 64
        %v933 = vpop.permute.xlu0 %932
        %v938 = vcombine.low %v927, %v931
        %v939 = vcombine.high %v927, %v931
        %v941 = vunpack.c.l.s4 1983009808
        %v942 = vunpack.c.0.s8 %v941
        %v943 = vlaneseq
        %v944 = vshrl.u32 %v943, 7
        %v945 = vsub.s32 %v942, %v944
        %v946 = vrot.slane %v938, %v945
        %v948 = vunpack.c.l.s4 1983009808
        %v949 = vunpack.c.0.s8 %v948
        %v950 = vlaneseq
        %v951 = vshrl.u32 %v950, 7
        %v952 = vsub.s32 %v949, %v951
        %v953 = vrot.slane %v939, %v952
        %v954 = vcombine.low %v929, %v933
        %v955 = vcombine.high %v929, %v933
        %v957 = vunpack.c.l.s4 1983009808
        %v958 = vunpack.c.0.s8 %v957
        %v959 = vlaneseq
        %v960 = vshrl.u32 %v959, 7
        %v961 = vsub.s32 %v958, %v960
        %v962 = vrot.slane %v954, %v961
        %v964 = vunpack.c.l.s4 1983009808
        %v965 = vunpack.c.0.s8 %v964
        %v966 = vlaneseq
        %v967 = vshrl.u32 %v966, 7
        %v968 = vsub.s32 %v965, %v967
        %v969 = vrot.slane %v955, %v968
        %v970 = vcombine.low %v946, %v962
        %v971 = vcombine.high %v946, %v962
        %v973 = vunpack.c.l.s4 1934713408
        %v974 = vunpack.c.0.s8 %v973
        %v975 = vlaneseq
        %v976 = vshrl.u32 %v975, 7
        %v977 = vsub.s32 %v974, %v976
        %v978 = vrot.slane %v970, %v977
        %v980 = vunpack.c.l.s4 1934713408
        %v981 = vunpack.c.0.s8 %v980
        %v982 = vlaneseq
        %v983 = vshrl.u32 %v982, 7
        %v984 = vsub.s32 %v981, %v983
        %v985 = vrot.slane %v971, %v984
        %v986 = vcombine.low %v953, %v969
        %v987 = vcombine.high %v953, %v969
        %v989 = vunpack.c.l.s4 1934713408
        %v990 = vunpack.c.0.s8 %v989
        %v991 = vlaneseq
        %v992 = vshrl.u32 %v991, 7
        %v993 = vsub.s32 %v990, %v992
        %v994 = vrot.slane %v986, %v993
        %v996 = vunpack.c.l.s4 1934713408
        %v997 = vunpack.c.0.s8 %v996
        %v998 = vlaneseq
        %v999 = vshrl.u32 %v998, 7
        %v1000 = vsub.s32 %v997, %v999
        %v1001 = vrot.slane %v987, %v1000
        %v1002 = vcombine.high %v978, 0.0
        %v1003 = vcombine.high %v985, 0.0
        %v1004 = vcombine.high %v994, 0.0
        %v1005 = vcombine.high %v1001, 0.0
        %v1006 = vcombine.low %v978, %v985
        %v1008 = vunpack.c.l.s4 1983009808
        %v1009 = vunpack.c.0.s8 %v1008
        %v1010 = vlaneseq
        %v1011 = vshrl.u32 %v1010, 7
        %v1012 = vsub.s32 %v1009, %v1011
        %v1013 = vrot.slane %v1006, %v1012
        %v1014 = vcombine.low %v1002, %v1003
        %v1016 = vunpack.c.l.s4 1983009808
        %v1017 = vunpack.c.0.s8 %v1016
        %v1018 = vlaneseq
        %v1019 = vshrl.u32 %v1018, 7
        %v1020 = vsub.s32 %v1017, %v1019
        %v1021 = vrot.slane %v1014, %v1020
        %v1022 = vcombine.low %v994, %v1001
        %v1024 = vunpack.c.l.s4 1983009808
        %v1025 = vunpack.c.0.s8 %v1024
        %v1026 = vlaneseq
        %v1027 = vshrl.u32 %v1026, 7
        %v1028 = vsub.s32 %v1025, %v1027
        %v1029 = vrot.slane %v1022, %v1028
        %v1030 = vcombine.low %v1004, %v1005
        %v1032 = vunpack.c.l.s4 1983009808
        %v1033 = vunpack.c.0.s8 %v1032
        %v1034 = vlaneseq
        %v1035 = vshrl.u32 %v1034, 7
        %v1036 = vsub.s32 %v1033, %v1035
        %v1037 = vrot.slane %v1030, %v1036
        %v1038 = vcombine.low %v1013, %v1021
        %v1039 = vcombine.high %v1013, %v1021
        %v1041 = vunpack.c.l.s4 1934713408
        %v1042 = vunpack.c.0.s8 %v1041
        %v1043 = vlaneseq
        %v1044 = vshrl.u32 %v1043, 7
        %v1045 = vsub.s32 %v1042, %v1044
        %v1046 = vrot.slane %v1038, %v1045
        %v1048 = vunpack.c.l.s4 1934713408
        %v1049 = vunpack.c.0.s8 %v1048
        %v1050 = vlaneseq
        %v1051 = vshrl.u32 %v1050, 7
        %v1052 = vsub.s32 %v1049, %v1051
        %v1053 = vrot.slane %v1039, %v1052
        %v1054 = vcombine.low %v1029, %v1037
        %v1055 = vcombine.high %v1029, %v1037
        %v1057 = vunpack.c.l.s4 1934713408
        %v1058 = vunpack.c.0.s8 %v1057
        %v1059 = vlaneseq
        %v1060 = vshrl.u32 %v1059, 7
        %v1061 = vsub.s32 %v1058, %v1060
        %v1062 = vrot.slane %v1054, %v1061
        %v1064 = vunpack.c.l.s4 1934713408
        %v1065 = vunpack.c.0.s8 %v1064
        %v1066 = vlaneseq
        %v1067 = vshrl.u32 %v1066, 7
        %v1068 = vsub.s32 %v1065, %v1067
        %v1069 = vrot.slane %v1055, %v1068
        %v1070 = vcombine.low %v1046, %v1062
        %v1071 = vcombine.high %v1046, %v1062
        %v1072 = vcombine.low %v1053, %v1069
        %v1073 = vcombine.high %v1053, %v1069
        %vm1074 = vcmask 64512
        %v1076 = vsel %vm1074, %v774, 0
        %v1079 = vsel %vm1074, %v922, 0
        %1081 = vmatprep.subr.mxu0 0.0
        %1082 = vmatpush1.xpose.msra.mxu0 %v1079
        %1083 = vmatprep.subr.mxu0 0.0
        %1084 = vmatpush1.xpose.msra.mxu0 0.0
        %1085 = vmatprep.subr.mxu0 0.0
        %1086 = vmatpush1.xpose.msra.mxu0 0.0
        %1087 = vmatprep.subr.mxu0 0.0
        %1088 = vmatpush1.xpose.msra.mxu0 0.0
        %1089 = vmatprep.subr.mxu0 0.0
        %1090 = vmatpush1.xpose.msra.mxu0 0.0
        %1091 = vmatprep.subr.mxu0 0.0
        %1092 = vmatpush1.xpose.msra.mxu0 0.0
        %1093 = vmatprep.subr.mxu0 0.0
        %1094 = vmatpush1.xpose.msra.mxu0 0.0
        %1095 = vmatprep.subr.mxu0 0.0
        %1096 = vmatpush1.xpose.msra.mxu0 0.0
        %1097 = vmatprep.subr.mxu0 0.0
        %1098 = vmatpush1.xpose.msra.mxu0 0.0
        %1099 = vmatprep.subr.mxu0 0.0
        %1100 = vmatpush1.xpose.msra.mxu0 0.0
        %1101 = vmatprep.subr.mxu0 0.0
        %1102 = vmatpush1.xpose.msra.mxu0 0.0
        %1103 = vmatprep.subr.mxu0 0.0
        %1104 = vmatpush1.xpose.msra.mxu0 0.0
        %1105 = vmatprep.subr.mxu0 0.0
        %1106 = vmatpush1.xpose.msra.mxu0 0.0
        %1107 = vmatprep.subr.mxu0 0.0
        %1108 = vmatpush1.xpose.msra.mxu0 0.0
        %1109 = vmatprep.subr.mxu0 0.0
        %1110 = vmatpush1.xpose.msra.mxu0 0.0
        %1111 = vmatprep.subr.mxu0 0.0
        %1112 = vmatpush1.xpose.msra.mxu0 0.0
        %1113 = vmatprep.subr.mxu0 0.0
        %1114 = vmatpush1.xpose.msra.mxu0 0.0
        %1115 = vmatprep.subr.mxu0 0.0
        %1116 = vmatpush1.xpose.msra.mxu0 0.0
        %1117 = vmatprep.subr.mxu0 0.0
        %1118 = vmatpush1.xpose.msra.mxu0 0.0
        %1119 = vmatprep.subr.mxu0 0.0
        %1120 = vmatpush1.xpose.msra.mxu0 0.0
        %1121 = vmatprep.subr.mxu0 0.0
        %1122 = vmatpush1.xpose.msra.mxu0 0.0
        %1123 = vmatprep.subr.mxu0 0.0
        %1124 = vmatpush1.xpose.msra.mxu0 0.0
        %1125 = vmatprep.subr.mxu0 0.0
        %1126 = vmatpush1.xpose.msra.mxu0 0.0
        %1127 = vmatprep.subr.mxu0 0.0
        %1128 = vmatpush1.xpose.msra.mxu0 0.0
        %1129 = vmatprep.subr.mxu0 0.0
        %1130 = vmatpush1.xpose.msra.mxu0 0.0
        %1131 = vmatprep.subr.mxu0 0.0
        %1132 = vmatpush1.xpose.msra.mxu0 0.0
        %1133 = vmatprep.subr.mxu0 0.0
        %1134 = vmatpush1.xpose.msra.mxu0 0.0
        %1135 = vmatprep.subr.mxu0 0.0
        %1136 = vmatpush1.xpose.msra.mxu0 0.0
        %1137 = vmatprep.subr.mxu0 0.0
        %1138 = vmatpush1.xpose.msra.mxu0 0.0
        %1139 = vmatprep.subr.mxu0 0.0
        %1140 = vmatpush1.xpose.msra.mxu0 0.0
        %1141 = vmatprep.subr.mxu0 0.0
        %1142 = vmatpush1.xpose.msra.mxu0 0.0
        %1143 = vmatprep.subr.mxu0 0.0
        %1144 = vmatpush1.xpose.msra.mxu0 0.0
        %1145 = vmatprep.mubr.f32.mxu0 0.0
        %1146 = vmatmul.mubr.f32.gmra.mrb[0].mxu0 %v1076
        %v1147 = vpop.f32.mrb[0].mxu0
        %v1148 = vadd.f32 %v523, %v1147
        %v1149 = vpop.f32.mrb[0].mxu0
        %1150 = vdwg.mxu0
        %v1152 = vsel %vm1074, %v775, 0
        %v1155 = vsel %vm1074, %v923, 0
        %1157 = vmatprep.subr.mxu0 0.0
        %1158 = vmatpush1.xpose.msra.mxu0 %v1155
        %1159 = vmatprep.subr.mxu0 0.0
        %1160 = vmatpush1.xpose.msra.mxu0 0.0
        %1161 = vmatprep.subr.mxu0 0.0
        %1162 = vmatpush1.xpose.msra.mxu0 0.0
        %1163 = vmatprep.subr.mxu0 0.0
        %1164 = vmatpush1.xpose.msra.mxu0 0.0
        %1165 = vmatprep.subr.mxu0 0.0
        %1166 = vmatpush1.xpose.msra.mxu0 0.0
        %1167 = vmatprep.subr.mxu0 0.0
        %1168 = vmatpush1.xpose.msra.mxu0 0.0
        %1169 = vmatprep.subr.mxu0 0.0
        %1170 = vmatpush1.xpose.msra.mxu0 0.0
        %1171 = vmatprep.subr.mxu0 0.0
        %1172 = vmatpush1.xpose.msra.mxu0 0.0
        %1173 = vmatprep.subr.mxu0 0.0
        %1174 = vmatpush1.xpose.msra.mxu0 0.0
        %1175 = vmatprep.subr.mxu0 0.0
        %1176 = vmatpush1.xpose.msra.mxu0 0.0
        %1177 = vmatprep.subr.mxu0 0.0
        %1178 = vmatpush1.xpose.msra.mxu0 0.0
        %1179 = vmatprep.subr.mxu0 0.0
        %1180 = vmatpush1.xpose.msra.mxu0 0.0
        %1181 = vmatprep.subr.mxu0 0.0
        %1182 = vmatpush1.xpose.msra.mxu0 0.0
        %1183 = vmatprep.subr.mxu0 0.0
        %1184 = vmatpush1.xpose.msra.mxu0 0.0
        %1185 = vmatprep.subr.mxu0 0.0
        %1186 = vmatpush1.xpose.msra.mxu0 0.0
        %1187 = vmatprep.subr.mxu0 0.0
        %1188 = vmatpush1.xpose.msra.mxu0 0.0
        %1189 = vmatprep.subr.mxu0 0.0
        %1190 = vmatpush1.xpose.msra.mxu0 0.0
        %1191 = vmatprep.subr.mxu0 0.0
        %1192 = vmatpush1.xpose.msra.mxu0 0.0
        %1193 = vmatprep.subr.mxu0 0.0
        %1194 = vmatpush1.xpose.msra.mxu0 0.0
        %1195 = vmatprep.subr.mxu0 0.0
        %1196 = vmatpush1.xpose.msra.mxu0 0.0
        %1197 = vmatprep.subr.mxu0 0.0
        %1198 = vmatpush1.xpose.msra.mxu0 0.0
        %1199 = vmatprep.subr.mxu0 0.0
        %1200 = vmatpush1.xpose.msra.mxu0 0.0
        %1201 = vmatprep.subr.mxu0 0.0
        %1202 = vmatpush1.xpose.msra.mxu0 0.0
        %1203 = vmatprep.subr.mxu0 0.0
        %1204 = vmatpush1.xpose.msra.mxu0 0.0
        %1205 = vmatprep.subr.mxu0 0.0
        %1206 = vmatpush1.xpose.msra.mxu0 0.0
        %1207 = vmatprep.subr.mxu0 0.0
        %1208 = vmatpush1.xpose.msra.mxu0 0.0
        %1209 = vmatprep.subr.mxu0 0.0
        %1210 = vmatpush1.xpose.msra.mxu0 0.0
        %1211 = vmatprep.subr.mxu0 0.0
        %1212 = vmatpush1.xpose.msra.mxu0 0.0
        %1213 = vmatprep.subr.mxu0 0.0
        %1214 = vmatpush1.xpose.msra.mxu0 0.0
        %1215 = vmatprep.subr.mxu0 0.0
        %1216 = vmatpush1.xpose.msra.mxu0 0.0
        %1217 = vmatprep.subr.mxu0 0.0
        %1218 = vmatpush1.xpose.msra.mxu0 0.0
        %1219 = vmatprep.subr.mxu0 0.0
        %1220 = vmatpush1.xpose.msra.mxu0 0.0
        %1221 = vmatprep.mubr.f32.mxu0 0.0
        %1222 = vmatmul.mubr.f32.gmra.mrb[0].mxu0 %v1152
        %v1223 = vpop.f32.mrb[0].mxu0
        %v1224 = vadd.f32 %v523, %v1223
        %v1225 = vpop.f32.mrb[0].mxu0
        %1226 = vdwg.mxu0
        %v1228 = vsel %vm1074, %v776, 0
        %v1231 = vsel %vm1074, %v924, 0
        %1233 = vmatprep.subr.mxu0 0.0
        %1234 = vmatpush1.xpose.msra.mxu0 %v1231
        %1235 = vmatprep.subr.mxu0 0.0
        %1236 = vmatpush1.xpose.msra.mxu0 0.0
        %1237 = vmatprep.subr.mxu0 0.0
        %1238 = vmatpush1.xpose.msra.mxu0 0.0
        %1239 = vmatprep.subr.mxu0 0.0
        %1240 = vmatpush1.xpose.msra.mxu0 0.0
        %1241 = vmatprep.subr.mxu0 0.0
        %1242 = vmatpush1.xpose.msra.mxu0 0.0
        %1243 = vmatprep.subr.mxu0 0.0
        %1244 = vmatpush1.xpose.msra.mxu0 0.0
        %1245 = vmatprep.subr.mxu0 0.0
        %1246 = vmatpush1.xpose.msra.mxu0 0.0
        %1247 = vmatprep.subr.mxu0 0.0
        %1248 = vmatpush1.xpose.msra.mxu0 0.0
        %1249 = vmatprep.subr.mxu0 0.0
        %1250 = vmatpush1.xpose.msra.mxu0 0.0
        %1251 = vmatprep.subr.mxu0 0.0
        %1252 = vmatpush1.xpose.msra.mxu0 0.0
        %1253 = vmatprep.subr.mxu0 0.0
        %1254 = vmatpush1.xpose.msra.mxu0 0.0
        %1255 = vmatprep.subr.mxu0 0.0
        %1256 = vmatpush1.xpose.msra.mxu0 0.0
        %1257 = vmatprep.subr.mxu0 0.0
        %1258 = vmatpush1.xpose.msra.mxu0 0.0
        %1259 = vmatprep.subr.mxu0 0.0
        %1260 = vmatpush1.xpose.msra.mxu0 0.0
        %1261 = vmatprep.subr.mxu0 0.0
        %1262 = vmatpush1.xpose.msra.mxu0 0.0
        %1263 = vmatprep.subr.mxu0 0.0
        %1264 = vmatpush1.xpose.msra.mxu0 0.0
        %1265 = vmatprep.subr.mxu0 0.0
        %1266 = vmatpush1.xpose.msra.mxu0 0.0
        %1267 = vmatprep.subr.mxu0 0.0
        %1268 = vmatpush1.xpose.msra.mxu0 0.0
        %1269 = vmatprep.subr.mxu0 0.0
        %1270 = vmatpush1.xpose.msra.mxu0 0.0
        %1271 = vmatprep.subr.mxu0 0.0
        %1272 = vmatpush1.xpose.msra.mxu0 0.0
        %1273 = vmatprep.subr.mxu0 0.0
        %1274 = vmatpush1.xpose.msra.mxu0 0.0
        %1275 = vmatprep.subr.mxu0 0.0
        %1276 = vmatpush1.xpose.msra.mxu0 0.0
        %1277 = vmatprep.subr.mxu0 0.0
        %1278 = vmatpush1.xpose.msra.mxu0 0.0
        %1279 = vmatprep.subr.mxu0 0.0
        %1280 = vmatpush1.xpose.msra.mxu0 0.0
        %1281 = vmatprep.subr.mxu0 0.0
        %1282 = vmatpush1.xpose.msra.mxu0 0.0
        %1283 = vmatprep.subr.mxu0 0.0
        %1284 = vmatpush1.xpose.msra.mxu0 0.0
        %1285 = vmatprep.subr.mxu0 0.0
        %1286 = vmatpush1.xpose.msra.mxu0 0.0
        %1287 = vmatprep.subr.mxu0 0.0
        %1288 = vmatpush1.xpose.msra.mxu0 0.0
        %1289 = vmatprep.subr.mxu0 0.0
        %1290 = vmatpush1.xpose.msra.mxu0 0.0
        %1291 = vmatprep.subr.mxu0 0.0
        %1292 = vmatpush1.xpose.msra.mxu0 0.0
        %1293 = vmatprep.subr.mxu0 0.0
        %1294 = vmatpush1.xpose.msra.mxu0 0.0
        %1295 = vmatprep.subr.mxu0 0.0
        %1296 = vmatpush1.xpose.msra.mxu0 0.0
        %1297 = vmatprep.mubr.f32.mxu0 0.0
        %1298 = vmatmul.mubr.f32.gmra.mrb[0].mxu0 %v1228
        %v1299 = vpop.f32.mrb[0].mxu0
        %v1300 = vadd.f32 %v523, %v1299
        %v1301 = vpop.f32.mrb[0].mxu0
        %1302 = vdwg.mxu0
        %v1304 = vsel %vm1074, %v777, 0
        %v1307 = vsel %vm1074, %v925, 0
        %1309 = vmatprep.subr.mxu0 0.0
        %1310 = vmatpush1.xpose.msra.mxu0 %v1307
        %1311 = vmatprep.subr.mxu0 0.0
        %1312 = vmatpush1.xpose.msra.mxu0 0.0
        %1313 = vmatprep.subr.mxu0 0.0
        %1314 = vmatpush1.xpose.msra.mxu0 0.0
        %1315 = vmatprep.subr.mxu0 0.0
        %1316 = vmatpush1.xpose.msra.mxu0 0.0
        %1317 = vmatprep.subr.mxu0 0.0
        %1318 = vmatpush1.xpose.msra.mxu0 0.0
        %1319 = vmatprep.subr.mxu0 0.0
        %1320 = vmatpush1.xpose.msra.mxu0 0.0
        %1321 = vmatprep.subr.mxu0 0.0
        %1322 = vmatpush1.xpose.msra.mxu0 0.0
        %1323 = vmatprep.subr.mxu0 0.0
        %1324 = vmatpush1.xpose.msra.mxu0 0.0
        %1325 = vmatprep.subr.mxu0 0.0
        %1326 = vmatpush1.xpose.msra.mxu0 0.0
        %1327 = vmatprep.subr.mxu0 0.0
        %1328 = vmatpush1.xpose.msra.mxu0 0.0
        %1329 = vmatprep.subr.mxu0 0.0
        %1330 = vmatpush1.xpose.msra.mxu0 0.0
        %1331 = vmatprep.subr.mxu0 0.0
        %1332 = vmatpush1.xpose.msra.mxu0 0.0
        %1333 = vmatprep.subr.mxu0 0.0
        %1334 = vmatpush1.xpose.msra.mxu0 0.0
        %1335 = vmatprep.subr.mxu0 0.0
        %1336 = vmatpush1.xpose.msra.mxu0 0.0
        %1337 = vmatprep.subr.mxu0 0.0
        %1338 = vmatpush1.xpose.msra.mxu0 0.0
        %1339 = vmatprep.subr.mxu0 0.0
        %1340 = vmatpush1.xpose.msra.mxu0 0.0
        %1341 = vmatprep.subr.mxu0 0.0
        %1342 = vmatpush1.xpose.msra.mxu0 0.0
        %1343 = vmatprep.subr.mxu0 0.0
        %1344 = vmatpush1.xpose.msra.mxu0 0.0
        %1345 = vmatprep.subr.mxu0 0.0
        %1346 = vmatpush1.xpose.msra.mxu0 0.0
        %1347 = vmatprep.subr.mxu0 0.0
        %1348 = vmatpush1.xpose.msra.mxu0 0.0
        %1349 = vmatprep.subr.mxu0 0.0
        %1350 = vmatpush1.xpose.msra.mxu0 0.0
        %1351 = vmatprep.subr.mxu0 0.0
        %1352 = vmatpush1.xpose.msra.mxu0 0.0
        %1353 = vmatprep.subr.mxu0 0.0
        %1354 = vmatpush1.xpose.msra.mxu0 0.0
        %1355 = vmatprep.subr.mxu0 0.0
        %1356 = vmatpush1.xpose.msra.mxu0 0.0
        %1357 = vmatprep.subr.mxu0 0.0
        %1358 = vmatpush1.xpose.msra.mxu0 0.0
        %1359 = vmatprep.subr.mxu0 0.0
        %1360 = vmatpush1.xpose.msra.mxu0 0.0
        %1361 = vmatprep.subr.mxu0 0.0
        %1362 = vmatpush1.xpose.msra.mxu0 0.0
        %1363 = vmatprep.subr.mxu0 0.0
        %1364 = vmatpush1.xpose.msra.mxu0 0.0
        %1365 = vmatprep.subr.mxu0 0.0
        %1366 = vmatpush1.xpose.msra.mxu0 0.0
        %1367 = vmatprep.subr.mxu0 0.0
        %1368 = vmatpush1.xpose.msra.mxu0 0.0
        %1369 = vmatprep.subr.mxu0 0.0
        %1370 = vmatpush1.xpose.msra.mxu0 0.0
        %1371 = vmatprep.subr.mxu0 0.0
        %1372 = vmatpush1.xpose.msra.mxu0 0.0
        %1373 = vmatprep.mubr.f32.mxu0 0.0
        %1374 = vmatmul.mubr.f32.gmra.mrb[0].mxu0 %v1304
        %v1375 = vpop.f32.mrb[0].mxu0
        %v1376 = vadd.f32 %v523, %v1375
        %v1377 = vpop.f32.mrb[0].mxu0
        %1378 = vdwg.mxu0
        %v1379 = vsel %vm1074, %v1148, -inf
        %1380 = vmax.xlane.f32.xlu0 %v1379
        %v1381 = vpop.xlane.xlu0 %1380
        %v1382 = vsel %vm1074, %v1224, -inf
        %1383 = vmax.xlane.f32.xlu0 %v1382
        %v1384 = vpop.xlane.xlu0 %1383
        %v1385 = vsel %vm1074, %v1300, -inf
        %1386 = vmax.xlane.f32.xlu0 %v1385
        %v1387 = vpop.xlane.xlu0 %1386
        %v1388 = vsel %vm1074, %v1376, -inf
        %1389 = vmax.xlane.f32.xlu0 %v1388
        %v1390 = vpop.xlane.xlu0 %1389
        %v1391 = vsub.f32 %v1148, %v1381
        %v1392 = vsub.f32 %v1224, %v1384
        %v1393 = vsub.f32 %v1300, %v1387
        %v1394 = vsub.f32 %v1376, %v1390
        %v1395 = vmul.f32 %v1391, 1.442695
        %v1396 = vpow.pop %v1395
        %v1397 = vmul.f32 %v1392, 1.442695
        %v1398 = vpow.pop %v1397
        %v1399 = vmul.f32 %v1393, 1.442695
        %v1400 = vpow.pop %v1399
        %v1401 = vmul.f32 %v1394, 1.442695
        %v1402 = vpow.pop %v1401
        %v1403 = vsel %vm1074, %v1396, 0.0
        %1404 = vadd.xlane.f32.xlu0 %v1403
        %v1405 = vpop.xlane.xlu0 %1404
        %v1406 = vsel %vm1074, %v1398, 0.0
        %1407 = vadd.xlane.f32.xlu0 %v1406
        %v1408 = vpop.xlane.xlu0 %1407
        %v1409 = vsel %vm1074, %v1400, 0.0
        %1410 = vadd.xlane.f32.xlu0 %v1409
        %v1411 = vpop.xlane.xlu0 %1410
        %v1412 = vsel %vm1074, %v1402, 0.0
        %1413 = vadd.xlane.f32.xlu0 %v1412
        %v1414 = vpop.xlane.xlu0 %1413
        %v1415 = vrcp.pop %v1405
        %v1416 = vmul.f32 1.0, %v1415
        %v1417 = vrcp.pop %v1408
        %v1418 = vmul.f32 1.0, %v1417
        %v1419 = vrcp.pop %v1411
        %v1420 = vmul.f32 1.0, %v1419
        %v1421 = vrcp.pop %v1414
        %v1422 = vmul.f32 1.0, %v1421
        %v1423 = vmul.f32 %v1396, %v1416
        %v1424 = vmul.f32 %v1398, %v1418
        %v1425 = vmul.f32 %v1400, %v1420
        %v1426 = vmul.f32 %v1402, %v1422
        %v1428 = vsel %vm1074, %v1423, 0
        %1430 = vmatprep.subr.mxu0 0.0
        %1431 = vmatpush1.msra.mxu0 %v1070
        %1432 = vmatprep.subr.mxu0 0.0
        %1433 = vmatpush1.msra.mxu0 0.0
        %1434 = vmatprep.subr.mxu0 0.0
        %1435 = vmatpush1.msra.mxu0 0.0
        %1436 = vmatprep.subr.mxu0 0.0
        %1437 = vmatpush1.msra.mxu0 0.0
        %1438 = vmatprep.subr.mxu0 0.0
        %1439 = vmatpush1.msra.mxu0 0.0
        %1440 = vmatprep.subr.mxu0 0.0
        %1441 = vmatpush1.msra.mxu0 0.0
        %1442 = vmatprep.subr.mxu0 0.0
        %1443 = vmatpush1.msra.mxu0 0.0
        %1444 = vmatprep.subr.mxu0 0.0
        %1445 = vmatpush1.msra.mxu0 0.0
        %1446 = vmatprep.subr.mxu0 0.0
        %1447 = vmatpush1.msra.mxu0 0.0
        %1448 = vmatprep.subr.mxu0 0.0
        %1449 = vmatpush1.msra.mxu0 0.0
        %1450 = vmatprep.subr.mxu0 0.0
        %1451 = vmatpush1.msra.mxu0 0.0
        %1452 = vmatprep.subr.mxu0 0.0
        %1453 = vmatpush1.msra.mxu0 0.0
        %1454 = vmatprep.subr.mxu0 0.0
        %1455 = vmatpush1.msra.mxu0 0.0
        %1456 = vmatprep.subr.mxu0 0.0
        %1457 = vmatpush1.msra.mxu0 0.0
        %1458 = vmatprep.subr.mxu0 0.0
        %1459 = vmatpush1.msra.mxu0 0.0
        %1460 = vmatprep.subr.mxu0 0.0
        %1461 = vmatpush1.msra.mxu0 0.0
        %1462 = vmatprep.subr.mxu0 0.0
        %1463 = vmatpush1.msra.mxu0 0.0
        %1464 = vmatprep.subr.mxu0 0.0
        %1465 = vmatpush1.msra.mxu0 0.0
        %1466 = vmatprep.subr.mxu0 0.0
        %1467 = vmatpush1.msra.mxu0 0.0
        %1468 = vmatprep.subr.mxu0 0.0
        %1469 = vmatpush1.msra.mxu0 0.0
        %1470 = vmatprep.subr.mxu0 0.0
        %1471 = vmatpush1.msra.mxu0 0.0
        %1472 = vmatprep.subr.mxu0 0.0
        %1473 = vmatpush1.msra.mxu0 0.0
        %1474 = vmatprep.subr.mxu0 0.0
        %1475 = vmatpush1.msra.mxu0 0.0
        %1476 = vmatprep.subr.mxu0 0.0
        %1477 = vmatpush1.msra.mxu0 0.0
        %1478 = vmatprep.subr.mxu0 0.0
        %1479 = vmatpush1.msra.mxu0 0.0
        %1480 = vmatprep.subr.mxu0 0.0
        %1481 = vmatpush1.msra.mxu0 0.0
        %1482 = vmatprep.subr.mxu0 0.0
        %1483 = vmatpush1.msra.mxu0 0.0
        %1484 = vmatprep.subr.mxu0 0.0
        %1485 = vmatpush1.msra.mxu0 0.0
        %1486 = vmatprep.subr.mxu0 0.0
        %1487 = vmatpush1.msra.mxu0 0.0
        %1488 = vmatprep.subr.mxu0 0.0
        %1489 = vmatpush1.msra.mxu0 0.0
        %1490 = vmatprep.subr.mxu0 0.0
        %1491 = vmatpush1.msra.mxu0 0.0
        %1492 = vmatprep.subr.mxu0 0.0
        %1493 = vmatpush1.msra.mxu0 0.0
        %1494 = vmatprep.mubr.f32.mxu0 0.0
        %1495 = vmatmul.mubr.f32.gmra.mrb[0].mxu0 %v1428
        %v1496 = vpop.f32.mrb[0].mxu0
        %v1497 = vadd.f32 0.0, %v1496
        %v1498 = vpop.f32.mrb[0].mxu0
        %1499 = vdwg.mxu0
        %v1501 = vsel %vm1074, %v1424, 0
        %1503 = vmatprep.subr.mxu0 0.0
        %1504 = vmatpush1.msra.mxu0 %v1071
        %1505 = vmatprep.subr.mxu0 0.0
        %1506 = vmatpush1.msra.mxu0 0.0
        %1507 = vmatprep.subr.mxu0 0.0
        %1508 = vmatpush1.msra.mxu0 0.0
        %1509 = vmatprep.subr.mxu0 0.0
        %1510 = vmatpush1.msra.mxu0 0.0
        %1511 = vmatprep.subr.mxu0 0.0
        %1512 = vmatpush1.msra.mxu0 0.0
        %1513 = vmatprep.subr.mxu0 0.0
        %1514 = vmatpush1.msra.mxu0 0.0
        %1515 = vmatprep.subr.mxu0 0.0
        %1516 = vmatpush1.msra.mxu0 0.0
        %1517 = vmatprep.subr.mxu0 0.0
        %1518 = vmatpush1.msra.mxu0 0.0
        %1519 = vmatprep.subr.mxu0 0.0
        %1520 = vmatpush1.msra.mxu0 0.0
        %1521 = vmatprep.subr.mxu0 0.0
        %1522 = vmatpush1.msra.mxu0 0.0
        %1523 = vmatprep.subr.mxu0 0.0
        %1524 = vmatpush1.msra.mxu0 0.0
        %1525 = vmatprep.subr.mxu0 0.0
        %1526 = vmatpush1.msra.mxu0 0.0
        %1527 = vmatprep.subr.mxu0 0.0
        %1528 = vmatpush1.msra.mxu0 0.0
        %1529 = vmatprep.subr.mxu0 0.0
        %1530 = vmatpush1.msra.mxu0 0.0
        %1531 = vmatprep.subr.mxu0 0.0
        %1532 = vmatpush1.msra.mxu0 0.0
        %1533 = vmatprep.subr.mxu0 0.0
        %1534 = vmatpush1.msra.mxu0 0.0
        %1535 = vmatprep.subr.mxu0 0.0
        %1536 = vmatpush1.msra.mxu0 0.0
        %1537 = vmatprep.subr.mxu0 0.0
        %1538 = vmatpush1.msra.mxu0 0.0
        %1539 = vmatprep.subr.mxu0 0.0
        %1540 = vmatpush1.msra.mxu0 0.0
        %1541 = vmatprep.subr.mxu0 0.0
        %1542 = vmatpush1.msra.mxu0 0.0
        %1543 = vmatprep.subr.mxu0 0.0
        %1544 = vmatpush1.msra.mxu0 0.0
        %1545 = vmatprep.subr.mxu0 0.0
        %1546 = vmatpush1.msra.mxu0 0.0
        %1547 = vmatprep.subr.mxu0 0.0
        %1548 = vmatpush1.msra.mxu0 0.0
        %1549 = vmatprep.subr.mxu0 0.0
        %1550 = vmatpush1.msra.mxu0 0.0
        %1551 = vmatprep.subr.mxu0 0.0
        %1552 = vmatpush1.msra.mxu0 0.0
        %1553 = vmatprep.subr.mxu0 0.0
        %1554 = vmatpush1.msra.mxu0 0.0
        %1555 = vmatprep.subr.mxu0 0.0
        %1556 = vmatpush1.msra.mxu0 0.0
        %1557 = vmatprep.subr.mxu0 0.0
        %1558 = vmatpush1.msra.mxu0 0.0
        %1559 = vmatprep.subr.mxu0 0.0
        %1560 = vmatpush1.msra.mxu0 0.0
        %1561 = vmatprep.subr.mxu0 0.0
        %1562 = vmatpush1.msra.mxu0 0.0
        %1563 = vmatprep.subr.mxu0 0.0
        %1564 = vmatpush1.msra.mxu0 0.0
        %1565 = vmatprep.subr.mxu0 0.0
        %1566 = vmatpush1.msra.mxu0 0.0
        %1567 = vmatprep.mubr.f32.mxu0 0.0
        %1568 = vmatmul.mubr.f32.gmra.mrb[0].mxu0 %v1501
        %v1569 = vpop.f32.mrb[0].mxu0
        %v1570 = vadd.f32 0.0, %v1569
        %v1571 = vpop.f32.mrb[0].mxu0
        %1572 = vdwg.mxu0
        %v1574 = vsel %vm1074, %v1425, 0
        %1576 = vmatprep.subr.mxu0 0.0
        %1577 = vmatpush1.msra.mxu0 %v1072
        %1578 = vmatprep.subr.mxu0 0.0
        %1579 = vmatpush1.msra.mxu0 0.0
        %1580 = vmatprep.subr.mxu0 0.0
        %1581 = vmatpush1.msra.mxu0 0.0
        %1582 = vmatprep.subr.mxu0 0.0
        %1583 = vmatpush1.msra.mxu0 0.0
        %1584 = vmatprep.subr.mxu0 0.0
        %1585 = vmatpush1.msra.mxu0 0.0
        %1586 = vmatprep.subr.mxu0 0.0
        %1587 = vmatpush1.msra.mxu0 0.0
        %1588 = vmatprep.subr.mxu0 0.0
        %1589 = vmatpush1.msra.mxu0 0.0
        %1590 = vmatprep.subr.mxu0 0.0
        %1591 = vmatpush1.msra.mxu0 0.0
        %1592 = vmatprep.subr.mxu0 0.0
        %1593 = vmatpush1.msra.mxu0 0.0
        %1594 = vmatprep.subr.mxu0 0.0
        %1595 = vmatpush1.msra.mxu0 0.0
        %1596 = vmatprep.subr.mxu0 0.0
        %1597 = vmatpush1.msra.mxu0 0.0
        %1598 = vmatprep.subr.mxu0 0.0
        %1599 = vmatpush1.msra.mxu0 0.0
        %1600 = vmatprep.subr.mxu0 0.0
        %1601 = vmatpush1.msra.mxu0 0.0
        %1602 = vmatprep.subr.mxu0 0.0
        %1603 = vmatpush1.msra.mxu0 0.0
        %1604 = vmatprep.subr.mxu0 0.0
        %1605 = vmatpush1.msra.mxu0 0.0
        %1606 = vmatprep.subr.mxu0 0.0
        %1607 = vmatpush1.msra.mxu0 0.0
        %1608 = vmatprep.subr.mxu0 0.0
        %1609 = vmatpush1.msra.mxu0 0.0
        %1610 = vmatprep.subr.mxu0 0.0
        %1611 = vmatpush1.msra.mxu0 0.0
        %1612 = vmatprep.subr.mxu0 0.0
        %1613 = vmatpush1.msra.mxu0 0.0
        %1614 = vmatprep.subr.mxu0 0.0
        %1615 = vmatpush1.msra.mxu0 0.0
        %1616 = vmatprep.subr.mxu0 0.0
        %1617 = vmatpush1.msra.mxu0 0.0
        %1618 = vmatprep.subr.mxu0 0.0
        %1619 = vmatpush1.msra.mxu0 0.0
        %1620 = vmatprep.subr.mxu0 0.0
        %1621 = vmatpush1.msra.mxu0 0.0
        %1622 = vmatprep.subr.mxu0 0.0
        %1623 = vmatpush1.msra.mxu0 0.0
        %1624 = vmatprep.subr.mxu0 0.0
        %1625 = vmatpush1.msra.mxu0 0.0
        %1626 = vmatprep.subr.mxu0 0.0
        %1627 = vmatpush1.msra.mxu0 0.0
        %1628 = vmatprep.subr.mxu0 0.0
        %1629 = vmatpush1.msra.mxu0 0.0
        %1630 = vmatprep.subr.mxu0 0.0
        %1631 = vmatpush1.msra.mxu0 0.0
        %1632 = vmatprep.subr.mxu0 0.0
        %1633 = vmatpush1.msra.mxu0 0.0
        %1634 = vmatprep.subr.mxu0 0.0
        %1635 = vmatpush1.msra.mxu0 0.0
        %1636 = vmatprep.subr.mxu0 0.0
        %1637 = vmatpush1.msra.mxu0 0.0
        %1638 = vmatprep.subr.mxu0 0.0
        %1639 = vmatpush1.msra.mxu0 0.0
        %1640 = vmatprep.mubr.f32.mxu0 0.0
        %1641 = vmatmul.mubr.f32.gmra.mrb[0].mxu0 %v1574
        %v1642 = vpop.f32.mrb[0].mxu0
        %v1643 = vadd.f32 0.0, %v1642
        %v1644 = vpop.f32.mrb[0].mxu0
        %1645 = vdwg.mxu0
        %v1647 = vsel %vm1074, %v1426, 0
        %1649 = vmatprep.subr.mxu0 0.0
        %1650 = vmatpush1.msra.mxu0 %v1073
        %1651 = vmatprep.subr.mxu0 0.0
        %1652 = vmatpush1.msra.mxu0 0.0
        %1653 = vmatprep.subr.mxu0 0.0
        %1654 = vmatpush1.msra.mxu0 0.0
        %1655 = vmatprep.subr.mxu0 0.0
        %1656 = vmatpush1.msra.mxu0 0.0
        %1657 = vmatprep.subr.mxu0 0.0
        %1658 = vmatpush1.msra.mxu0 0.0
        %1659 = vmatprep.subr.mxu0 0.0
        %1660 = vmatpush1.msra.mxu0 0.0
        %1661 = vmatprep.subr.mxu0 0.0
        %1662 = vmatpush1.msra.mxu0 0.0
        %1663 = vmatprep.subr.mxu0 0.0
        %1664 = vmatpush1.msra.mxu0 0.0
        %1665 = vmatprep.subr.mxu0 0.0
        %1666 = vmatpush1.msra.mxu0 0.0
        %1667 = vmatprep.subr.mxu0 0.0
        %1668 = vmatpush1.msra.mxu0 0.0
        %1669 = vmatprep.subr.mxu0 0.0
        %1670 = vmatpush1.msra.mxu0 0.0
        %1671 = vmatprep.subr.mxu0 0.0
        %1672 = vmatpush1.msra.mxu0 0.0
        %1673 = vmatprep.subr.mxu0 0.0
        %1674 = vmatpush1.msra.mxu0 0.0
        %1675 = vmatprep.subr.mxu0 0.0
        %1676 = vmatpush1.msra.mxu0 0.0
        %1677 = vmatprep.subr.mxu0 0.0
        %1678 = vmatpush1.msra.mxu0 0.0
        %1679 = vmatprep.subr.mxu0 0.0
        %1680 = vmatpush1.msra.mxu0 0.0
        %1681 = vmatprep.subr.mxu0 0.0
        %1682 = vmatpush1.msra.mxu0 0.0
        %1683 = vmatprep.subr.mxu0 0.0
        %1684 = vmatpush1.msra.mxu0 0.0
        %1685 = vmatprep.subr.mxu0 0.0
        %1686 = vmatpush1.msra.mxu0 0.0
        %1687 = vmatprep.subr.mxu0 0.0
        %1688 = vmatpush1.msra.mxu0 0.0
        %1689 = vmatprep.subr.mxu0 0.0
        %1690 = vmatpush1.msra.mxu0 0.0
        %1691 = vmatprep.subr.mxu0 0.0
        %1692 = vmatpush1.msra.mxu0 0.0
        %1693 = vmatprep.subr.mxu0 0.0
        %1694 = vmatpush1.msra.mxu0 0.0
        %1695 = vmatprep.subr.mxu0 0.0
        %1696 = vmatpush1.msra.mxu0 0.0
        %1697 = vmatprep.subr.mxu0 0.0
        %1698 = vmatpush1.msra.mxu0 0.0
        %1699 = vmatprep.subr.mxu0 0.0
        %1700 = vmatpush1.msra.mxu0 0.0
        %1701 = vmatprep.subr.mxu0 0.0
        %1702 = vmatpush1.msra.mxu0 0.0
        %1703 = vmatprep.subr.mxu0 0.0
        %1704 = vmatpush1.msra.mxu0 0.0
        %1705 = vmatprep.subr.mxu0 0.0
        %1706 = vmatpush1.msra.mxu0 0.0
        %1707 = vmatprep.subr.mxu0 0.0
        %1708 = vmatpush1.msra.mxu0 0.0
        %1709 = vmatprep.subr.mxu0 0.0
        %1710 = vmatpush1.msra.mxu0 0.0
        %1711 = vmatprep.subr.mxu0 0.0
        %1712 = vmatpush1.msra.mxu0 0.0
        %1713 = vmatprep.mubr.f32.mxu0 0.0
        %1714 = vmatmul.mubr.f32.gmra.mrb[0].mxu0 %v1647
        %v1715 = vpop.f32.mrb[0].mxu0
        %v1716 = vadd.f32 0.0, %v1715
        %v1717 = vpop.f32.mrb[0].mxu0
        %1718 = vdwg.mxu0
        %v1719 = vcombine.low %v1497, %v1643
        %v1720 = vcombine.high %v1497, %v1643
        %v1722 = vunpack.c.l.s4 1983009808
        %v1723 = vunpack.c.0.s8 %v1722
        %v1724 = vlaneseq
        %v1725 = vshrl.u32 %v1724, 7
        %v1726 = vsub.s32 %v1723, %v1725
        %v1727 = vrot.slane %v1719, %v1726
        %v1729 = vunpack.c.l.s4 1983009808
        %v1730 = vunpack.c.0.s8 %v1729
        %v1731 = vlaneseq
        %v1732 = vshrl.u32 %v1731, 7
        %v1733 = vsub.s32 %v1730, %v1732
        %v1734 = vrot.slane %v1720, %v1733
        %v1735 = vcombine.low %v1570, %v1716
        %v1736 = vcombine.high %v1570, %v1716
        %v1738 = vunpack.c.l.s4 1983009808
        %v1739 = vunpack.c.0.s8 %v1738
        %v1740 = vlaneseq
        %v1741 = vshrl.u32 %v1740, 7
        %v1742 = vsub.s32 %v1739, %v1741
        %v1743 = vrot.slane %v1735, %v1742
        %v1745 = vunpack.c.l.s4 1983009808
        %v1746 = vunpack.c.0.s8 %v1745
        %v1747 = vlaneseq
        %v1748 = vshrl.u32 %v1747, 7
        %v1749 = vsub.s32 %v1746, %v1748
        %v1750 = vrot.slane %v1736, %v1749
        %v1751 = vcombine.low %v1727, %v1743
        %v1752 = vcombine.high %v1727, %v1743
        %v1754 = vunpack.c.l.s4 1934713408
        %v1755 = vunpack.c.0.s8 %v1754
        %v1756 = vlaneseq
        %v1757 = vshrl.u32 %v1756, 7
        %v1758 = vsub.s32 %v1755, %v1757
        %v1759 = vrot.slane %v1751, %v1758
        %v1761 = vunpack.c.l.s4 1934713408
        %v1762 = vunpack.c.0.s8 %v1761
        %v1763 = vlaneseq
        %v1764 = vshrl.u32 %v1763, 7
        %v1765 = vsub.s32 %v1762, %v1764
        %v1766 = vrot.slane %v1752, %v1765
        %v1767 = vcombine.low %v1734, %v1750
        %v1768 = vcombine.high %v1734, %v1750
        %v1770 = vunpack.c.l.s4 1934713408
        %v1771 = vunpack.c.0.s8 %v1770
        %v1772 = vlaneseq
        %v1773 = vshrl.u32 %v1772, 7
        %v1774 = vsub.s32 %v1771, %v1773
        %v1775 = vrot.slane %v1767, %v1774
        %v1777 = vunpack.c.l.s4 1934713408
        %v1778 = vunpack.c.0.s8 %v1777
        %v1779 = vlaneseq
        %v1780 = vshrl.u32 %v1779, 7
        %v1781 = vsub.s32 %v1778, %v1780
        %v1782 = vrot.slane %v1768, %v1781
        %v1783 = vcombine.high %v1759, 0.0
        %v1784 = vcombine.high %v1766, 0.0
        %v1785 = vcombine.high %v1775, 0.0
        %v1786 = vcombine.high %v1782, 0.0
        %v1787 = vcombine.low %v1759, %v1766
        %v1789 = vunpack.c.l.s4 1983009808
        %v1790 = vunpack.c.0.s8 %v1789
        %v1791 = vlaneseq
        %v1792 = vshrl.u32 %v1791, 7
        %v1793 = vsub.s32 %v1790, %v1792
        %v1794 = vrot.slane %v1787, %v1793
        %v1795 = vcombine.low %v1783, %v1784
        %v1797 = vunpack.c.l.s4 1983009808
        %v1798 = vunpack.c.0.s8 %v1797
        %v1799 = vlaneseq
        %v1800 = vshrl.u32 %v1799, 7
        %v1801 = vsub.s32 %v1798, %v1800
        %v1802 = vrot.slane %v1795, %v1801
        %v1803 = vcombine.low %v1775, %v1782
        %v1805 = vunpack.c.l.s4 1983009808
        %v1806 = vunpack.c.0.s8 %v1805
        %v1807 = vlaneseq
        %v1808 = vshrl.u32 %v1807, 7
        %v1809 = vsub.s32 %v1806, %v1808
        %v1810 = vrot.slane %v1803, %v1809
        %v1811 = vcombine.low %v1785, %v1786
        %v1813 = vunpack.c.l.s4 1983009808
        %v1814 = vunpack.c.0.s8 %v1813
        %v1815 = vlaneseq
        %v1816 = vshrl.u32 %v1815, 7
        %v1817 = vsub.s32 %v1814, %v1816
        %v1818 = vrot.slane %v1811, %v1817
        %v1819 = vcombine.low %v1794, %v1802
        %v1820 = vcombine.high %v1794, %v1802
        %v1822 = vunpack.c.l.s4 1934713408
        %v1823 = vunpack.c.0.s8 %v1822
        %v1824 = vlaneseq
        %v1825 = vshrl.u32 %v1824, 7
        %v1826 = vsub.s32 %v1823, %v1825
        %v1827 = vrot.slane %v1819, %v1826
        %v1829 = vunpack.c.l.s4 1934713408
        %v1830 = vunpack.c.0.s8 %v1829
        %v1831 = vlaneseq
        %v1832 = vshrl.u32 %v1831, 7
        %v1833 = vsub.s32 %v1830, %v1832
        %v1834 = vrot.slane %v1820, %v1833
        %v1835 = vcombine.low %v1810, %v1818
        %v1836 = vcombine.high %v1810, %v1818
        %v1838 = vunpack.c.l.s4 1934713408
        %v1839 = vunpack.c.0.s8 %v1838
        %v1840 = vlaneseq
        %v1841 = vshrl.u32 %v1840, 7
        %v1842 = vsub.s32 %v1839, %v1841
        %v1843 = vrot.slane %v1835, %v1842
        %v1845 = vunpack.c.l.s4 1934713408
        %v1846 = vunpack.c.0.s8 %v1845
        %v1847 = vlaneseq
        %v1848 = vshrl.u32 %v1847, 7
        %v1849 = vsub.s32 %v1846, %v1848
        %v1850 = vrot.slane %v1836, %v1849
        %v1851 = vcombine.low %v1827, %v1843
        %v1852 = vcombine.high %v1827, %v1843
        %v1853 = vcombine.low %v1834, %v1850
        %v1854 = vcombine.high %v1834, %v1850
        %1856 = vrot.lane.b32.xlu0 %v1852, 8
        %v1857 = vpop.permute.xlu0 %1856
        %1860 = vrot.lane.b32.xlu0 %v1853, 16
        %v1861 = vpop.permute.xlu0 %1860
        %1864 = vrot.lane.b32.xlu0 %v1854, 24
        %v1865 = vpop.permute.xlu0 %1864
        %v1867 = vsel %vm1074, %v1851, %v1857
        %vm1868 = vcmask 130048
        %v1869 = vsel %vm1868, %v1867, %v1861
        %vm1870 = vcmask 195584
        %v1871 = vsel %vm1870, %v1869, %v1865
        %v1872 = vld [vmem:[%s4] sm:$0xff]
        %v1873 = vld [vmem:[%s4 + $0x8] sm:$0xff]
        %v1874 = vld [vmem:[%s4 + $0x10] sm:$0xff]
        %v1875 = vld [vmem:[%s4 + $0x18] sm:$0xff]
        %v1877 = vsel %vm526, %v1871, 0
        %1879 = vmatprep.subr.mxu0 0.0
        %1880 = vmatpush1.msra.mxu0 %v1872
        %1881 = vmatprep.subr.mxu0 0.0
        %1882 = vmatpush1.msra.mxu0 %v1873
        %1883 = vmatprep.subr.mxu0 0.0
        %1884 = vmatpush1.msra.mxu0 %v1874
        %1885 = vmatprep.subr.mxu0 0.0
        %1886 = vmatpush1.msra.mxu0 %v1875
        %1887 = vmatprep.subr.mxu0 0.0
        %1888 = vmatpush1.msra.mxu0 0.0
        %1889 = vmatprep.subr.mxu0 0.0
        %1890 = vmatpush1.msra.mxu0 0.0
        %1891 = vmatprep.subr.mxu0 0.0
        %1892 = vmatpush1.msra.mxu0 0.0
        %1893 = vmatprep.subr.mxu0 0.0
        %1894 = vmatpush1.msra.mxu0 0.0
        %1895 = vmatprep.subr.mxu0 0.0
        %1896 = vmatpush1.msra.mxu0 0.0
        %1897 = vmatprep.subr.mxu0 0.0
        %1898 = vmatpush1.msra.mxu0 0.0
        %1899 = vmatprep.subr.mxu0 0.0
        %1900 = vmatpush1.msra.mxu0 0.0
        %1901 = vmatprep.subr.mxu0 0.0
        %1902 = vmatpush1.msra.mxu0 0.0
        %1903 = vmatprep.subr.mxu0 0.0
        %1904 = vmatpush1.msra.mxu0 0.0
        %1905 = vmatprep.subr.mxu0 0.0
        %1906 = vmatpush1.msra.mxu0 0.0
        %1907 = vmatprep.subr.mxu0 0.0
        %1908 = vmatpush1.msra.mxu0 0.0
        %1909 = vmatprep.subr.mxu0 0.0
        %1910 = vmatpush1.msra.mxu0 0.0
        %1911 = vmatprep.subr.mxu0 0.0
        %1912 = vmatpush1.msra.mxu0 0.0
        %1913 = vmatprep.subr.mxu0 0.0
        %1914 = vmatpush1.msra.mxu0 0.0
        %1915 = vmatprep.subr.mxu0 0.0
        %1916 = vmatpush1.msra.mxu0 0.0
        %1917 = vmatprep.subr.mxu0 0.0
        %1918 = vmatpush1.msra.mxu0 0.0
        %1919 = vmatprep.subr.mxu0 0.0
        %1920 = vmatpush1.msra.mxu0 0.0
        %1921 = vmatprep.subr.mxu0 0.0
        %1922 = vmatpush1.msra.mxu0 0.0
        %1923 = vmatprep.subr.mxu0 0.0
        %1924 = vmatpush1.msra.mxu0 0.0
        %1925 = vmatprep.subr.mxu0 0.0
        %1926 = vmatpush1.msra.mxu0 0.0
        %1927 = vmatprep.subr.mxu0 0.0
        %1928 = vmatpush1.msra.mxu0 0.0
        %1929 = vmatprep.subr.mxu0 0.0
        %1930 = vmatpush1.msra.mxu0 0.0
        %1931 = vmatprep.subr.mxu0 0.0
        %1932 = vmatpush1.msra.mxu0 0.0
        %1933 = vmatprep.subr.mxu0 0.0
        %1934 = vmatpush1.msra.mxu0 0.0
        %1935 = vmatprep.subr.mxu0 0.0
        %1936 = vmatpush1.msra.mxu0 0.0
        %1937 = vmatprep.subr.mxu0 0.0
        %1938 = vmatpush1.msra.mxu0 0.0
        %1939 = vmatprep.subr.mxu0 0.0
        %1940 = vmatpush1.msra.mxu0 0.0
        %1941 = vmatprep.subr.mxu0 0.0
        %1942 = vmatpush1.msra.mxu0 0.0
        %1943 = vmatprep.mubr.f32.mxu0 0.0
        %1944 = vmatmul.mubr.f32.gmra.mrb[0].mxu0 %v1877
        %v1945 = vpop.f32.mrb[0].mxu0
        %v1946 = vadd.f32 0.0, %v1945
        %v1947 = vpop.f32.mrb[0].mxu0
        %1948 = vdwg.mxu0
        %v1949 = vadd.f32 %v517, %v1946
        %v1950 = vld [vmem:[%s5] sm:$0x1]
        %v1952 = vlaneseq
        %v1953 = vshrl.u32 %v1952, 7
        %v1954 = vsub.s32 0, %v1953
        %v1955 = vrot.slane %v1950, %v1954
        %v1957 = vadd.f32 %v1949, %v1955
        %v1958 = vld [vmem:[%s6] sm:$0x1]
        %v1959 = vld [vmem:[%s7] sm:$0x1]
        %v1960 = vsel %vm526, %v1957, 0.0
        %1961 = vadd.xlane.f32.xlu0 %v1960
        %v1962 = vpop.xlane.xlu0 %1961
        %v1963 = vmul.f32 %v1962, %v530
        %v1964 = vsub.f32 %v1957, %v1963
        %v1965 = vmul.f32 %v1964, %v1964
        %v1966 = vsel %vm526, %v1965, 0.0
        %1967 = vadd.xlane.f32.xlu0 %v1966
        %v1968 = vpop.xlane.xlu0 %1967
        %v1969 = vmul.f32 %v1968, %v530
        %v1970 = vadd.f32 %v1969, 1e-05
        %v1971 = vrsqrt.pop %v1970
        %v1972 = vmul.f32 %v1964, %v1971
        %v1974 = vlaneseq
        %v1975 = vshrl.u32 %v1974, 7
        %v1976 = vsub.s32 0, %v1975
        %v1977 = vrot.slane %v1958, %v1976
        %v1979 = vmul.f32 %v1972, %v1977
        %v1981 = vlaneseq
        %v1982 = vshrl.u32 %v1981, 7
        %v1983 = vsub.s32 0, %v1982
        %v1984 = vrot.slane %v1959, %v1983
        %v1986 = vadd.f32 %v1979, %v1984
        %v1987 = vld [vmem:[%s8] sm:$0xff]
        %v1988 = vld [vmem:[%s8 + $0x8] sm:$0xff]
        %v1989 = vld [vmem:[%s8 + $0x10] sm:$0xff]
        %v1990 = vld [vmem:[%s8 + $0x18] sm:$0xff]
        %v1991 = vld [vmem:[%s9] sm:$0x1]
        %v1993 = vlaneseq
        %v1994 = vshrl.u32 %v1993, 7
        %v1995 = vsub.s32 0, %v1994
        %v1996 = vrot.slane %v1991, %v1995
        %v1999 = vsel %vm526, %v1986, 0
        %2001 = vmatprep.subr.mxu0 0.0
        %2002 = vmatpush1.msra.mxu0 %v1987
        %2003 = vmatprep.subr.mxu0 0.0
        %2004 = vmatpush1.msra.mxu0 %v1988
        %2005 = vmatprep.subr.mxu0 0.0
        %2006 = vmatpush1.msra.mxu0 %v1989
        %2007 = vmatprep.subr.mxu0 0.0
        %2008 = vmatpush1.msra.mxu0 %v1990
        %2009 = vmatprep.subr.mxu0 0.0
        %2010 = vmatpush1.msra.mxu0 0.0
        %2011 = vmatprep.subr.mxu0 0.0
        %2012 = vmatpush1.msra.mxu0 0.0
        %2013 = vmatprep.subr.mxu0 0.0
        %2014 = vmatpush1.msra.mxu0 0.0
        %2015 = vmatprep.subr.mxu0 0.0
        %2016 = vmatpush1.msra.mxu0 0.0
        %2017 = vmatprep.subr.mxu0 0.0
        %2018 = vmatpush1.msra.mxu0 0.0
        %2019 = vmatprep.subr.mxu0 0.0
        %2020 = vmatpush1.msra.mxu0 0.0
        %2021 = vmatprep.subr.mxu0 0.0
        %2022 = vmatpush1.msra.mxu0 0.0
        %2023 = vmatprep.subr.mxu0 0.0
        %2024 = vmatpush1.msra.mxu0 0.0
        %2025 = vmatprep.subr.mxu0 0.0
        %2026 = vmatpush1.msra.mxu0 0.0
        %2027 = vmatprep.subr.mxu0 0.0
        %2028 = vmatpush1.msra.mxu0 0.0
        %2029 = vmatprep.subr.mxu0 0.0
        %2030 = vmatpush1.msra.mxu0 0.0
        %2031 = vmatprep.subr.mxu0 0.0
        %2032 = vmatpush1.msra.mxu0 0.0
        %2033 = vmatprep.subr.mxu0 0.0
        %2034 = vmatpush1.msra.mxu0 0.0
        %2035 = vmatprep.subr.mxu0 0.0
        %2036 = vmatpush1.msra.mxu0 0.0
        %2037 = vmatprep.subr.mxu0 0.0
        %2038 = vmatpush1.msra.mxu0 0.0
        %2039 = vmatprep.subr.mxu0 0.0
        %2040 = vmatpush1.msra.mxu0 0.0
        %2041 = vmatprep.subr.mxu0 0.0
        %2042 = vmatpush1.msra.mxu0 0.0
        %2043 = vmatprep.subr.mxu0 0.0
        %2044 = vmatpush1.msra.mxu0 0.0
        %2045 = vmatprep.subr.mxu0 0.0
        %2046 = vmatpush1.msra.mxu0 0.0
        %2047 = vmatprep.subr.mxu0 0.0
        %2048 = vmatpush1.msra.mxu0 0.0
        %2049 = vmatprep.subr.mxu0 0.0
        %2050 = vmatpush1.msra.mxu0 0.0
        %2051 = vmatprep.subr.mxu0 0.0
        %2052 = vmatpush1.msra.mxu0 0.0
        %2053 = vmatprep.subr.mxu0 0.0
        %2054 = vmatpush1.msra.mxu0 0.0
        %2055 = vmatprep.subr.mxu0 0.0
        %2056 = vmatpush1.msra.mxu0 0.0
        %2057 = vmatprep.subr.mxu0 0.0
        %2058 = vmatpush1.msra.mxu0 0.0
        %2059 = vmatprep.subr.mxu0 0.0
        %2060 = vmatpush1.msra.mxu0 0.0
        %2061 = vmatprep.subr.mxu0 0.0
        %2062 = vmatpush1.msra.mxu0 0.0
        %2063 = vmatprep.subr.mxu0 0.0
        %2064 = vmatpush1.msra.mxu0 0.0
        %2065 = vmatprep.mubr.f32.mxu0 0.0
        %2066 = vmatmul.mubr.f32.gmra.mrb[0].mxu0 %v1999
        %v2067 = vpop.f32.mrb[0].mxu0
        %v2068 = vadd.f32 %v1996, %v2067
        %v2069 = vpop.f32.mrb[0].mxu0
        %2070 = vdwg.mxu0
        %v2071 = vmax.f32 %v2068, 0.0
        %v2072 = vld [vmem:[%s10] sm:$0xff]
        %v2073 = vld [vmem:[%s10 + $0x8] sm:$0xff]
        %v2074 = vld [vmem:[%s10 + $0x10] sm:$0xff]
        %v2075 = vld [vmem:[%s10 + $0x18] sm:$0xff]
        %v2076 = vld [vmem:[%s10 + $0x20] sm:$0xff]
        %v2077 = vld [vmem:[%s10 + $0x28] sm:$0xff]
        %v2078 = vld [vmem:[%s10 + $0x30] sm:$0xff]
        %v2079 = vld [vmem:[%s10 + $0x38] sm:$0xff]
        %v2080 = vld [vmem:[%s10 + $0x40] sm:$0xff]
        %v2081 = vld [vmem:[%s10 + $0x48] sm:$0xff]
        %v2082 = vld [vmem:[%s10 + $0x50] sm:$0xff]
        %v2083 = vld [vmem:[%s10 + $0x58] sm:$0xff]
        %v2084 = vld [vmem:[%s10 + $0x60] sm:$0xff]
        %v2085 = vld [vmem:[%s10 + $0x68] sm:$0xff]
        %v2086 = vld [vmem:[%s10 + $0x70] sm:$0xff]
        %v2087 = vld [vmem:[%s10 + $0x78] sm:$0xff]
        %2088 = vmatprep.subr.mxu0 0.0
        %2089 = vmatpush1.msra.mxu0 %v2072
        %2090 = vmatprep.subr.mxu0 0.0
        %2091 = vmatpush1.msra.mxu0 %v2073
        %2092 = vmatprep.subr.mxu0 0.0
        %2093 = vmatpush1.msra.mxu0 %v2074
        %2094 = vmatprep.subr.mxu0 0.0
        %2095 = vmatpush1.msra.mxu0 %v2075
        %2096 = vmatprep.subr.mxu0 0.0
        %2097 = vmatpush1.msra.mxu0 %v2076
        %2098 = vmatprep.subr.mxu0 0.0
        %2099 = vmatpush1.msra.mxu0 %v2077
        %2100 = vmatprep.subr.mxu0 0.0
        %2101 = vmatpush1.msra.mxu0 %v2078
        %2102 = vmatprep.subr.mxu0 0.0
        %2103 = vmatpush1.msra.mxu0 %v2079
        %2104 = vmatprep.subr.mxu0 0.0
        %2105 = vmatpush1.msra.mxu0 %v2080
        %2106 = vmatprep.subr.mxu0 0.0
        %2107 = vmatpush1.msra.mxu0 %v2081
        %2108 = vmatprep.subr.mxu0 0.0
        %2109 = vmatpush1.msra.mxu0 %v2082
        %2110 = vmatprep.subr.mxu0 0.0
        %2111 = vmatpush1.msra.mxu0 %v2083
        %2112 = vmatprep.subr.mxu0 0.0
        %2113 = vmatpush1.msra.mxu0 %v2084
        %2114 = vmatprep.subr.mxu0 0.0
        %2115 = vmatpush1.msra.mxu0 %v2085
        %2116 = vmatprep.subr.mxu0 0.0
        %2117 = vmatpush1.msra.mxu0 %v2086
        %2118 = vmatprep.subr.mxu0 0.0
        %2119 = vmatpush1.msra.mxu0 %v2087
        %2120 = vmatprep.subr.mxu0 0.0
        %2121 = vmatpush1.msra.mxu0 0.0
        %2122 = vmatprep.subr.mxu0 0.0
        %2123 = vmatpush1.msra.mxu0 0.0
        %2124 = vmatprep.subr.mxu0 0.0
        %2125 = vmatpush1.msra.mxu0 0.0
        %2126 = vmatprep.subr.mxu0 0.0
        %2127 = vmatpush1.msra.mxu0 0.0
        %2128 = vmatprep.subr.mxu0 0.0
        %2129 = vmatpush1.msra.mxu0 0.0
        %2130 = vmatprep.subr.mxu0 0.0
        %2131 = vmatpush1.msra.mxu0 0.0
        %2132 = vmatprep.subr.mxu0 0.0
        %2133 = vmatpush1.msra.mxu0 0.0
        %2134 = vmatprep.subr.mxu0 0.0
        %2135 = vmatpush1.msra.mxu0 0.0
        %2136 = vmatprep.subr.mxu0 0.0
        %2137 = vmatpush1.msra.mxu0 0.0
        %2138 = vmatprep.subr.mxu0 0.0
        %2139 = vmatpush1.msra.mxu0 0.0
        %2140 = vmatprep.subr.mxu0 0.0
        %2141 = vmatpush1.msra.mxu0 0.0
        %2142 = vmatprep.subr.mxu0 0.0
        %2143 = vmatpush1.msra.mxu0 0.0
        %2144 = vmatprep.subr.mxu0 0.0
        %2145 = vmatpush1.msra.mxu0 0.0
        %2146 = vmatprep.subr.mxu0 0.0
        %2147 = vmatpush1.msra.mxu0 0.0
        %2148 = vmatprep.subr.mxu0 0.0
        %2149 = vmatpush1.msra.mxu0 0.0
        %2150 = vmatprep.subr.mxu0 0.0
        %2151 = vmatpush1.msra.mxu0 0.0
        %2152 = vmatprep.mubr.f32.mxu0 0.0
        %2153 = vmatmul.mubr.f32.gmra.mrb[0].mxu0 %v2071
        %v2154 = vpop.f32.mrb[0].mxu0
        %v2155 = vadd.f32 0.0, %v2154
        %v2156 = vpop.f32.mrb[0].mxu0
        %2157 = vdwg.mxu0
        %v2158 = vadd.f32 %v1957, %v2155
        %v2159 = vld [vmem:[%s11] sm:$0x1]
        %v2161 = vlaneseq
        %v2162 = vshrl.u32 %v2161, 7
        %v2163 = vsub.s32 0, %v2162
        %v2164 = vrot.slane %v2159, %v2163
        %v2166 = vadd.f32 %v2158, %v2164
        %s2167 = scalar_lea.vmem %s1, 1
        %v2168 = vld [vmem:[%s2167] sm:$0x1]
        %s2169 = scalar_lea.vmem %s2, 1
        %v2170 = vld [vmem:[%s2169] sm:$0x1]
        %v2171 = vsel %vm526, %v2166, 0.0
        %2172 = vadd.xlane.f32.xlu0 %v2171
        %v2173 = vpop.xlane.xlu0 %2172
        %v2174 = vmul.f32 %v2173, %v530
        %v2175 = vsub.f32 %v2166, %v2174
        %v2176 = vmul.f32 %v2175, %v2175
        %v2177 = vsel %vm526, %v2176, 0.0
        %2178 = vadd.xlane.f32.xlu0 %v2177
        %v2179 = vpop.xlane.xlu0 %2178
        %v2180 = vmul.f32 %v2179, %v530
        %v2181 = vadd.f32 %v2180, 1e-05
        %v2182 = vrsqrt.pop %v2181
        %v2183 = vmul.f32 %v2175, %v2182
        %v2185 = vlaneseq
        %v2186 = vshrl.u32 %v2185, 7
        %v2187 = vsub.s32 0, %v2186
        %v2188 = vrot.slane %v2168, %v2187
        %v2190 = vmul.f32 %v2183, %v2188
        %v2192 = vlaneseq
        %v2193 = vshrl.u32 %v2192, 7
        %v2194 = vsub.s32 0, %v2193
        %v2195 = vrot.slane %v2170, %v2194
        %v2197 = vadd.f32 %v2190, %v2195
        %s2198 = scalar_lea.vmem %s3, 32
        %v2199 = vld [vmem:[%s2198] sm:$0xff]
        %v2200 = vld [vmem:[%s2198 + $0x8] sm:$0xff]
        %v2201 = vld [vmem:[%s2198 + $0x10] sm:$0xff]
        %v2202 = vld [vmem:[%s2198 + $0x18] sm:$0xff]
        %v2204 = vsel %vm526, %v2197, 0
        %2206 = vmatprep.subr.mxu0 0.0
        %2207 = vmatpush1.msra.mxu0 %v2199
        %2208 = vmatprep.subr.mxu0 0.0
        %2209 = vmatpush1.msra.mxu0 %v2200
        %2210 = vmatprep.subr.mxu0 0.0
        %2211 = vmatpush1.msra.mxu0 %v2201
        %2212 = vmatprep.subr.mxu0 0.0
        %2213 = vmatpush1.msra.mxu0 %v2202
        %2214 = vmatprep.subr.mxu0 0.0
        %2215 = vmatpush1.msra.mxu0 0.0
        %2216 = vmatprep.subr.mxu0 0.0
        %2217 = vmatpush1.msra.mxu0 0.0
        %2218 = vmatprep.subr.mxu0 0.0
        %2219 = vmatpush1.msra.mxu0 0.0
        %2220 = vmatprep.subr.mxu0 0.0
        %2221 = vmatpush1.msra.mxu0 0.0
        %2222 = vmatprep.subr.mxu0 0.0
        %2223 = vmatpush1.msra.mxu0 0.0
        %2224 = vmatprep.subr.mxu0 0.0
        %2225 = vmatpush1.msra.mxu0 0.0
        %2226 = vmatprep.subr.mxu0 0.0
        %2227 = vmatpush1.msra.mxu0 0.0
        %2228 = vmatprep.subr.mxu0 0.0
        %2229 = vmatpush1.msra.mxu0 0.0
        %2230 = vmatprep.subr.mxu0 0.0
        %2231 = vmatpush1.msra.mxu0 0.0
        %2232 = vmatprep.subr.mxu0 0.0
        %2233 = vmatpush1.msra.mxu0 0.0
        %2234 = vmatprep.subr.mxu0 0.0
        %2235 = vmatpush1.msra.mxu0 0.0
        %2236 = vmatprep.subr.mxu0 0.0
        %2237 = vmatpush1.msra.mxu0 0.0
        %2238 = vmatprep.subr.mxu0 0.0
        %2239 = vmatpush1.msra.mxu0 0.0
        %2240 = vmatprep.subr.mxu0 0.0
        %2241 = vmatpush1.msra.mxu0 0.0
        %2242 = vmatprep.subr.mxu0 0.0
        %2243 = vmatpush1.msra.mxu0 0.0
        %2244 = vmatprep.subr.mxu0 0.0
        %2245 = vmatpush1.msra.mxu0 0.0
        %2246 = vmatprep.subr.mxu0 0.0
        %2247 = vmatpush1.msra.mxu0 0.0
        %2248 = vmatprep.subr.mxu0 0.0
        %2249 = vmatpush1.msra.mxu0 0.0
        %2250 = vmatprep.subr.mxu0 0.0
        %2251 = vmatpush1.msra.mxu0 0.0
        %2252 = vmatprep.subr.mxu0 0.0
        %2253 = vmatpush1.msra.mxu0 0.0
        %2254 = vmatprep.subr.mxu0 0.0
        %2255 = vmatpush1.msra.mxu0 0.0
        %2256 = vmatprep.subr.mxu0 0.0
        %2257 = vmatpush1.msra.mxu0 0.0
        %2258 = vmatprep.subr.mxu0 0.0
        %2259 = vmatpush1.msra.mxu0 0.0
        %2260 = vmatprep.subr.mxu0 0.0
        %2261 = vmatpush1.msra.mxu0 0.0
        %2262 = vmatprep.subr.mxu0 0.0
        %2263 = vmatpush1.msra.mxu0 0.0
        %2264 = vmatprep.subr.mxu0 0.0
        %2265 = vmatpush1.msra.mxu0 0.0
        %2266 = vmatprep.subr.mxu0 0.0
        %2267 = vmatpush1.msra.mxu0 0.0
        %2268 = vmatprep.subr.mxu0 0.0
        %2269 = vmatpush1.msra.mxu0 0.0
        %2270 = vmatprep.mubr.f32.mxu0 0.0
        %2271 = vmatmul.mubr.f32.gmra.mrb[0].mxu0 %v2204
        %v2272 = vpop.f32.mrb[0].mxu0
        %v2273 = vadd.f32 0.0, %v2272
        %v2274 = vpop.f32.mrb[0].mxu0
        %2275 = vdwg.mxu0
        %2277 = vrot.lane.b32.xlu0 %v2273, 120
        %v2278 = vpop.permute.xlu0 %2277
        %2280 = vrot.lane.b32.xlu0 %v2273, 112
        %v2281 = vpop.permute.xlu0 %2280
        %2283 = vrot.lane.b32.xlu0 %v2273, 104
        %v2284 = vpop.permute.xlu0 %2283
        %v2286 = vcombine.low %v2273, %v2281
        %v2287 = vcombine.high %v2273, %v2281
        %v2289 = vunpack.c.l.s4 1983009808
        %v2290 = vunpack.c.0.s8 %v2289
        %v2291 = vlaneseq
        %v2292 = vshrl.u32 %v2291, 7
        %v2293 = vsub.s32 %v2290, %v2292
        %v2294 = vrot.slane %v2286, %v2293
        %v2296 = vunpack.c.l.s4 1983009808
        %v2297 = vunpack.c.0.s8 %v2296
        %v2298 = vlaneseq
        %v2299 = vshrl.u32 %v2298, 7
        %v2300 = vsub.s32 %v2297, %v2299
        %v2301 = vrot.slane %v2287, %v2300
        %v2302 = vcombine.low %v2278, %v2284
        %v2303 = vcombine.high %v2278, %v2284
        %v2305 = vunpack.c.l.s4 1983009808
        %v2306 = vunpack.c.0.s8 %v2305
        %v2307 = vlaneseq
        %v2308 = vshrl.u32 %v2307, 7
        %v2309 = vsub.s32 %v2306, %v2308
        %v2310 = vrot.slane %v2302, %v2309
        %v2312 = vunpack.c.l.s4 1983009808
        %v2313 = vunpack.c.0.s8 %v2312
        %v2314 = vlaneseq
        %v2315 = vshrl.u32 %v2314, 7
        %v2316 = vsub.s32 %v2313, %v2315
        %v2317 = vrot.slane %v2303, %v2316
        %v2318 = vcombine.low %v2294, %v2310
        %v2319 = vcombine.high %v2294, %v2310
        %v2321 = vunpack.c.l.s4 1934713408
        %v2322 = vunpack.c.0.s8 %v2321
        %v2323 = vlaneseq
        %v2324 = vshrl.u32 %v2323, 7
        %v2325 = vsub.s32 %v2322, %v2324
        %v2326 = vrot.slane %v2318, %v2325
        %v2328 = vunpack.c.l.s4 1934713408
        %v2329 = vunpack.c.0.s8 %v2328
        %v2330 = vlaneseq
        %v2331 = vshrl.u32 %v2330, 7
        %v2332 = vsub.s32 %v2329, %v2331
        %v2333 = vrot.slane %v2319, %v2332
        %v2334 = vcombine.low %v2301, %v2317
        %v2335 = vcombine.high %v2301, %v2317
        %v2337 = vunpack.c.l.s4 1934713408
        %v2338 = vunpack.c.0.s8 %v2337
        %v2339 = vlaneseq
        %v2340 = vshrl.u32 %v2339, 7
        %v2341 = vsub.s32 %v2338, %v2340
        %v2342 = vrot.slane %v2334, %v2341
        %v2344 = vunpack.c.l.s4 1934713408
        %v2345 = vunpack.c.0.s8 %v2344
        %v2346 = vlaneseq
        %v2347 = vshrl.u32 %v2346, 7
        %v2348 = vsub.s32 %v2345, %v2347
        %v2349 = vrot.slane %v2335, %v2348
        %v2350 = vcombine.high %v2326, 0.0
        %v2351 = vcombine.high %v2333, 0.0
        %v2352 = vcombine.high %v2342, 0.0
        %v2353 = vcombine.high %v2349, 0.0
        %v2354 = vcombine.low %v2326, %v2333
        %v2356 = vunpack.c.l.s4 1983009808
        %v2357 = vunpack.c.0.s8 %v2356
        %v2358 = vlaneseq
        %v2359 = vshrl.u32 %v2358, 7
        %v2360 = vsub.s32 %v2357, %v2359
        %v2361 = vrot.slane %v2354, %v2360
        %v2362 = vcombine.low %v2350, %v2351
        %v2364 = vunpack.c.l.s4 1983009808
        %v2365 = vunpack.c.0.s8 %v2364
        %v2366 = vlaneseq
        %v2367 = vshrl.u32 %v2366, 7
        %v2368 = vsub.s32 %v2365, %v2367
        %v2369 = vrot.slane %v2362, %v2368
        %v2370 = vcombine.low %v2342, %v2349
        %v2372 = vunpack.c.l.s4 1983009808
        %v2373 = vunpack.c.0.s8 %v2372
        %v2374 = vlaneseq
        %v2375 = vshrl.u32 %v2374, 7
        %v2376 = vsub.s32 %v2373, %v2375
        %v2377 = vrot.slane %v2370, %v2376
        %v2378 = vcombine.low %v2352, %v2353
        %v2380 = vunpack.c.l.s4 1983009808
        %v2381 = vunpack.c.0.s8 %v2380
        %v2382 = vlaneseq
        %v2383 = vshrl.u32 %v2382, 7
        %v2384 = vsub.s32 %v2381, %v2383
        %v2385 = vrot.slane %v2378, %v2384
        %v2386 = vcombine.low %v2361, %v2369
        %v2387 = vcombine.high %v2361, %v2369
        %v2389 = vunpack.c.l.s4 1934713408
        %v2390 = vunpack.c.0.s8 %v2389
        %v2391 = vlaneseq
        %v2392 = vshrl.u32 %v2391, 7
        %v2393 = vsub.s32 %v2390, %v2392
        %v2394 = vrot.slane %v2386, %v2393
        %v2396 = vunpack.c.l.s4 1934713408
        %v2397 = vunpack.c.0.s8 %v2396
        %v2398 = vlaneseq
        %v2399 = vshrl.u32 %v2398, 7
        %v2400 = vsub.s32 %v2397, %v2399
        %v2401 = vrot.slane %v2387, %v2400
        %v2402 = vcombine.low %v2377, %v2385
        %v2403 = vcombine.high %v2377, %v2385
        %v2405 = vunpack.c.l.s4 1934713408
        %v2406 = vunpack.c.0.s8 %v2405
        %v2407 = vlaneseq
        %v2408 = vshrl.u32 %v2407, 7
        %v2409 = vsub.s32 %v2406, %v2408
        %v2410 = vrot.slane %v2402, %v2409
        %v2412 = vunpack.c.l.s4 1934713408
        %v2413 = vunpack.c.0.s8 %v2412
        %v2414 = vlaneseq
        %v2415 = vshrl.u32 %v2414, 7
        %v2416 = vsub.s32 %v2413, %v2415
        %v2417 = vrot.slane %v2403, %v2416
        %v2418 = vcombine.low %v2394, %v2410
        %v2419 = vcombine.high %v2394, %v2410
        %v2420 = vcombine.low %v2401, %v2417
        %v2421 = vcombine.high %v2401, %v2417
        %2422 = vrot.lane.b32.xlu0 %v2273, 96
        %v2423 = vpop.permute.xlu0 %2422
        %2424 = vrot.lane.b32.xlu0 %v2278, 96
        %v2425 = vpop.permute.xlu0 %2424
        %2426 = vrot.lane.b32.xlu0 %v2281, 96
        %v2427 = vpop.permute.xlu0 %2426
        %2428 = vrot.lane.b32.xlu0 %v2284, 96
        %v2429 = vpop.permute.xlu0 %2428
        %v2434 = vcombine.low %v2423, %v2427
        %v2435 = vcombine.high %v2423, %v2427
        %v2437 = vunpack.c.l.s4 1983009808
        %v2438 = vunpack.c.0.s8 %v2437
        %v2439 = vlaneseq
        %v2440 = vshrl.u32 %v2439, 7
        %v2441 = vsub.s32 %v2438, %v2440
        %v2442 = vrot.slane %v2434, %v2441
        %v2444 = vunpack.c.l.s4 1983009808
        %v2445 = vunpack.c.0.s8 %v2444
        %v2446 = vlaneseq
        %v2447 = vshrl.u32 %v2446, 7
        %v2448 = vsub.s32 %v2445, %v2447
        %v2449 = vrot.slane %v2435, %v2448
        %v2450 = vcombine.low %v2425, %v2429
        %v2451 = vcombine.high %v2425, %v2429
        %v2453 = vunpack.c.l.s4 1983009808
        %v2454 = vunpack.c.0.s8 %v2453
        %v2455 = vlaneseq
        %v2456 = vshrl.u32 %v2455, 7
        %v2457 = vsub.s32 %v2454, %v2456
        %v2458 = vrot.slane %v2450, %v2457
        %v2460 = vunpack.c.l.s4 1983009808
        %v2461 = vunpack.c.0.s8 %v2460
        %v2462 = vlaneseq
        %v2463 = vshrl.u32 %v2462, 7
        %v2464 = vsub.s32 %v2461, %v2463
        %v2465 = vrot.slane %v2451, %v2464
        %v2466 = vcombine.low %v2442, %v2458
        %v2467 = vcombine.high %v2442, %v2458
        %v2469 = vunpack.c.l.s4 1934713408
        %v2470 = vunpack.c.0.s8 %v2469
        %v2471 = vlaneseq
        %v2472 = vshrl.u32 %v2471, 7
        %v2473 = vsub.s32 %v2470, %v2472
        %v2474 = vrot.slane %v2466, %v2473
        %v2476 = vunpack.c.l.s4 1934713408
        %v2477 = vunpack.c.0.s8 %v2476
        %v2478 = vlaneseq
        %v2479 = vshrl.u32 %v2478, 7
        %v2480 = vsub.s32 %v2477, %v2479
        %v2481 = vrot.slane %v2467, %v2480
        %v2482 = vcombine.low %v2449, %v2465
        %v2483 = vcombine.high %v2449, %v2465
        %v2485 = vunpack.c.l.s4 1934713408
        %v2486 = vunpack.c.0.s8 %v2485
        %v2487 = vlaneseq
        %v2488 = vshrl.u32 %v2487, 7
        %v2489 = vsub.s32 %v2486, %v2488
        %v2490 = vrot.slane %v2482, %v2489
        %v2492 = vunpack.c.l.s4 1934713408
        %v2493 = vunpack.c.0.s8 %v2492
        %v2494 = vlaneseq
        %v2495 = vshrl.u32 %v2494, 7
        %v2496 = vsub.s32 %v2493, %v2495
        %v2497 = vrot.slane %v2483, %v2496
        %v2498 = vcombine.high %v2474, 0.0
        %v2499 = vcombine.high %v2481, 0.0
        %v2500 = vcombine.high %v2490, 0.0
        %v2501 = vcombine.high %v2497, 0.0
        %v2502 = vcombine.low %v2474, %v2481
        %v2504 = vunpack.c.l.s4 1983009808
        %v2505 = vunpack.c.0.s8 %v2504
        %v2506 = vlaneseq
        %v2507 = vshrl.u32 %v2506, 7
        %v2508 = vsub.s32 %v2505, %v2507
        %v2509 = vrot.slane %v2502, %v2508
        %v2510 = vcombine.low %v2498, %v2499
        %v2512 = vunpack.c.l.s4 1983009808
        %v2513 = vunpack.c.0.s8 %v2512
        %v2514 = vlaneseq
        %v2515 = vshrl.u32 %v2514, 7
        %v2516 = vsub.s32 %v2513, %v2515
        %v2517 = vrot.slane %v2510, %v2516
        %v2518 = vcombine.low %v2490, %v2497
        %v2520 = vunpack.c.l.s4 1983009808
        %v2521 = vunpack.c.0.s8 %v2520
        %v2522 = vlaneseq
        %v2523 = vshrl.u32 %v2522, 7
        %v2524 = vsub.s32 %v2521, %v2523
        %v2525 = vrot.slane %v2518, %v2524
        %v2526 = vcombine.low %v2500, %v2501
        %v2528 = vunpack.c.l.s4 1983009808
        %v2529 = vunpack.c.0.s8 %v2528
        %v2530 = vlaneseq
        %v2531 = vshrl.u32 %v2530, 7
        %v2532 = vsub.s32 %v2529, %v2531
        %v2533 = vrot.slane %v2526, %v2532
        %v2534 = vcombine.low %v2509, %v2517
        %v2535 = vcombine.high %v2509, %v2517
        %v2537 = vunpack.c.l.s4 1934713408
        %v2538 = vunpack.c.0.s8 %v2537
        %v2539 = vlaneseq
        %v2540 = vshrl.u32 %v2539, 7
        %v2541 = vsub.s32 %v2538, %v2540
        %v2542 = vrot.slane %v2534, %v2541
        %v2544 = vunpack.c.l.s4 1934713408
        %v2545 = vunpack.c.0.s8 %v2544
        %v2546 = vlaneseq
        %v2547 = vshrl.u32 %v2546, 7
        %v2548 = vsub.s32 %v2545, %v2547
        %v2549 = vrot.slane %v2535, %v2548
        %v2550 = vcombine.low %v2525, %v2533
        %v2551 = vcombine.high %v2525, %v2533
        %v2553 = vunpack.c.l.s4 1934713408
        %v2554 = vunpack.c.0.s8 %v2553
        %v2555 = vlaneseq
        %v2556 = vshrl.u32 %v2555, 7
        %v2557 = vsub.s32 %v2554, %v2556
        %v2558 = vrot.slane %v2550, %v2557
        %v2560 = vunpack.c.l.s4 1934713408
        %v2561 = vunpack.c.0.s8 %v2560
        %v2562 = vlaneseq
        %v2563 = vshrl.u32 %v2562, 7
        %v2564 = vsub.s32 %v2561, %v2563
        %v2565 = vrot.slane %v2551, %v2564
        %v2566 = vcombine.low %v2542, %v2558
        %v2567 = vcombine.high %v2542, %v2558
        %v2568 = vcombine.low %v2549, %v2565
        %v2569 = vcombine.high %v2549, %v2565
        %2570 = vrot.lane.b32.xlu0 %v2273, 64
        %v2571 = vpop.permute.xlu0 %2570
        %2572 = vrot.lane.b32.xlu0 %v2278, 64
        %v2573 = vpop.permute.xlu0 %2572
        %2574 = vrot.lane.b32.xlu0 %v2281, 64
        %v2575 = vpop.permute.xlu0 %2574
        %2576 = vrot.lane.b32.xlu0 %v2284, 64
        %v2577 = vpop.permute.xlu0 %2576
        %v2582 = vcombine.low %v2571, %v2575
        %v2583 = vcombine.high %v2571, %v2575
        %v2585 = vunpack.c.l.s4 1983009808
        %v2586 = vunpack.c.0.s8 %v2585
        %v2587 = vlaneseq
        %v2588 = vshrl.u32 %v2587, 7
        %v2589 = vsub.s32 %v2586, %v2588
        %v2590 = vrot.slane %v2582, %v2589
        %v2592 = vunpack.c.l.s4 1983009808
        %v2593 = vunpack.c.0.s8 %v2592
        %v2594 = vlaneseq
        %v2595 = vshrl.u32 %v2594, 7
        %v2596 = vsub.s32 %v2593, %v2595
        %v2597 = vrot.slane %v2583, %v2596
        %v2598 = vcombine.low %v2573, %v2577
        %v2599 = vcombine.high %v2573, %v2577
        %v2601 = vunpack.c.l.s4 1983009808
        %v2602 = vunpack.c.0.s8 %v2601
        %v2603 = vlaneseq
        %v2604 = vshrl.u32 %v2603, 7
        %v2605 = vsub.s32 %v2602, %v2604
        %v2606 = vrot.slane %v2598, %v2605
        %v2608 = vunpack.c.l.s4 1983009808
        %v2609 = vunpack.c.0.s8 %v2608
        %v2610 = vlaneseq
        %v2611 = vshrl.u32 %v2610, 7
        %v2612 = vsub.s32 %v2609, %v2611
        %v2613 = vrot.slane %v2599, %v2612
        %v2614 = vcombine.low %v2590, %v2606
        %v2615 = vcombine.high %v2590, %v2606
        %v2617 = vunpack.c.l.s4 1934713408
        %v2618 = vunpack.c.0.s8 %v2617
        %v2619 = vlaneseq
        %v2620 = vshrl.u32 %v2619, 7
        %v2621 = vsub.s32 %v2618, %v2620
        %v2622 = vrot.slane %v2614, %v2621
        %v2624 = vunpack.c.l.s4 1934713408
        %v2625 = vunpack.c.0.s8 %v2624
        %v2626 = vlaneseq
        %v2627 = vshrl.u32 %v2626, 7
        %v2628 = vsub.s32 %v2625, %v2627
        %v2629 = vrot.slane %v2615, %v2628
        %v2630 = vcombine.low %v2597, %v2613
        %v2631 = vcombine.high %v2597, %v2613
        %v2633 = vunpack.c.l.s4 1934713408
        %v2634 = vunpack.c.0.s8 %v2633
        %v2635 = vlaneseq
        %v2636 = vshrl.u32 %v2635, 7
        %v2637 = vsub.s32 %v2634, %v2636
        %v2638 = vrot.slane %v2630, %v2637
        %v2640 = vunpack.c.l.s4 1934713408
        %v2641 = vunpack.c.0.s8 %v2640
        %v2642 = vlaneseq
        %v2643 = vshrl.u32 %v2642, 7
        %v2644 = vsub.s32 %v2641, %v2643
        %v2645 = vrot.slane %v2631, %v2644
        %v2646 = vcombine.high %v2622, 0.0
        %v2647 = vcombine.high %v2629, 0.0
        %v2648 = vcombine.high %v2638, 0.0
        %v2649 = vcombine.high %v2645, 0.0
        %v2650 = vcombine.low %v2622, %v2629
        %v2652 = vunpack.c.l.s4 1983009808
        %v2653 = vunpack.c.0.s8 %v2652
        %v2654 = vlaneseq
        %v2655 = vshrl.u32 %v2654, 7
        %v2656 = vsub.s32 %v2653, %v2655
        %v2657 = vrot.slane %v2650, %v2656
        %v2658 = vcombine.low %v2646, %v2647
        %v2660 = vunpack.c.l.s4 1983009808
        %v2661 = vunpack.c.0.s8 %v2660
        %v2662 = vlaneseq
        %v2663 = vshrl.u32 %v2662, 7
        %v2664 = vsub.s32 %v2661, %v2663
        %v2665 = vrot.slane %v2658, %v2664
        %v2666 = vcombine.low %v2638, %v2645
        %v2668 = vunpack.c.l.s4 1983009808
        %v2669 = vunpack.c.0.s8 %v2668
        %v2670 = vlaneseq
        %v2671 = vshrl.u32 %v2670, 7
        %v2672 = vsub.s32 %v2669, %v2671
        %v2673 = vrot.slane %v2666, %v2672
        %v2674 = vcombine.low %v2648, %v2649
        %v2676 = vunpack.c.l.s4 1983009808
        %v2677 = vunpack.c.0.s8 %v2676
        %v2678 = vlaneseq
        %v2679 = vshrl.u32 %v2678, 7
        %v2680 = vsub.s32 %v2677, %v2679
        %v2681 = vrot.slane %v2674, %v2680
        %v2682 = vcombine.low %v2657, %v2665
        %v2683 = vcombine.high %v2657, %v2665
        %v2685 = vunpack.c.l.s4 1934713408
        %v2686 = vunpack.c.0.s8 %v2685
        %v2687 = vlaneseq
        %v2688 = vshrl.u32 %v2687, 7
        %v2689 = vsub.s32 %v2686, %v2688
        %v2690 = vrot.slane %v2682, %v2689
        %v2692 = vunpack.c.l.s4 1934713408
        %v2693 = vunpack.c.0.s8 %v2692
        %v2694 = vlaneseq
        %v2695 = vshrl.u32 %v2694, 7
        %v2696 = vsub.s32 %v2693, %v2695
        %v2697 = vrot.slane %v2683, %v2696
        %v2698 = vcombine.low %v2673, %v2681
        %v2699 = vcombine.high %v2673, %v2681
        %v2701 = vunpack.c.l.s4 1934713408
        %v2702 = vunpack.c.0.s8 %v2701
        %v2703 = vlaneseq
        %v2704 = vshrl.u32 %v2703, 7
        %v2705 = vsub.s32 %v2702, %v2704
        %v2706 = vrot.slane %v2698, %v2705
        %v2708 = vunpack.c.l.s4 1934713408
        %v2709 = vunpack.c.0.s8 %v2708
        %v2710 = vlaneseq
        %v2711 = vshrl.u32 %v2710, 7
        %v2712 = vsub.s32 %v2709, %v2711
        %v2713 = vrot.slane %v2699, %v2712
        %v2714 = vcombine.low %v2690, %v2706
        %v2715 = vcombine.high %v2690, %v2706
        %v2716 = vcombine.low %v2697, %v2713
        %v2717 = vcombine.high %v2697, %v2713
        %v2719 = vsel %vm1074, %v2418, 0
        %v2722 = vsel %vm1074, %v2566, 0
        %2724 = vmatprep.subr.mxu0 0.0
        %2725 = vmatpush1.xpose.msra.mxu0 %v2722
        %2726 = vmatprep.subr.mxu0 0.0
        %2727 = vmatpush1.xpose.msra.mxu0 0.0
        %2728 = vmatprep.subr.mxu0 0.0
        %2729 = vmatpush1.xpose.msra.mxu0 0.0
        %2730 = vmatprep.subr.mxu0 0.0
        %2731 = vmatpush1.xpose.msra.mxu0 0.0
        %2732 = vmatprep.subr.mxu0 0.0
        %2733 = vmatpush1.xpose.msra.mxu0 0.0
        %2734 = vmatprep.subr.mxu0 0.0
        %2735 = vmatpush1.xpose.msra.mxu0 0.0
        %2736 = vmatprep.subr.mxu0 0.0
        %2737 = vmatpush1.xpose.msra.mxu0 0.0
        %2738 = vmatprep.subr.mxu0 0.0
        %2739 = vmatpush1.xpose.msra.mxu0 0.0
        %2740 = vmatprep.subr.mxu0 0.0
        %2741 = vmatpush1.xpose.msra.mxu0 0.0
        %2742 = vmatprep.subr.mxu0 0.0
        %2743 = vmatpush1.xpose.msra.mxu0 0.0
        %2744 = vmatprep.subr.mxu0 0.0
        %2745 = vmatpush1.xpose.msra.mxu0 0.0
        %2746 = vmatprep.subr.mxu0 0.0
        %2747 = vmatpush1.xpose.msra.mxu0 0.0
        %2748 = vmatprep.subr.mxu0 0.0
        %2749 = vmatpush1.xpose.msra.mxu0 0.0
        %2750 = vmatprep.subr.mxu0 0.0
        %2751 = vmatpush1.xpose.msra.mxu0 0.0
        %2752 = vmatprep.subr.mxu0 0.0
        %2753 = vmatpush1.xpose.msra.mxu0 0.0
        %2754 = vmatprep.subr.mxu0 0.0
        %2755 = vmatpush1.xpose.msra.mxu0 0.0
        %2756 = vmatprep.subr.mxu0 0.0
        %2757 = vmatpush1.xpose.msra.mxu0 0.0
        %2758 = vmatprep.subr.mxu0 0.0
        %2759 = vmatpush1.xpose.msra.mxu0 0.0
        %2760 = vmatprep.subr.mxu0 0.0
        %2761 = vmatpush1.xpose.msra.mxu0 0.0
        %2762 = vmatprep.subr.mxu0 0.0
        %2763 = vmatpush1.xpose.msra.mxu0 0.0
        %2764 = vmatprep.subr.mxu0 0.0
        %2765 = vmatpush1.xpose.msra.mxu0 0.0
        %2766 = vmatprep.subr.mxu0 0.0
        %2767 = vmatpush1.xpose.msra.mxu0 0.0
        %2768 = vmatprep.subr.mxu0 0.0
        %2769 = vmatpush1.xpose.msra.mxu0 0.0
        %2770 = vmatprep.subr.mxu0 0.0
        %2771 = vmatpush1.xpose.msra.mxu0 0.0
        %2772 = vmatprep.subr.mxu0 0.0
        %2773 = vmatpush1.xpose.msra.mxu0 0.0
        %2774 = vmatprep.subr.mxu0 0.0
        %2775 = vmatpush1.xpose.msra.mxu0 0.0
        %2776 = vmatprep.subr.mxu0 0.0
        %2777 = vmatpush1.xpose.msra.mxu0 0.0
        %2778 = vmatprep.subr.mxu0 0.0
        %2779 = vmatpush1.xpose.msra.mxu0 0.0
        %2780 = vmatprep.subr.mxu0 0.0
        %2781 = vmatpush1.xpose.msra.mxu0 0.0
        %2782 = vmatprep.subr.mxu0 0.0
        %2783 = vmatpush1.xpose.msra.mxu0 0.0
        %2784 = vmatprep.subr.mxu0 0.0
        %2785 = vmatpush1.xpose.msra.mxu0 0.0
        %2786 = vmatprep.subr.mxu0 0.0
        %2787 = vmatpush1.xpose.msra.mxu0 0.0
        %2788 = vmatprep.mubr.f32.mxu0 0.0
        %2789 = vmatmul.mubr.f32.gmra.mrb[0].mxu0 %v2719
        %v2790 = vpop.f32.mrb[0].mxu0
        %v2791 = vadd.f32 %v523, %v2790
        %v2792 = vpop.f32.mrb[0].mxu0
        %2793 = vdwg.mxu0
        %v2795 = vsel %vm1074, %v2419, 0
        %v2798 = vsel %vm1074, %v2567, 0
        %2800 = vmatprep.subr.mxu0 0.0
        %2801 = vmatpush1.xpose.msra.mxu0 %v2798
        %2802 = vmatprep.subr.mxu0 0.0
        %2803 = vmatpush1.xpose.msra.mxu0 0.0
        %2804 = vmatprep.subr.mxu0 0.0
        %2805 = vmatpush1.xpose.msra.mxu0 0.0
        %2806 = vmatprep.subr.mxu0 0.0
        %2807 = vmatpush1.xpose.msra.mxu0 0.0
        %2808 = vmatprep.subr.mxu0 0.0
        %2809 = vmatpush1.xpose.msra.mxu0 0.0
        %2810 = vmatprep.subr.mxu0 0.0
        %2811 = vmatpush1.xpose.msra.mxu0 0.0
        %2812 = vmatprep.subr.mxu0 0.0
        %2813 = vmatpush1.xpose.msra.mxu0 0.0
        %2814 = vmatprep.subr.mxu0 0.0
        %2815 = vmatpush1.xpose.msra.mxu0 0.0
        %2816 = vmatprep.subr.mxu0 0.0
        %2817 = vmatpush1.xpose.msra.mxu0 0.0
        %2818 = vmatprep.subr.mxu0 0.0
        %2819 = vmatpush1.xpose.msra.mxu0 0.0
        %2820 = vmatprep.subr.mxu0 0.0
        %2821 = vmatpush1.xpose.msra.mxu0 0.0
        %2822 = vmatprep.subr.mxu0 0.0
        %2823 = vmatpush1.xpose.msra.mxu0 0.0
        %2824 = vmatprep.subr.mxu0 0.0
        %2825 = vmatpush1.xpose.msra.mxu0 0.0
        %2826 = vmatprep.subr.mxu0 0.0
        %2827 = vmatpush1.xpose.msra.mxu0 0.0
        %2828 = vmatprep.subr.mxu0 0.0
        %2829 = vmatpush1.xpose.msra.mxu0 0.0
        %2830 = vmatprep.subr.mxu0 0.0
        %2831 = vmatpush1.xpose.msra.mxu0 0.0
        %2832 = vmatprep.subr.mxu0 0.0
        %2833 = vmatpush1.xpose.msra.mxu0 0.0
        %2834 = vmatprep.subr.mxu0 0.0
        %2835 = vmatpush1.xpose.msra.mxu0 0.0
        %2836 = vmatprep.subr.mxu0 0.0
        %2837 = vmatpush1.xpose.msra.mxu0 0.0
        %2838 = vmatprep.subr.mxu0 0.0
        %2839 = vmatpush1.xpose.msra.mxu0 0.0
        %2840 = vmatprep.subr.mxu0 0.0
        %2841 = vmatpush1.xpose.msra.mxu0 0.0
        %2842 = vmatprep.subr.mxu0 0.0
        %2843 = vmatpush1.xpose.msra.mxu0 0.0
        %2844 = vmatprep.subr.mxu0 0.0
        %2845 = vmatpush1.xpose.msra.mxu0 0.0
        %2846 = vmatprep.subr.mxu0 0.0
        %2847 = vmatpush1.xpose.msra.mxu0 0.0
        %2848 = vmatprep.subr.mxu0 0.0
        %2849 = vmatpush1.xpose.msra.mxu0 0.0
        %2850 = vmatprep.subr.mxu0 0.0
        %2851 = vmatpush1.xpose.msra.mxu0 0.0
        %2852 = vmatprep.subr.mxu0 0.0
        %2853 = vmatpush1.xpose.msra.mxu0 0.0
        %2854 = vmatprep.subr.mxu0 0.0
        %2855 = vmatpush1.xpose.msra.mxu0 0.0
        %2856 = vmatprep.subr.mxu0 0.0
        %2857 = vmatpush1.xpose.msra.mxu0 0.0
        %2858 = vmatprep.subr.mxu0 0.0
        %2859 = vmatpush1.xpose.msra.mxu0 0.0
        %2860 = vmatprep.subr.mxu0 0.0
        %2861 = vmatpush1.xpose.msra.mxu0 0.0
        %2862 = vmatprep.subr.mxu0 0.0
        %2863 = vmatpush1.xpose.msra.mxu0 0.0
        %2864 = vmatprep.mubr.f32.mxu0 0.0
        %2865 = vmatmul.mubr.f32.gmra.mrb[0].mxu0 %v2795
        %v2866 = vpop.f32.mrb[0].mxu0
        %v2867 = vadd.f32 %v523, %v2866
        %v2868 = vpop.f32.mrb[0].mxu0
        %2869 = vdwg.mxu0
        %v2871 = vsel %vm1074, %v2420, 0
        %v2874 = vsel %vm1074, %v2568, 0
        %2876 = vmatprep.subr.mxu0 0.0
        %2877 = vmatpush1.xpose.msra.mxu0 %v2874
        %2878 = vmatprep.subr.mxu0 0.0
        %2879 = vmatpush1.xpose.msra.mxu0 0.0
        %2880 = vmatprep.subr.mxu0 0.0
        %2881 = vmatpush1.xpose.msra.mxu0 0.0
        %2882 = vmatprep.subr.mxu0 0.0
        %2883 = vmatpush1.xpose.msra.mxu0 0.0
        %2884 = vmatprep.subr.mxu0 0.0
        %2885 = vmatpush1.xpose.msra.mxu0 0.0
        %2886 = vmatprep.subr.mxu0 0.0
        %2887 = vmatpush1.xpose.msra.mxu0 0.0
        %2888 = vmatprep.subr.mxu0 0.0
        %2889 = vmatpush1.xpose.msra.mxu0 0.0
        %2890 = vmatprep.subr.mxu0 0.0
        %2891 = vmatpush1.xpose.msra.mxu0 0.0
        %2892 = vmatprep.subr.mxu0 0.0
        %2893 = vmatpush1.xpose.msra.mxu0 0.0
        %2894 = vmatprep.subr.mxu0 0.0
        %2895 = vmatpush1.xpose.msra.mxu0 0.0
        %2896 = vmatprep.subr.mxu0 0.0
        %2897 = vmatpush1.xpose.msra.mxu0 0.0
        %2898 = vmatprep.subr.mxu0 0.0
        %2899 = vmatpush1.xpose.msra.mxu0 0.0
        %2900 = vmatprep.subr.mxu0 0.0
        %2901 = vmatpush1.xpose.msra.mxu0 0.0
        %2902 = vmatprep.subr.mxu0 0.0
        %2903 = vmatpush1.xpose.msra.mxu0 0.0
        %2904 = vmatprep.subr.mxu0 0.0
        %2905 = vmatpush1.xpose.msra.mxu0 0.0
        %2906 = vmatprep.subr.mxu0 0.0
        %2907 = vmatpush1.xpose.msra.mxu0 0.0
        %2908 = vmatprep.subr.mxu0 0.0
        %2909 = vmatpush1.xpose.msra.mxu0 0.0
        %2910 = vmatprep.subr.mxu0 0.0
        %2911 = vmatpush1.xpose.msra.mxu0 0.0
        %2912 = vmatprep.subr.mxu0 0.0
        %2913 = vmatpush1.xpose.msra.mxu0 0.0
        %2914 = vmatprep.subr.mxu0 0.0
        %2915 = vmatpush1.xpose.msra.mxu0 0.0
        %2916 = vmatprep.subr.mxu0 0.0
        %2917 = vmatpush1.xpose.msra.mxu0 0.0
        %2918 = vmatprep.subr.mxu0 0.0
        %2919 = vmatpush1.xpose.msra.mxu0 0.0
        %2920 = vmatprep.subr.mxu0 0.0
        %2921 = vmatpush1.xpose.msra.mxu0 0.0
        %2922 = vmatprep.subr.mxu0 0.0
        %2923 = vmatpush1.xpose.msra.mxu0 0.0
        %2924 = vmatprep.subr.mxu0 0.0
        %2925 = vmatpush1.xpose.msra.mxu0 0.0
        %2926 = vmatprep.subr.mxu0 0.0
        %2927 = vmatpush1.xpose.msra.mxu0 0.0
        %2928 = vmatprep.subr.mxu0 0.0
        %2929 = vmatpush1.xpose.msra.mxu0 0.0
        %2930 = vmatprep.subr.mxu0 0.0
        %2931 = vmatpush1.xpose.msra.mxu0 0.0
        %2932 = vmatprep.subr.mxu0 0.0
        %2933 = vmatpush1.xpose.msra.mxu0 0.0
        %2934 = vmatprep.subr.mxu0 0.0
        %2935 = vmatpush1.xpose.msra.mxu0 0.0
        %2936 = vmatprep.subr.mxu0 0.0
        %2937 = vmatpush1.xpose.msra.mxu0 0.0
        %2938 = vmatprep.subr.mxu0 0.0
        %2939 = vmatpush1.xpose.msra.mxu0 0.0
        %2940 = vmatprep.mubr.f32.mxu0 0.0
        %2941 = vmatmul.mubr.f32.gmra.mrb[0].mxu0 %v2871
        %v2942 = vpop.f32.mrb[0].mxu0
        %v2943 = vadd.f32 %v523, %v2942
        %v2944 = vpop.f32.mrb[0].mxu0
        %2945 = vdwg.mxu0
        %v2947 = vsel %vm1074, %v2421, 0
        %v2950 = vsel %vm1074, %v2569, 0
        %2952 = vmatprep.subr.mxu0 0.0
        %2953 = vmatpush1.xpose.msra.mxu0 %v2950
        %2954 = vmatprep.subr.mxu0 0.0
        %2955 = vmatpush1.xpose.msra.mxu0 0.0
        %2956 = vmatprep.subr.mxu0 0.0
        %2957 = vmatpush1.xpose.msra.mxu0 0.0
        %2958 = vmatprep.subr.mxu0 0.0
        %2959 = vmatpush1.xpose.msra.mxu0 0.0
        %2960 = vmatprep.subr.mxu0 0.0
        %2961 = vmatpush1.xpose.msra.mxu0 0.0
        %2962 = vmatprep.subr.mxu0 0.0
        %2963 = vmatpush1.xpose.msra.mxu0 0.0
        %2964 = vmatprep.subr.mxu0 0.0
        %2965 = vmatpush1.xpose.msra.mxu0 0.0
        %2966 = vmatprep.subr.mxu0 0.0
        %2967 = vmatpush1.xpose.msra.mxu0 0.0
        %2968 = vmatprep.subr.mxu0 0.0
        %2969 = vmatpush1.xpose.msra.mxu0 0.0
        %2970 = vmatprep.subr.mxu0 0.0
        %2971 = vmatpush1.xpose.msra.mxu0 0.0
        %2972 = vmatprep.subr.mxu0 0.0
        %2973 = vmatpush1.xpose.msra.mxu0 0.0
        %2974 = vmatprep.subr.mxu0 0.0
        %2975 = vmatpush1.xpose.msra.mxu0 0.0
        %2976 = vmatprep.subr.mxu0 0.0
        %2977 = vmatpush1.xpose.msra.mxu0 0.0
        %2978 = vmatprep.subr.mxu0 0.0
        %2979 = vmatpush1.xpose.msra.mxu0 0.0
        %2980 = vmatprep.subr.mxu0 0.0
        %2981 = vmatpush1.xpose.msra.mxu0 0.0
        %2982 = vmatprep.subr.mxu0 0.0
        %2983 = vmatpush1.xpose.msra.mxu0 0.0
        %2984 = vmatprep.subr.mxu0 0.0
        %2985 = vmatpush1.xpose.msra.mxu0 0.0
        %2986 = vmatprep.subr.mxu0 0.0
        %2987 = vmatpush1.xpose.msra.mxu0 0.0
        %2988 = vmatprep.subr.mxu0 0.0
        %2989 = vmatpush1.xpose.msra.mxu0 0.0
        %2990 = vmatprep.subr.mxu0 0.0
        %2991 = vmatpush1.xpose.msra.mxu0 0.0
        %2992 = vmatprep.subr.mxu0 0.0
        %2993 = vmatpush1.xpose.msra.mxu0 0.0
        %2994 = vmatprep.subr.mxu0 0.0
        %2995 = vmatpush1.xpose.msra.mxu0 0.0
        %2996 = vmatprep.subr.mxu0 0.0
        %2997 = vmatpush1.xpose.msra.mxu0 0.0
        %2998 = vmatprep.subr.mxu0 0.0
        %2999 = vmatpush1.xpose.msra.mxu0 0.0
        %3000 = vmatprep.subr.mxu0 0.0
        %3001 = vmatpush1.xpose.msra.mxu0 0.0
        %3002 = vmatprep.subr.mxu0 0.0
        %3003 = vmatpush1.xpose.msra.mxu0 0.0
        %3004 = vmatprep.subr.mxu0 0.0
        %3005 = vmatpush1.xpose.msra.mxu0 0.0
        %3006 = vmatprep.subr.mxu0 0.0
        %3007 = vmatpush1.xpose.msra.mxu0 0.0
        %3008 = vmatprep.subr.mxu0 0.0
        %3009 = vmatpush1.xpose.msra.mxu0 0.0
        %3010 = vmatprep.subr.mxu0 0.0
        %3011 = vmatpush1.xpose.msra.mxu0 0.0
        %3012 = vmatprep.subr.mxu0 0.0
        %3013 = vmatpush1.xpose.msra.mxu0 0.0
        %3014 = vmatprep.subr.mxu0 0.0
        %3015 = vmatpush1.xpose.msra.mxu0 0.0
        %3016 = vmatprep.mubr.f32.mxu0 0.0
        %3017 = vmatmul.mubr.f32.gmra.mrb[0].mxu0 %v2947
        %v3018 = vpop.f32.mrb[0].mxu0
        %v3019 = vadd.f32 %v523, %v3018
        %v3020 = vpop.f32.mrb[0].mxu0
        %3021 = vdwg.mxu0
        %v3022 = vsel %vm1074, %v2791, -inf
        %3023 = vmax.xlane.f32.xlu0 %v3022
        %v3024 = vpop.xlane.xlu0 %3023
        %v3025 = vsel %vm1074, %v2867, -inf
        %3026 = vmax.xlane.f32.xlu0 %v3025
        %v3027 = vpop.xlane.xlu0 %3026
        %v3028 = vsel %vm1074, %v2943, -inf
        %3029 = vmax.xlane.f32.xlu0 %v3028
        %v3030 = vpop.xlane.xlu0 %3029
        %v3031 = vsel %vm1074, %v3019, -inf
        %3032 = vmax.xlane.f32.xlu0 %v3031
        %v3033 = vpop.xlane.xlu0 %3032
        %v3034 = vsub.f32 %v2791, %v3024
        %v3035 = vsub.f32 %v2867, %v3027
        %v3036 = vsub.f32 %v2943, %v3030
        %v3037 = vsub.f32 %v3019, %v3033
        %v3038 = vmul.f32 %v3034, 1.442695
        %v3039 = vpow.pop %v3038
        %v3040 = vmul.f32 %v3035, 1.442695
        %v3041 = vpow.pop %v3040
        %v3042 = vmul.f32 %v3036, 1.442695
        %v3043 = vpow.pop %v3042
        %v3044 = vmul.f32 %v3037, 1.442695
        %v3045 = vpow.pop %v3044
        %v3046 = vsel %vm1074, %v3039, 0.0
        %3047 = vadd.xlane.f32.xlu0 %v3046
        %v3048 = vpop.xlane.xlu0 %3047
        %v3049 = vsel %vm1074, %v3041, 0.0
        %3050 = vadd.xlane.f32.xlu0 %v3049
        %v3051 = vpop.xlane.xlu0 %3050
        %v3052 = vsel %vm1074, %v3043, 0.0
        %3053 = vadd.xlane.f32.xlu0 %v3052
        %v3054 = vpop.xlane.xlu0 %3053
        %v3055 = vsel %vm1074, %v3045, 0.0
        %3056 = vadd.xlane.f32.xlu0 %v3055
        %v3057 = vpop.xlane.xlu0 %3056
        %v3058 = vrcp.pop %v3048
        %v3059 = vmul.f32 1.0, %v3058
        %v3060 = vrcp.pop %v3051
        %v3061 = vmul.f32 1.0, %v3060
        %v3062 = vrcp.pop %v3054
        %v3063 = vmul.f32 1.0, %v3062
        %v3064 = vrcp.pop %v3057
        %v3065 = vmul.f32 1.0, %v3064
        %v3066 = vmul.f32 %v3039, %v3059
        %v3067 = vmul.f32 %v3041, %v3061
        %v3068 = vmul.f32 %v3043, %v3063
        %v3069 = vmul.f32 %v3045, %v3065
        %v3071 = vsel %vm1074, %v3066, 0
        %3073 = vmatprep.subr.mxu0 0.0
        %3074 = vmatpush1.msra.mxu0 %v2714
        %3075 = vmatprep.subr.mxu0 0.0
        %3076 = vmatpush1.msra.mxu0 0.0
        %3077 = vmatprep.subr.mxu0 0.0
        %3078 = vmatpush1.msra.mxu0 0.0
        %3079 = vmatprep.subr.mxu0 0.0
        %3080 = vmatpush1.msra.mxu0 0.0
        %3081 = vmatprep.subr.mxu0 0.0
        %3082 = vmatpush1.msra.mxu0 0.0
        %3083 = vmatprep.subr.mxu0 0.0
        %3084 = vmatpush1.msra.mxu0 0.0
        %3085 = vmatprep.subr.mxu0 0.0
        %3086 = vmatpush1.msra.mxu0 0.0
        %3087 = vmatprep.subr.mxu0 0.0
        %3088 = vmatpush1.msra.mxu0 0.0
        %3089 = vmatprep.subr.mxu0 0.0
        %3090 = vmatpush1.msra.mxu0 0.0
        %3091 = vmatprep.subr.mxu0 0.0
        %3092 = vmatpush1.msra.mxu0 0.0
        %3093 = vmatprep.subr.mxu0 0.0
        %3094 = vmatpush1.msra.mxu0 0.0
        %3095 = vmatprep.subr.mxu0 0.0
        %3096 = vmatpush1.msra.mxu0 0.0
        %3097 = vmatprep.subr.mxu0 0.0
        %3098 = vmatpush1.msra.mxu0 0.0
        %3099 = vmatprep.subr.mxu0 0.0
        %3100 = vmatpush1.msra.mxu0 0.0
        %3101 = vmatprep.subr.mxu0 0.0
        %3102 = vmatpush1.msra.mxu0 0.0
        %3103 = vmatprep.subr.mxu0 0.0
        %3104 = vmatpush1.msra.mxu0 0.0
        %3105 = vmatprep.subr.mxu0 0.0
        %3106 = vmatpush1.msra.mxu0 0.0
        %3107 = vmatprep.subr.mxu0 0.0
        %3108 = vmatpush1.msra.mxu0 0.0
        %3109 = vmatprep.subr.mxu0 0.0
        %3110 = vmatpush1.msra.mxu0 0.0
        %3111 = vmatprep.subr.mxu0 0.0
        %3112 = vmatpush1.msra.mxu0 0.0
        %3113 = vmatprep.subr.mxu0 0.0
        %3114 = vmatpush1.msra.mxu0 0.0
        %3115 = vmatprep.subr.mxu0 0.0
        %3116 = vmatpush1.msra.mxu0 0.0
        %3117 = vmatprep.subr.mxu0 0.0
        %3118 = vmatpush1.msra.mxu0 0.0
        %3119 = vmatprep.subr.mxu0 0.0
        %3120 = vmatpush1.msra.mxu0 0.0
        %3121 = vmatprep.subr.mxu0 0.0
        %3122 = vmatpush1.msra.mxu0 0.0
        %3123 = vmatprep.subr.mxu0 0.0
        %3124 = vmatpush1.msra.mxu0 0.0
        %3125 = vmatprep.subr.mxu0 0.0
        %3126 = vmatpush1.msra.mxu0 0.0
        %3127 = vmatprep.subr.mxu0 0.0
        %3128 = vmatpush1.msra.mxu0 0.0
        %3129 = vmatprep.subr.mxu0 0.0
        %3130 = vmatpush1.msra.mxu0 0.0
        %3131 = vmatprep.subr.mxu0 0.0
        %3132 = vmatpush1.msra.mxu0 0.0
        %3133 = vmatprep.subr.mxu0 0.0
        %3134 = vmatpush1.msra.mxu0 0.0
        %3135 = vmatprep.subr.mxu0 0.0
        %3136 = vmatpush1.msra.mxu0 0.0
        %3137 = vmatprep.mubr.f32.mxu0 0.0
        %3138 = vmatmul.mubr.f32.gmra.mrb[0].mxu0 %v3071
        %v3139 = vpop.f32.mrb[0].mxu0
        %v3140 = vadd.f32 0.0, %v3139
        %v3141 = vpop.f32.mrb[0].mxu0
        %3142 = vdwg.mxu0
        %v3144 = vsel %vm1074, %v3067, 0
        %3146 = vmatprep.subr.mxu0 0.0
        %3147 = vmatpush1.msra.mxu0 %v2715
        %3148 = vmatprep.subr.mxu0 0.0
        %3149 = vmatpush1.msra.mxu0 0.0
        %3150 = vmatprep.subr.mxu0 0.0
        %3151 = vmatpush1.msra.mxu0 0.0
        %3152 = vmatprep.subr.mxu0 0.0
        %3153 = vmatpush1.msra.mxu0 0.0
        %3154 = vmatprep.subr.mxu0 0.0
        %3155 = vmatpush1.msra.mxu0 0.0
        %3156 = vmatprep.subr.mxu0 0.0
        %3157 = vmatpush1.msra.mxu0 0.0
        %3158 = vmatprep.subr.mxu0 0.0
        %3159 = vmatpush1.msra.mxu0 0.0
        %3160 = vmatprep.subr.mxu0 0.0
        %3161 = vmatpush1.msra.mxu0 0.0
        %3162 = vmatprep.subr.mxu0 0.0
        %3163 = vmatpush1.msra.mxu0 0.0
        %3164 = vmatprep.subr.mxu0 0.0
        %3165 = vmatpush1.msra.mxu0 0.0
        %3166 = vmatprep.subr.mxu0 0.0
        %3167 = vmatpush1.msra.mxu0 0.0
        %3168 = vmatprep.subr.mxu0 0.0
        %3169 = vmatpush1.msra.mxu0 0.0
        %3170 = vmatprep.subr.mxu0 0.0
        %3171 = vmatpush1.msra.mxu0 0.0
        %3172 = vmatprep.subr.mxu0 0.0
        %3173 = vmatpush1.msra.mxu0 0.0
        %3174 = vmatprep.subr.mxu0 0.0
        %3175 = vmatpush1.msra.mxu0 0.0
        %3176 = vmatprep.subr.mxu0 0.0
        %3177 = vmatpush1.msra.mxu0 0.0
        %3178 = vmatprep.subr.mxu0 0.0
        %3179 = vmatpush1.msra.mxu0 0.0
        %3180 = vmatprep.subr.mxu0 0.0
        %3181 = vmatpush1.msra.mxu0 0.0
        %3182 = vmatprep.subr.mxu0 0.0
        %3183 = vmatpush1.msra.mxu0 0.0
        %3184 = vmatprep.subr.mxu0 0.0
        %3185 = vmatpush1.msra.mxu0 0.0
        %3186 = vmatprep.subr.mxu0 0.0
        %3187 = vmatpush1.msra.mxu0 0.0
        %3188 = vmatprep.subr.mxu0 0.0
        %3189 = vmatpush1.msra.mxu0 0.0
        %3190 = vmatprep.subr.mxu0 0.0
        %3191 = vmatpush1.msra.mxu0 0.0
        %3192 = vmatprep.subr.mxu0 0.0
        %3193 = vmatpush1.msra.mxu0 0.0
        %3194 = vmatprep.subr.mxu0 0.0
        %3195 = vmatpush1.msra.mxu0 0.0
        %3196 = vmatprep.subr.mxu0 0.0
        %3197 = vmatpush1.msra.mxu0 0.0
        %3198 = vmatprep.subr.mxu0 0.0
        %3199 = vmatpush1.msra.mxu0 0.0
        %3200 = vmatprep.subr.mxu0 0.0
        %3201 = vmatpush1.msra.mxu0 0.0
        %3202 = vmatprep.subr.mxu0 0.0
        %3203 = vmatpush1.msra.mxu0 0.0
        %3204 = vmatprep.subr.mxu0 0.0
        %3205 = vmatpush1.msra.mxu0 0.0
        %3206 = vmatprep.subr.mxu0 0.0
        %3207 = vmatpush1.msra.mxu0 0.0
        %3208 = vmatprep.subr.mxu0 0.0
        %3209 = vmatpush1.msra.mxu0 0.0
        %3210 = vmatprep.mubr.f32.mxu0 0.0
        %3211 = vmatmul.mubr.f32.gmra.mrb[0].mxu0 %v3144
        %v3212 = vpop.f32.mrb[0].mxu0
        %v3213 = vadd.f32 0.0, %v3212
        %v3214 = vpop.f32.mrb[0].mxu0
        %3215 = vdwg.mxu0
        %v3217 = vsel %vm1074, %v3068, 0
        %3219 = vmatprep.subr.mxu0 0.0
        %3220 = vmatpush1.msra.mxu0 %v2716
        %3221 = vmatprep.subr.mxu0 0.0
        %3222 = vmatpush1.msra.mxu0 0.0
        %3223 = vmatprep.subr.mxu0 0.0
        %3224 = vmatpush1.msra.mxu0 0.0
        %3225 = vmatprep.subr.mxu0 0.0
        %3226 = vmatpush1.msra.mxu0 0.0
        %3227 = vmatprep.subr.mxu0 0.0
        %3228 = vmatpush1.msra.mxu0 0.0
        %3229 = vmatprep.subr.mxu0 0.0
        %3230 = vmatpush1.msra.mxu0 0.0
        %3231 = vmatprep.subr.mxu0 0.0
        %3232 = vmatpush1.msra.mxu0 0.0
        %3233 = vmatprep.subr.mxu0 0.0
        %3234 = vmatpush1.msra.mxu0 0.0
        %3235 = vmatprep.subr.mxu0 0.0
        %3236 = vmatpush1.msra.mxu0 0.0
        %3237 = vmatprep.subr.mxu0 0.0
        %3238 = vmatpush1.msra.mxu0 0.0
        %3239 = vmatprep.subr.mxu0 0.0
        %3240 = vmatpush1.msra.mxu0 0.0
        %3241 = vmatprep.subr.mxu0 0.0
        %3242 = vmatpush1.msra.mxu0 0.0
        %3243 = vmatprep.subr.mxu0 0.0
        %3244 = vmatpush1.msra.mxu0 0.0
        %3245 = vmatprep.subr.mxu0 0.0
        %3246 = vmatpush1.msra.mxu0 0.0
        %3247 = vmatprep.subr.mxu0 0.0
        %3248 = vmatpush1.msra.mxu0 0.0
        %3249 = vmatprep.subr.mxu0 0.0
        %3250 = vmatpush1.msra.mxu0 0.0
        %3251 = vmatprep.subr.mxu0 0.0
        %3252 = vmatpush1.msra.mxu0 0.0
        %3253 = vmatprep.subr.mxu0 0.0
        %3254 = vmatpush1.msra.mxu0 0.0
        %3255 = vmatprep.subr.mxu0 0.0
        %3256 = vmatpush1.msra.mxu0 0.0
        %3257 = vmatprep.subr.mxu0 0.0
        %3258 = vmatpush1.msra.mxu0 0.0
        %3259 = vmatprep.subr.mxu0 0.0
        %3260 = vmatpush1.msra.mxu0 0.0
        %3261 = vmatprep.subr.mxu0 0.0
        %3262 = vmatpush1.msra.mxu0 0.0
        %3263 = vmatprep.subr.mxu0 0.0
        %3264 = vmatpush1.msra.mxu0 0.0
        %3265 = vmatprep.subr.mxu0 0.0
        %3266 = vmatpush1.msra.mxu0 0.0
        %3267 = vmatprep.subr.mxu0 0.0
        %3268 = vmatpush1.msra.mxu0 0.0
        %3269 = vmatprep.subr.mxu0 0.0
        %3270 = vmatpush1.msra.mxu0 0.0
        %3271 = vmatprep.subr.mxu0 0.0
        %3272 = vmatpush1.msra.mxu0 0.0
        %3273 = vmatprep.subr.mxu0 0.0
        %3274 = vmatpush1.msra.mxu0 0.0
        %3275 = vmatprep.subr.mxu0 0.0
        %3276 = vmatpush1.msra.mxu0 0.0
        %3277 = vmatprep.subr.mxu0 0.0
        %3278 = vmatpush1.msra.mxu0 0.0
        %3279 = vmatprep.subr.mxu0 0.0
        %3280 = vmatpush1.msra.mxu0 0.0
        %3281 = vmatprep.subr.mxu0 0.0
        %3282 = vmatpush1.msra.mxu0 0.0
        %3283 = vmatprep.mubr.f32.mxu0 0.0
        %3284 = vmatmul.mubr.f32.gmra.mrb[0].mxu0 %v3217
        %v3285 = vpop.f32.mrb[0].mxu0
        %v3286 = vadd.f32 0.0, %v3285
        %v3287 = vpop.f32.mrb[0].mxu0
        %3288 = vdwg.mxu0
        %v3290 = vsel %vm1074, %v3069, 0
        %3292 = vmatprep.subr.mxu0 0.0
        %3293 = vmatpush1.msra.mxu0 %v2717
        %3294 = vmatprep.subr.mxu0 0.0
        %3295 = vmatpush1.msra.mxu0 0.0
        %3296 = vmatprep.subr.mxu0 0.0
        %3297 = vmatpush1.msra.mxu0 0.0
        %3298 = vmatprep.subr.mxu0 0.0
        %3299 = vmatpush1.msra.mxu0 0.0
        %3300 = vmatprep.subr.mxu0 0.0
        %3301 = vmatpush1.msra.mxu0 0.0
        %3302 = vmatprep.subr.mxu0 0.0
        %3303 = vmatpush1.msra.mxu0 0.0
        %3304 = vmatprep.subr.mxu0 0.0
        %3305 = vmatpush1.msra.mxu0 0.0
        %3306 = vmatprep.subr.mxu0 0.0
        %3307 = vmatpush1.msra.mxu0 0.0
        %3308 = vmatprep.subr.mxu0 0.0
        %3309 = vmatpush1.msra.mxu0 0.0
        %3310 = vmatprep.subr.mxu0 0.0
        %3311 = vmatpush1.msra.mxu0 0.0
        %3312 = vmatprep.subr.mxu0 0.0
        %3313 = vmatpush1.msra.mxu0 0.0
        %3314 = vmatprep.subr.mxu0 0.0
        %3315 = vmatpush1.msra.mxu0 0.0
        %3316 = vmatprep.subr.mxu0 0.0
        %3317 = vmatpush1.msra.mxu0 0.0
        %3318 = vmatprep.subr.mxu0 0.0
        %3319 = vmatpush1.msra.mxu0 0.0
        %3320 = vmatprep.subr.mxu0 0.0
        %3321 = vmatpush1.msra.mxu0 0.0
        %3322 = vmatprep.subr.mxu0 0.0
        %3323 = vmatpush1.msra.mxu0 0.0
        %3324 = vmatprep.subr.mxu0 0.0
        %3325 = vmatpush1.msra.mxu0 0.0
        %3326 = vmatprep.subr.mxu0 0.0
        %3327 = vmatpush1.msra.mxu0 0.0
        %3328 = vmatprep.subr.mxu0 0.0
        %3329 = vmatpush1.msra.mxu0 0.0
        %3330 = vmatprep.subr.mxu0 0.0
        %3331 = vmatpush1.msra.mxu0 0.0
        %3332 = vmatprep.subr.mxu0 0.0
        %3333 = vmatpush1.msra.mxu0 0.0
        %3334 = vmatprep.subr.mxu0 0.0
        %3335 = vmatpush1.msra.mxu0 0.0
        %3336 = vmatprep.subr.mxu0 0.0
        %3337 = vmatpush1.msra.mxu0 0.0
        %3338 = vmatprep.subr.mxu0 0.0
        %3339 = vmatpush1.msra.mxu0 0.0
        %3340 = vmatprep.subr.mxu0 0.0
        %3341 = vmatpush1.msra.mxu0 0.0
        %3342 = vmatprep.subr.mxu0 0.0
        %3343 = vmatpush1.msra.mxu0 0.0
        %3344 = vmatprep.subr.mxu0 0.0
        %3345 = vmatpush1.msra.mxu0 0.0
        %3346 = vmatprep.subr.mxu0 0.0
        %3347 = vmatpush1.msra.mxu0 0.0
        %3348 = vmatprep.subr.mxu0 0.0
        %3349 = vmatpush1.msra.mxu0 0.0
        %3350 = vmatprep.subr.mxu0 0.0
        %3351 = vmatpush1.msra.mxu0 0.0
        %3352 = vmatprep.subr.mxu0 0.0
        %3353 = vmatpush1.msra.mxu0 0.0
        %3354 = vmatprep.subr.mxu0 0.0
        %3355 = vmatpush1.msra.mxu0 0.0
        %3356 = vmatprep.mubr.f32.mxu0 0.0
        %3357 = vmatmul.mubr.f32.gmra.mrb[0].mxu0 %v3290
        %v3358 = vpop.f32.mrb[0].mxu0
        %v3359 = vadd.f32 0.0, %v3358
        %v3360 = vpop.f32.mrb[0].mxu0
        %3361 = vdwg.mxu0
        %v3362 = vcombine.low %v3140, %v3286
        %v3363 = vcombine.high %v3140, %v3286
        %v3365 = vunpack.c.l.s4 1983009808
        %v3366 = vunpack.c.0.s8 %v3365
        %v3367 = vlaneseq
        %v3368 = vshrl.u32 %v3367, 7
        %v3369 = vsub.s32 %v3366, %v3368
        %v3370 = vrot.slane %v3362, %v3369
        %v3372 = vunpack.c.l.s4 1983009808
        %v3373 = vunpack.c.0.s8 %v3372
        %v3374 = vlaneseq
        %v3375 = vshrl.u32 %v3374, 7
        %v3376 = vsub.s32 %v3373, %v3375
        %v3377 = vrot.slane %v3363, %v3376
        %v3378 = vcombine.low %v3213, %v3359
        %v3379 = vcombine.high %v3213, %v3359
        %v3381 = vunpack.c.l.s4 1983009808
        %v3382 = vunpack.c.0.s8 %v3381
        %v3383 = vlaneseq
        %v3384 = vshrl.u32 %v3383, 7
        %v3385 = vsub.s32 %v3382, %v3384
        %v3386 = vrot.slane %v3378, %v3385
        %v3388 = vunpack.c.l.s4 1983009808
        %v3389 = vunpack.c.0.s8 %v3388
        %v3390 = vlaneseq
        %v3391 = vshrl.u32 %v3390, 7
        %v3392 = vsub.s32 %v3389, %v3391
        %v3393 = vrot.slane %v3379, %v3392
        %v3394 = vcombine.low %v3370, %v3386
        %v3395 = vcombine.high %v3370, %v3386
        %v3397 = vunpack.c.l.s4 1934713408
        %v3398 = vunpack.c.0.s8 %v3397
        %v3399 = vlaneseq
        %v3400 = vshrl.u32 %v3399, 7
        %v3401 = vsub.s32 %v3398, %v3400
        %v3402 = vrot.slane %v3394, %v3401
        %v3404 = vunpack.c.l.s4 1934713408
        %v3405 = vunpack.c.0.s8 %v3404
        %v3406 = vlaneseq
        %v3407 = vshrl.u32 %v3406, 7
        %v3408 = vsub.s32 %v3405, %v3407
        %v3409 = vrot.slane %v3395, %v3408
        %v3410 = vcombine.low %v3377, %v3393
        %v3411 = vcombine.high %v3377, %v3393
        %v3413 = vunpack.c.l.s4 1934713408
        %v3414 = vunpack.c.0.s8 %v3413
        %v3415 = vlaneseq
        %v3416 = vshrl.u32 %v3415, 7
        %v3417 = vsub.s32 %v3414, %v3416
        %v3418 = vrot.slane %v3410, %v3417
        %v3420 = vunpack.c.l.s4 1934713408
        %v3421 = vunpack.c.0.s8 %v3420
        %v3422 = vlaneseq
        %v3423 = vshrl.u32 %v3422, 7
        %v3424 = vsub.s32 %v3421, %v3423
        %v3425 = vrot.slane %v3411, %v3424
        %v3426 = vcombine.high %v3402, 0.0
        %v3427 = vcombine.high %v3409, 0.0
        %v3428 = vcombine.high %v3418, 0.0
        %v3429 = vcombine.high %v3425, 0.0
        %v3430 = vcombine.low %v3402, %v3409
        %v3432 = vunpack.c.l.s4 1983009808
        %v3433 = vunpack.c.0.s8 %v3432
        %v3434 = vlaneseq
        %v3435 = vshrl.u32 %v3434, 7
        %v3436 = vsub.s32 %v3433, %v3435
        %v3437 = vrot.slane %v3430, %v3436
        %v3438 = vcombine.low %v3426, %v3427
        %v3440 = vunpack.c.l.s4 1983009808
        %v3441 = vunpack.c.0.s8 %v3440
        %v3442 = vlaneseq
        %v3443 = vshrl.u32 %v3442, 7
        %v3444 = vsub.s32 %v3441, %v3443
        %v3445 = vrot.slane %v3438, %v3444
        %v3446 = vcombine.low %v3418, %v3425
        %v3448 = vunpack.c.l.s4 1983009808
        %v3449 = vunpack.c.0.s8 %v3448
        %v3450 = vlaneseq
        %v3451 = vshrl.u32 %v3450, 7
        %v3452 = vsub.s32 %v3449, %v3451
        %v3453 = vrot.slane %v3446, %v3452
        %v3454 = vcombine.low %v3428, %v3429
        %v3456 = vunpack.c.l.s4 1983009808
        %v3457 = vunpack.c.0.s8 %v3456
        %v3458 = vlaneseq
        %v3459 = vshrl.u32 %v3458, 7
        %v3460 = vsub.s32 %v3457, %v3459
        %v3461 = vrot.slane %v3454, %v3460
        %v3462 = vcombine.low %v3437, %v3445
        %v3463 = vcombine.high %v3437, %v3445
        %v3465 = vunpack.c.l.s4 1934713408
        %v3466 = vunpack.c.0.s8 %v3465
        %v3467 = vlaneseq
        %v3468 = vshrl.u32 %v3467, 7
        %v3469 = vsub.s32 %v3466, %v3468
        %v3470 = vrot.slane %v3462, %v3469
        %v3472 = vunpack.c.l.s4 1934713408
        %v3473 = vunpack.c.0.s8 %v3472
        %v3474 = vlaneseq
        %v3475 = vshrl.u32 %v3474, 7
        %v3476 = vsub.s32 %v3473, %v3475
        %v3477 = vrot.slane %v3463, %v3476
        %v3478 = vcombine.low %v3453, %v3461
        %v3479 = vcombine.high %v3453, %v3461
        %v3481 = vunpack.c.l.s4 1934713408
        %v3482 = vunpack.c.0.s8 %v3481
        %v3483 = vlaneseq
        %v3484 = vshrl.u32 %v3483, 7
        %v3485 = vsub.s32 %v3482, %v3484
        %v3486 = vrot.slane %v3478, %v3485
        %v3488 = vunpack.c.l.s4 1934713408
        %v3489 = vunpack.c.0.s8 %v3488
        %v3490 = vlaneseq
        %v3491 = vshrl.u32 %v3490, 7
        %v3492 = vsub.s32 %v3489, %v3491
        %v3493 = vrot.slane %v3479, %v3492
        %v3494 = vcombine.low %v3470, %v3486
        %v3495 = vcombine.high %v3470, %v3486
        %v3496 = vcombine.low %v3477, %v3493
        %v3497 = vcombine.high %v3477, %v3493
        %3499 = vrot.lane.b32.xlu0 %v3495, 8
        %v3500 = vpop.permute.xlu0 %3499
        %3503 = vrot.lane.b32.xlu0 %v3496, 16
        %v3504 = vpop.permute.xlu0 %3503
        %3507 = vrot.lane.b32.xlu0 %v3497, 24
        %v3508 = vpop.permute.xlu0 %3507
        %v3510 = vsel %vm1074, %v3494, %v3500
        %v3511 = vsel %vm1868, %v3510, %v3504
        %v3512 = vsel %vm1870, %v3511, %v3508
        %s3513 = scalar_lea.vmem %s4, 32
        %v3514 = vld [vmem:[%s3513] sm:$0xff]
        %v3515 = vld [vmem:[%s3513 + $0x8] sm:$0xff]
        %v3516 = vld [vmem:[%s3513 + $0x10] sm:$0xff]
        %v3517 = vld [vmem:[%s3513 + $0x18] sm:$0xff]
        %v3519 = vsel %vm526, %v3512, 0
        %3521 = vmatprep.subr.mxu0 0.0
        %3522 = vmatpush1.msra.mxu0 %v3514
        %3523 = vmatprep.subr.mxu0 0.0
        %3524 = vmatpush1.msra.mxu0 %v3515
        %3525 = vmatprep.subr.mxu0 0.0
        %3526 = vmatpush1.msra.mxu0 %v3516
        %3527 = vmatprep.subr.mxu0 0.0
        %3528 = vmatpush1.msra.mxu0 %v3517
        %3529 = vmatprep.subr.mxu0 0.0
        %3530 = vmatpush1.msra.mxu0 0.0
        %3531 = vmatprep.subr.mxu0 0.0
        %3532 = vmatpush1.msra.mxu0 0.0
        %3533 = vmatprep.subr.mxu0 0.0
        %3534 = vmatpush1.msra.mxu0 0.0
        %3535 = vmatprep.subr.mxu0 0.0
        %3536 = vmatpush1.msra.mxu0 0.0
        %3537 = vmatprep.subr.mxu0 0.0
        %3538 = vmatpush1.msra.mxu0 0.0
        %3539 = vmatprep.subr.mxu0 0.0
        %3540 = vmatpush1.msra.mxu0 0.0
        %3541 = vmatprep.subr.mxu0 0.0
        %3542 = vmatpush1.msra.mxu0 0.0
        %3543 = vmatprep.subr.mxu0 0.0
        %3544 = vmatpush1.msra.mxu0 0.0
        %3545 = vmatprep.subr.mxu0 0.0
        %3546 = vmatpush1.msra.mxu0 0.0
        %3547 = vmatprep.subr.mxu0 0.0
        %3548 = vmatpush1.msra.mxu0 0.0
        %3549 = vmatprep.subr.mxu0 0.0
        %3550 = vmatpush1.msra.mxu0 0.0
        %3551 = vmatprep.subr.mxu0 0.0
        %3552 = vmatpush1.msra.mxu0 0.0
        %3553 = vmatprep.subr.mxu0 0.0
        %3554 = vmatpush1.msra.mxu0 0.0
        %3555 = vmatprep.subr.mxu0 0.0
        %3556 = vmatpush1.msra.mxu0 0.0
        %3557 = vmatprep.subr.mxu0 0.0
        %3558 = vmatpush1.msra.mxu0 0.0
        %3559 = vmatprep.subr.mxu0 0.0
        %3560 = vmatpush1.msra.mxu0 0.0
        %3561 = vmatprep.subr.mxu0 0.0
        %3562 = vmatpush1.msra.mxu0 0.0
        %3563 = vmatprep.subr.mxu0 0.0
        %3564 = vmatpush1.msra.mxu0 0.0
        %3565 = vmatprep.subr.mxu0 0.0
        %3566 = vmatpush1.msra.mxu0 0.0
        %3567 = vmatprep.subr.mxu0 0.0
        %3568 = vmatpush1.msra.mxu0 0.0
        %3569 = vmatprep.subr.mxu0 0.0
        %3570 = vmatpush1.msra.mxu0 0.0
        %3571 = vmatprep.subr.mxu0 0.0
        %3572 = vmatpush1.msra.mxu0 0.0
        %3573 = vmatprep.subr.mxu0 0.0
        %3574 = vmatpush1.msra.mxu0 0.0
        %3575 = vmatprep.subr.mxu0 0.0
        %3576 = vmatpush1.msra.mxu0 0.0
        %3577 = vmatprep.subr.mxu0 0.0
        %3578 = vmatpush1.msra.mxu0 0.0
        %3579 = vmatprep.subr.mxu0 0.0
        %3580 = vmatpush1.msra.mxu0 0.0
        %3581 = vmatprep.subr.mxu0 0.0
        %3582 = vmatpush1.msra.mxu0 0.0
        %3583 = vmatprep.subr.mxu0 0.0
        %3584 = vmatpush1.msra.mxu0 0.0
        %3585 = vmatprep.mubr.f32.mxu0 0.0
        %3586 = vmatmul.mubr.f32.gmra.mrb[0].mxu0 %v3519
        %v3587 = vpop.f32.mrb[0].mxu0
        %v3588 = vadd.f32 0.0, %v3587
        %v3589 = vpop.f32.mrb[0].mxu0
        %3590 = vdwg.mxu0
        %v3591 = vadd.f32 %v2166, %v3588
        %s3592 = scalar_lea.vmem %s5, 1
        %v3593 = vld [vmem:[%s3592] sm:$0x1]
        %v3595 = vlaneseq
        %v3596 = vshrl.u32 %v3595, 7
        %v3597 = vsub.s32 0, %v3596
        %v3598 = vrot.slane %v3593, %v3597
        %v3600 = vadd.f32 %v3591, %v3598
        %s3601 = scalar_lea.vmem %s6, 1
        %v3602 = vld [vmem:[%s3601] sm:$0x1]
        %s3603 = scalar_lea.vmem %s7, 1
        %v3604 = vld [vmem:[%s3603] sm:$0x1]
        %v3605 = vsel %vm526, %v3600, 0.0
        %3606 = vadd.xlane.f32.xlu0 %v3605
        %v3607 = vpop.xlane.xlu0 %3606
        %v3608 = vmul.f32 %v3607, %v530
        %v3609 = vsub.f32 %v3600, %v3608
        %v3610 = vmul.f32 %v3609, %v3609
        %v3611 = vsel %vm526, %v3610, 0.0
        %3612 = vadd.xlane.f32.xlu0 %v3611
        %v3613 = vpop.xlane.xlu0 %3612
        %v3614 = vmul.f32 %v3613, %v530
        %v3615 = vadd.f32 %v3614, 1e-05
        %v3616 = vrsqrt.pop %v3615
        %v3617 = vmul.f32 %v3609, %v3616
        %v3619 = vlaneseq
        %v3620 = vshrl.u32 %v3619, 7
        %v3621 = vsub.s32 0, %v3620
        %v3622 = vrot.slane %v3602, %v3621
        %v3624 = vmul.f32 %v3617, %v3622
        %v3626 = vlaneseq
        %v3627 = vshrl.u32 %v3626, 7
        %v3628 = vsub.s32 0, %v3627
        %v3629 = vrot.slane %v3604, %v3628
        %v3631 = vadd.f32 %v3624, %v3629
        %s3632 = scalar_lea.vmem %s8, 32
        %v3633 = vld [vmem:[%s3632] sm:$0xff]
        %v3634 = vld [vmem:[%s3632 + $0x8] sm:$0xff]
        %v3635 = vld [vmem:[%s3632 + $0x10] sm:$0xff]
        %v3636 = vld [vmem:[%s3632 + $0x18] sm:$0xff]
        %s3637 = scalar_lea.vmem %s9, 1
        %v3638 = vld [vmem:[%s3637] sm:$0x1]
        %v3640 = vlaneseq
        %v3641 = vshrl.u32 %v3640, 7
        %v3642 = vsub.s32 0, %v3641
        %v3643 = vrot.slane %v3638, %v3642
        %v3646 = vsel %vm526, %v3631, 0
        %3648 = vmatprep.subr.mxu0 0.0
        %3649 = vmatpush1.msra.mxu0 %v3633
        %3650 = vmatprep.subr.mxu0 0.0
        %3651 = vmatpush1.msra.mxu0 %v3634
        %3652 = vmatprep.subr.mxu0 0.0
        %3653 = vmatpush1.msra.mxu0 %v3635
        %3654 = vmatprep.subr.mxu0 0.0
        %3655 = vmatpush1.msra.mxu0 %v3636
        %3656 = vmatprep.subr.mxu0 0.0
        %3657 = vmatpush1.msra.mxu0 0.0
        %3658 = vmatprep.subr.mxu0 0.0
        %3659 = vmatpush1.msra.mxu0 0.0
        %3660 = vmatprep.subr.mxu0 0.0
        %3661 = vmatpush1.msra.mxu0 0.0
        %3662 = vmatprep.subr.mxu0 0.0
        %3663 = vmatpush1.msra.mxu0 0.0
        %3664 = vmatprep.subr.mxu0 0.0
        %3665 = vmatpush1.msra.mxu0 0.0
        %3666 = vmatprep.subr.mxu0 0.0
        %3667 = vmatpush1.msra.mxu0 0.0
        %3668 = vmatprep.subr.mxu0 0.0
        %3669 = vmatpush1.msra.mxu0 0.0
        %3670 = vmatprep.subr.mxu0 0.0
        %3671 = vmatpush1.msra.mxu0 0.0
        %3672 = vmatprep.subr.mxu0 0.0
        %3673 = vmatpush1.msra.mxu0 0.0
        %3674 = vmatprep.subr.mxu0 0.0
        %3675 = vmatpush1.msra.mxu0 0.0
        %3676 = vmatprep.subr.mxu0 0.0
        %3677 = vmatpush1.msra.mxu0 0.0
        %3678 = vmatprep.subr.mxu0 0.0
        %3679 = vmatpush1.msra.mxu0 0.0
        %3680 = vmatprep.subr.mxu0 0.0
        %3681 = vmatpush1.msra.mxu0 0.0
        %3682 = vmatprep.subr.mxu0 0.0
        %3683 = vmatpush1.msra.mxu0 0.0
        %3684 = vmatprep.subr.mxu0 0.0
        %3685 = vmatpush1.msra.mxu0 0.0
        %3686 = vmatprep.subr.mxu0 0.0
        %3687 = vmatpush1.msra.mxu0 0.0
        %3688 = vmatprep.subr.mxu0 0.0
        %3689 = vmatpush1.msra.mxu0 0.0
        %3690 = vmatprep.subr.mxu0 0.0
        %3691 = vmatpush1.msra.mxu0 0.0
        %3692 = vmatprep.subr.mxu0 0.0
        %3693 = vmatpush1.msra.mxu0 0.0
        %3694 = vmatprep.subr.mxu0 0.0
        %3695 = vmatpush1.msra.mxu0 0.0
        %3696 = vmatprep.subr.mxu0 0.0
        %3697 = vmatpush1.msra.mxu0 0.0
        %3698 = vmatprep.subr.mxu0 0.0
        %3699 = vmatpush1.msra.mxu0 0.0
        %3700 = vmatprep.subr.mxu0 0.0
        %3701 = vmatpush1.msra.mxu0 0.0
        %3702 = vmatprep.subr.mxu0 0.0
        %3703 = vmatpush1.msra.mxu0 0.0
        %3704 = vmatprep.subr.mxu0 0.0
        %3705 = vmatpush1.msra.mxu0 0.0
        %3706 = vmatprep.subr.mxu0 0.0
        %3707 = vmatpush1.msra.mxu0 0.0
        %3708 = vmatprep.subr.mxu0 0.0
        %3709 = vmatpush1.msra.mxu0 0.0
        %3710 = vmatprep.subr.mxu0 0.0
        %3711 = vmatpush1.msra.mxu0 0.0
        %3712 = vmatprep.mubr.f32.mxu0 0.0
        %3713 = vmatmul.mubr.f32.gmra.mrb[0].mxu0 %v3646
        %v3714 = vpop.f32.mrb[0].mxu0
        %v3715 = vadd.f32 %v3643, %v3714
        %v3716 = vpop.f32.mrb[0].mxu0
        %3717 = vdwg.mxu0
        %v3718 = vmax.f32 %v3715, 0.0
        %s3719 = scalar_lea.vmem %s10, 128
        %v3720 = vld [vmem:[%s3719] sm:$0xff]
        %v3721 = vld [vmem:[%s3719 + $0x8] sm:$0xff]
        %v3722 = vld [vmem:[%s3719 + $0x10] sm:$0xff]
        %v3723 = vld [vmem:[%s3719 + $0x18] sm:$0xff]
        %v3724 = vld [vmem:[%s3719 + $0x20] sm:$0xff]
        %v3725 = vld [vmem:[%s3719 + $0x28] sm:$0xff]
        %v3726 = vld [vmem:[%s3719 + $0x30] sm:$0xff]
        %v3727 = vld [vmem:[%s3719 + $0x38] sm:$0xff]
        %v3728 = vld [vmem:[%s3719 + $0x40] sm:$0xff]
        %v3729 = vld [vmem:[%s3719 + $0x48] sm:$0xff]
        %v3730 = vld [vmem:[%s3719 + $0x50] sm:$0xff]
        %v3731 = vld [vmem:[%s3719 + $0x58] sm:$0xff]
        %v3732 = vld [vmem:[%s3719 + $0x60] sm:$0xff]
        %v3733 = vld [vmem:[%s3719 + $0x68] sm:$0xff]
        %v3734 = vld [vmem:[%s3719 + $0x70] sm:$0xff]
        %v3735 = vld [vmem:[%s3719 + $0x78] sm:$0xff]
        %3736 = vmatprep.subr.mxu0 0.0
        %3737 = vmatpush1.msra.mxu0 %v3720
        %3738 = vmatprep.subr.mxu0 0.0
        %3739 = vmatpush1.msra.mxu0 %v3721
        %3740 = vmatprep.subr.mxu0 0.0
        %3741 = vmatpush1.msra.mxu0 %v3722
        %3742 = vmatprep.subr.mxu0 0.0
        %3743 = vmatpush1.msra.mxu0 %v3723
        %3744 = vmatprep.subr.mxu0 0.0
        %3745 = vmatpush1.msra.mxu0 %v3724
        %3746 = vmatprep.subr.mxu0 0.0
        %3747 = vmatpush1.msra.mxu0 %v3725
        %3748 = vmatprep.subr.mxu0 0.0
        %3749 = vmatpush1.msra.mxu0 %v3726
        %3750 = vmatprep.subr.mxu0 0.0
        %3751 = vmatpush1.msra.mxu0 %v3727
        %3752 = vmatprep.subr.mxu0 0.0
        %3753 = vmatpush1.msra.mxu0 %v3728
        %3754 = vmatprep.subr.mxu0 0.0
        %3755 = vmatpush1.msra.mxu0 %v3729
        %3756 = vmatprep.subr.mxu0 0.0
        %3757 = vmatpush1.msra.mxu0 %v3730
        %3758 = vmatprep.subr.mxu0 0.0
        %3759 = vmatpush1.msra.mxu0 %v3731
        %3760 = vmatprep.subr.mxu0 0.0
        %3761 = vmatpush1.msra.mxu0 %v3732
        %3762 = vmatprep.subr.mxu0 0.0
        %3763 = vmatpush1.msra.mxu0 %v3733
        %3764 = vmatprep.subr.mxu0 0.0
        %3765 = vmatpush1.msra.mxu0 %v3734
        %3766 = vmatprep.subr.mxu0 0.0
        %3767 = vmatpush1.msra.mxu0 %v3735
        %3768 = vmatprep.subr.mxu0 0.0
        %3769 = vmatpush1.msra.mxu0 0.0
        %3770 = vmatprep.subr.mxu0 0.0
        %3771 = vmatpush1.msra.mxu0 0.0
        %3772 = vmatprep.subr.mxu0 0.0
        %3773 = vmatpush1.msra.mxu0 0.0
        %3774 = vmatprep.subr.mxu0 0.0
        %3775 = vmatpush1.msra.mxu0 0.0
        %3776 = vmatprep.subr.mxu0 0.0
        %3777 = vmatpush1.msra.mxu0 0.0
        %3778 = vmatprep.subr.mxu0 0.0
        %3779 = vmatpush1.msra.mxu0 0.0
        %3780 = vmatprep.subr.mxu0 0.0
        %3781 = vmatpush1.msra.mxu0 0.0
        %3782 = vmatprep.subr.mxu0 0.0
        %3783 = vmatpush1.msra.mxu0 0.0
        %3784 = vmatprep.subr.mxu0 0.0
        %3785 = vmatpush1.msra.mxu0 0.0
        %3786 = vmatprep.subr.mxu0 0.0
        %3787 = vmatpush1.msra.mxu0 0.0
        %3788 = vmatprep.subr.mxu0 0.0
        %3789 = vmatpush1.msra.mxu0 0.0
        %3790 = vmatprep.subr.mxu0 0.0
        %3791 = vmatpush1.msra.mxu0 0.0
        %3792 = vmatprep.subr.mxu0 0.0
        %3793 = vmatpush1.msra.mxu0 0.0
        %3794 = vmatprep.subr.mxu0 0.0
        %3795 = vmatpush1.msra.mxu0 0.0
        %3796 = vmatprep.subr.mxu0 0.0
        %3797 = vmatpush1.msra.mxu0 0.0
        %3798 = vmatprep.subr.mxu0 0.0
        %3799 = vmatpush1.msra.mxu0 0.0
        %3800 = vmatprep.mubr.f32.mxu0 0.0
        %3801 = vmatmul.mubr.f32.gmra.mrb[0].mxu0 %v3718
        %v3802 = vpop.f32.mrb[0].mxu0
        %v3803 = vadd.f32 0.0, %v3802
        %v3804 = vpop.f32.mrb[0].mxu0
        %3805 = vdwg.mxu0
        %v3806 = vadd.f32 %v3600, %v3803
        %s3807 = scalar_lea.vmem %s11, 1
        %v3808 = vld [vmem:[%s3807] sm:$0x1]
        %v3810 = vlaneseq
        %v3811 = vshrl.u32 %v3810, 7
        %v3812 = vsub.s32 0, %v3811
        %v3813 = vrot.slane %v3808, %v3812
        %v3815 = vadd.f32 %v3806, %v3813
        %v3816 = vld [vmem:[%s12] sm:$0x1]
        %v3817 = vld [vmem:[%s13] sm:$0x1]
        %v3818 = vsel %vm526, %v3815, 0.0
        %3819 = vadd.xlane.f32.xlu0 %v3818
        %v3820 = vpop.xlane.xlu0 %3819
        %v3821 = vmul.f32 %v3820, %v530
        %v3822 = vsub.f32 %v3815, %v3821
        %v3823 = vmul.f32 %v3822, %v3822
        %v3824 = vsel %vm526, %v3823, 0.0
        %3825 = vadd.xlane.f32.xlu0 %v3824
        %v3826 = vpop.xlane.xlu0 %3825
        %v3827 = vmul.f32 %v3826, %v530
        %v3828 = vadd.f32 %v3827, 1e-05
        %v3829 = vrsqrt.pop %v3828
        %v3830 = vmul.f32 %v3822, %v3829
        %v3832 = vlaneseq
        %v3833 = vshrl.u32 %v3832, 7
        %v3834 = vsub.s32 0, %v3833
        %v3835 = vrot.slane %v3816, %v3834
        %v3837 = vmul.f32 %v3830, %v3835
        %v3839 = vlaneseq
        %v3840 = vshrl.u32 %v3839, 7
        %v3841 = vsub.s32 0, %v3840
        %v3842 = vrot.slane %v3817, %v3841
        %v3844 = vadd.f32 %v3837, %v3842
        %v3845 = vld [vmem:[%s14] sm:$0xff]
        %v3846 = vld [vmem:[%s14 + $0x8] sm:$0xff]
        %v3847 = vld [vmem:[%s14 + $0x10] sm:$0xff]
        %v3848 = vld [vmem:[%s14 + $0x18] sm:$0xff]
        %v3849 = vld [vmem:[%s15] sm:$0x1]
        %v3851 = vlaneseq
        %v3852 = vshrl.u32 %v3851, 7
        %v3853 = vsub.s32 0, %v3852
        %v3854 = vrot.slane %v3849, %v3853
        %v3857 = vsel %vm526, %v3844, 0
        %3859 = vmatprep.subr.mxu0 0.0
        %3860 = vmatpush1.msra.mxu0 %v3845
        %3861 = vmatprep.subr.mxu0 0.0
        %3862 = vmatpush1.msra.mxu0 %v3846
        %3863 = vmatprep.subr.mxu0 0.0
        %3864 = vmatpush1.msra.mxu0 %v3847
        %3865 = vmatprep.subr.mxu0 0.0
        %3866 = vmatpush1.msra.mxu0 %v3848
        %3867 = vmatprep.subr.mxu0 0.0
        %3868 = vmatpush1.msra.mxu0 0.0
        %3869 = vmatprep.subr.mxu0 0.0
        %3870 = vmatpush1.msra.mxu0 0.0
        %3871 = vmatprep.subr.mxu0 0.0
        %3872 = vmatpush1.msra.mxu0 0.0
        %3873 = vmatprep.subr.mxu0 0.0
        %3874 = vmatpush1.msra.mxu0 0.0
        %3875 = vmatprep.subr.mxu0 0.0
        %3876 = vmatpush1.msra.mxu0 0.0
        %3877 = vmatprep.subr.mxu0 0.0
        %3878 = vmatpush1.msra.mxu0 0.0
        %3879 = vmatprep.subr.mxu0 0.0
        %3880 = vmatpush1.msra.mxu0 0.0
        %3881 = vmatprep.subr.mxu0 0.0
        %3882 = vmatpush1.msra.mxu0 0.0
        %3883 = vmatprep.subr.mxu0 0.0
        %3884 = vmatpush1.msra.mxu0 0.0
        %3885 = vmatprep.subr.mxu0 0.0
        %3886 = vmatpush1.msra.mxu0 0.0
        %3887 = vmatprep.subr.mxu0 0.0
        %3888 = vmatpush1.msra.mxu0 0.0
        %3889 = vmatprep.subr.mxu0 0.0
        %3890 = vmatpush1.msra.mxu0 0.0
        %3891 = vmatprep.subr.mxu0 0.0
        %3892 = vmatpush1.msra.mxu0 0.0
        %3893 = vmatprep.subr.mxu0 0.0
        %3894 = vmatpush1.msra.mxu0 0.0
        %3895 = vmatprep.subr.mxu0 0.0
        %3896 = vmatpush1.msra.mxu0 0.0
        %3897 = vmatprep.subr.mxu0 0.0
        %3898 = vmatpush1.msra.mxu0 0.0
        %3899 = vmatprep.subr.mxu0 0.0
        %3900 = vmatpush1.msra.mxu0 0.0
        %3901 = vmatprep.subr.mxu0 0.0
        %3902 = vmatpush1.msra.mxu0 0.0
        %3903 = vmatprep.subr.mxu0 0.0
        %3904 = vmatpush1.msra.mxu0 0.0
        %3905 = vmatprep.subr.mxu0 0.0
        %3906 = vmatpush1.msra.mxu0 0.0
        %3907 = vmatprep.subr.mxu0 0.0
        %3908 = vmatpush1.msra.mxu0 0.0
        %3909 = vmatprep.subr.mxu0 0.0
        %3910 = vmatpush1.msra.mxu0 0.0
        %3911 = vmatprep.subr.mxu0 0.0
        %3912 = vmatpush1.msra.mxu0 0.0
        %3913 = vmatprep.subr.mxu0 0.0
        %3914 = vmatpush1.msra.mxu0 0.0
        %3915 = vmatprep.subr.mxu0 0.0
        %3916 = vmatpush1.msra.mxu0 0.0
        %3917 = vmatprep.subr.mxu0 0.0
        %3918 = vmatpush1.msra.mxu0 0.0
        %3919 = vmatprep.subr.mxu0 0.0
        %3920 = vmatpush1.msra.mxu0 0.0
        %3921 = vmatprep.subr.mxu0 0.0
        %3922 = vmatpush1.msra.mxu0 0.0
        %3923 = vmatprep.mubr.f32.mxu0 0.0
        %3924 = vmatmul.mubr.f32.gmra.mrb[0].mxu0 %v3857
        %v3925 = vpop.f32.mrb[0].mxu0
        %v3926 = vadd.f32 %v3854, %v3925
        %v3927 = vpop.f32.mrb[0].mxu0
        %3928 = vdwg.mxu0
        %3929 = vst [vmem:[%s512] sm:$0xff] %v3926
        %s3930 = sand.u32 %s379, 1
        %s3931 = scalar_lea.sflag [#allocation3], %s3930
        %s3932 = sand.u32 %s379, 1
        %s3933 = smul.addr %s3932, 8
        %s3934 = scalar_lea.vmem [#allocation2], %s3933
        // Predicated region
        $region85: #{tpu_custom_call.1} parent=83 // pred_check
          %p3935 = pneg %p389
        $region86: #{tpu_custom_call.1} parent=83 // pred_check_branch
          %3937 = sbr.rel (%p3935) target = $region88
        $region87: #{tpu_custom_call.1} parent=83 // pred_region
          %s3939 = ssub.s32 128, 128
          %3940 = vsyncadd %s3931, %s3939
          %s3941 = smul.addr %s30, 128
          %s3942 = scalar_lea.hbm %s16, %s3941
          %s3944 = sshll.u32 %s3934, 4
          %s3945 = int_to_ptr.vmem [resolvable:$true] %s3944
          %3947 = dma.vmem_to_hbm [thread:$0]  %s3945, 128, %s3942, %s3931
        $region88: #{tpu_custom_call.1} parent=83 // pred_fallthru
          _
      $region84: #{tpu_custom_call.1} parent=5 // pred_fallthru
        _
      %p3948 = scmp.le.s32.totalorder 2, %s25
      // Predicated region
      $region89: #{tpu_custom_call.1} parent=5 // pred_check
        %p3949 = pneg %p3948
      $region90: #{tpu_custom_call.1} parent=5 // pred_check_branch
        %3951 = sbr.rel (%p3949) target = $region92
      $region91: #{tpu_custom_call.1} parent=5 // pred_region
        %s3952 = ssub.s32 %s25, 2
        // Predicated region
        $region93: #{tpu_custom_call.1} parent=91 // pred_check
          %p3953 = pneg %p395
        $region94: #{tpu_custom_call.1} parent=91 // pred_check_branch
          %3955 = sbr.rel (%p3953) target = $region96
        $region95: #{tpu_custom_call.1} parent=91 // pred_region
          %s3956 = sand.u32 %s380, 1
          %s3957 = scalar_lea.sflag [#allocation3], %s3956
          %s3958 = sand.u32 %s380, 1
          %s3959 = smul.addr %s3958, 8
          %s3960 = scalar_lea.vmem [#allocation2], %s3959
          %3961 = dma.done %s3957, 128
        $region96: #{tpu_custom_call.1} parent=91 // pred_fallthru
          _
      $region92: #{tpu_custom_call.1} parent=5 // pred_fallthru
        _
    $region6: #{tpu_custom_call.1} parent=1 // loop_footer
      %s29 = sadd.s32 1, %s25
    $region7: #{tpu_custom_call.1} parent=1 // loop_footer_branch
      %24 = sbr.rel target = $region3
    $region8: #{tpu_custom_call.1} parent=1 // loop_exit
      _
    %3962 = vsyncpa [#allocation3], 1
    %s3963 = scalar_lea.sflag [#allocation3], 1
    %3964 = vsyncpa %s3963, 1

</llo_original>
